<compile_context>
chip_gen: v5e
topology: v5e:2x2
jax: 0.10.0
libtpu: 0.0.40
codegen_flags: <defaults>
</compile_context>

<pallas_src>
import functools

import jax
import jax.numpy as jnp
from jax.experimental import pallas as pl
from jax.experimental.pallas import tpu as pltpu

LRELU_SLOPE = 0.1
LN_EPS = 1e-6


def _leaky_relu(x):
    return jnp.maximum(x, LRELU_SLOPE * x)


def _rep_spec(shape):
    """Full-array block, same block for every grid step (stays resident)."""
    nd = len(shape)
    return pl.BlockSpec(shape, lambda g, _n=nd: (0,) * _n)


# ----------------------------------------------------------------------------
# Kernel 1 (fused, per-batch):
#   z      = x @ [w_in | w_c] + [b_in | b_c]          (single MXU matmul, f32)
#   xmean  = mean_c(leaky(z[:, :C4]))                 (in_conv branch)
#   xfeat  = leaky(LN_channels_first(z[:, C4:]))      (conv branch, rsqrt/EUP)
#   ca     = sigmoid(meanHW(xfeat) @ w_ca + b_ca)     (bf16 MXU)
#   sa     = sigmoid(3x3 conv of xfeat + b_sa)        (MXU taps + 9 shifted adds)
#   var    = per-window unbiased variance of xmean    (one-pass via one matmul)
# ----------------------------------------------------------------------------
def _fused_kernel(H, W, C4, n_win,
                  x_ref, wcat_ref, bcat_ref, gamma_ref, beta_ref,
                  wtaps_ref, bsa_ref, wca_ref, bca_ref, pwin_ref,
                  sa_ref, ca_ref, var_ref, xpad_ref):
    # ---- fused 1x1 convs: read x once through the MXU -----------------------
    x2 = x_ref[0]                                                   # (H*W, C)
    # TODO(synk): kept f32 (not bf16) so the window-variance ordering that
    # drives the discrete top-k mask matches the f32 reference exactly.
    z = jnp.dot(x2, wcat_ref[...],
                preferred_element_type=jnp.float32) + bcat_ref[...]  # (H*W, 2*C4)

    # in_conv branch: LeakyReLU then channel mean (kept in VMEM, never to HBM)
    y = _leaky_relu(z[:, :C4])                                      # (H*W, C4)
    xmean = jnp.mean(y, axis=-1, keepdims=True)                     # (H*W, 1)

    # conv branch: channels_first LayerNorm (per pixel over C4) + LeakyReLU
    t = z[:, C4:]
    u = jnp.mean(t, axis=-1, keepdims=True)
    s = jnp.mean((t - u) ** 2, axis=-1, keepdims=True)
    xfeat = _leaky_relu(gamma_ref[...] * ((t - u) * jax.lax.rsqrt(s + LN_EPS))
                        + beta_ref[...])                            # (H*W, C4)

    # ---- CA: AdaptiveAvgPool2d(1) + 1x1 conv + sigmoid (bf16 MXU) -----------
    pooled = jnp.mean(xfeat, axis=0, keepdims=True)                 # (1, C4)
    ca = jnp.dot(pooled.astype(jnp.bfloat16), wca_ref[...],
                 preferred_element_type=jnp.float32) + bca_ref[...]
    ca_ref[0] = jax.nn.sigmoid(ca)                                  # (1, C)

    # ---- SA: 3x3 "same" conv (C4 -> 1) + sigmoid ----------------------------
    # Channel reduction on the MXU: taps[p, k] = xfeat[p,:] . w_sa[di,dj,:]
    taps = jnp.dot(xfeat.astype(jnp.bfloat16), wtaps_ref[...],
                   preferred_element_type=jnp.float32)              # (H*W, 9)
    # Zero only the 1-px border of the scratch; the interior is fully
    # overwritten every grid step (border-zeroing is safe per-core on v7x).
    zc = jnp.zeros((H + 2, 1, 9), jnp.float32)
    zr = jnp.zeros((1, W + 2, 9), jnp.float32)
    xpad_ref[:, 0:1, :] = zc
    xpad_ref[:, W + 1:W + 2, :] = zc
    xpad_ref[0:1, :, :] = zr
    xpad_ref[H + 1:H + 2, :, :] = zr
    if W % 8 == 0:
        xpad_ref[1:H + 1, 1:W + 1, :] = taps.reshape(H, W, 9)       # single store
    else:
        for i in range(H):                                          # layout-safe fallback
            xpad_ref[i + 1, 1:W + 1, :] = taps[i * W:(i + 1) * W, :]
    xp = xpad_ref[...]                                              # (H+2, W+2, 9)
    lane = jax.lax.broadcasted_iota(jnp.int32, (1, 1, 9), 2)
    acc9 = jnp.zeros((H, W, 9), jnp.float32)
    for di in range(3):
        for dj in range(3):
            k = di * 3 + dj
            acc9 = acc9 + jnp.where(lane == k, xp[di:di + H, dj:dj + W, :], 0.0)
    sa = jnp.sum(acc9, axis=-1) + bsa_ref[0, 0]                     # (H, W), b_sa from SMEM
    # TODO(synk): for W < 128 a lane-dense (B, H*W) output would avoid masked
    # vst's, but needs an in-kernel (H, W)->(H*W,) relayout; kept (H, W).
    sa_ref[0] = jax.nn.sigmoid(sa)

    # ---- per-window variance of xmean (unbiased, ONE pass) ------------------
    col = jax.lax.broadcasted_iota(jnp.int32, (H * W, 2), 1)
    xmb = jnp.broadcast_to(xmean, (H * W, 2))
    xm2 = jnp.where(col == 0, xmb, xmb * xmb)                       # [x, x^2]
    wsums = jnp.dot(pwin_ref[...], xm2,
                    preferred_element_type=jnp.float32)             # (N, 2)
    wmean = wsums[:, 0:1] * (1.0 / n_win)
    var_ref[0] = (wsums[:, 1:2] - n_win * wmean * wmean) * (1.0 / (n_win - 1))


def _fused_call(x_flat, w_cat, b_cat, gamma, beta, w_taps, b_sa, w_ca, b_ca,
                p_win, *, H, W, C4, ws, N):
    B, _, C = x_flat.shape
    f32 = 4
    need = (2 * H * W * C * f32                 # x block, double buffered
            + 6 * H * W * 2 * C4 * f32          # z / xfeat / temporaries (generous)
            + 2 * H * W * 9 * f32               # taps
            + (H + 2) * (W + 2) * 9 * f32       # padded scratch
            + 2 * N * H * W * f32               # resident p_win
            + 4 * (H * W + C + N) * f32         # outputs, double buffered
            + (2 << 20))                        # headroom
    vmem_limit = int(min(max(2 * need, 16 << 20), 64 << 20))
    kern = functools.partial(_fused_kernel, H, W, C4, ws * ws)
    # TODO(synk): when B < num_cores (v7x megacore) a second parallel grid axis
    # over pixel-row tiles would restore per-core double buffering of x.
    return pl.pallas_call(
        kern,
        grid=(B,),
        in_specs=[
            pl.BlockSpec((1, H * W, C), lambda b: (b, 0, 0)),
            _rep_spec(w_cat.shape), _rep_spec(b_cat.shape),
            _rep_spec(gamma.shape), _rep_spec(beta.shape),
            _rep_spec(w_taps.shape),
            pl.BlockSpec(memory_space=pltpu.MemorySpace.SMEM),      # b_sa scalar
            _rep_spec(w_ca.shape), _rep_spec(b_ca.shape),
            _rep_spec(p_win.shape),
        ],
        out_specs=(pl.BlockSpec((1, H, W), lambda b: (b, 0, 0)),
                   pl.BlockSpec((1, 1, C), lambda b: (b, 0, 0)),
                   pl.BlockSpec((1, N, 1), lambda b: (b, 0, 0))),
        out_shape=(jax.ShapeDtypeStruct((B, H, W), jnp.float32),
                   jax.ShapeDtypeStruct((B, 1, C), jnp.float32),
                   jax.ShapeDtypeStruct((B, N, 1), jnp.float32)),
        scratch_shapes=[pltpu.VMEM((H + 2, W + 2, 9), jnp.float32)],
        compiler_params=pltpu.CompilerParams(
            dimension_semantics=("parallel",),
            vmem_limit_bytes=vmem_limit),
    )(x_flat, w_cat, b_cat, gamma, beta, w_taps, b_sa, w_ca, b_ca, p_win)


# ----------------------------------------------------------------------------
# Kernel 2: out_mask blend.  All MLP math for the two candidate rows
# (mask==0 / mask==1) is precomputed in the wrapper; the kernel only does the
# lane-dense blend  o = out0 + m * (out1 - out0), tiled over rows and columns.
# ----------------------------------------------------------------------------
def _mask_blend_kernel(m_ref, o0_ref, d_ref, o_ref):
    o_ref[...] = o0_ref[...] + m_ref[...] * d_ref[...]


def _col_tile(e):
    for t in (2048, 1024, 512, 256, 128):
        if e % t == 0:
            return t
    return e


def _row_tile(bn, te):
    # keep the double-buffered (TR, TE) f32 output block under ~8 MiB
    cap = max(8, (8 << 20) // (2 * 4 * te))
    for t in (1024, 512, 256, 128, 64, 32, 16, 8):
        if t <= cap and bn % t == 0 and bn // t >= 2:   # >=2 grid steps
            return t
    return bn


def _mask_blend_call(mask2, out0, d01):
    BN = mask2.shape[0]
    E = out0.shape[1]
    TE = _col_tile(E)
    TR = _row_tile(BN, TE)
    need = 4 * (2 * TR * TE + 2 * TR + 4 * TE) + (1 << 20)
    vmem_limit = int(min(max(3 * need, 8 << 20), 64 << 20))
    return pl.pallas_call(
        _mask_blend_kernel,
        grid=(BN // TR, E // TE),
        in_specs=[pl.BlockSpec((TR, 1), lambda r, c: (r, 0)),
                  pl.BlockSpec((1, TE), lambda r, c: (0, c)),
                  pl.BlockSpec((1, TE), lambda r, c: (0, c))],
        out_specs=pl.BlockSpec((TR, TE), lambda r, c: (r, c)),
        out_shape=jax.ShapeDtypeStruct((BN, E), jnp.float32),
        compiler_params=pltpu.CompilerParams(
            dimension_semantics=("parallel", "parallel"),
            vmem_limit_bytes=vmem_limit),
    )(mask2, out0, d01)


# ----------------------------------------------------------------------------
# Full forward (wrapper = glue: transposes, constant pooling operator,
# argsort-based top-k mask, rank-1 MLP hoist, reshapes)
# ----------------------------------------------------------------------------
def mask_pre_forward(x_nchw, p, window_size):
    B, C, H, W = x_nchw.shape
    ws = window_size
    C4 = C // 4
    nH, nW = H // ws, W // ws
    N = nH * nW
    E = ws * ws * C

    x_flat = jnp.transpose(x_nchw, (0, 2, 3, 1)).astype(jnp.float32).reshape(B, H * W, C)

    # fuse the two 1x1 convs into one matmul (x read once through the MXU)
    w_cat = jnp.concatenate([p["w_in"], p["w_c"]], axis=1)           # (C, 2*C4)
    b_cat = jnp.concatenate([p["b_in"], p["b_c"]], axis=1)           # (1, 2*C4)

    # 3x3 conv taps arranged (C4, 9) for the in-kernel MXU channel reduction
    w_taps = jnp.transpose(p["w_sa"].reshape(9, C4), (1, 0)).astype(jnp.bfloat16)
    w_ca = p["w_ca"].astype(jnp.bfloat16)

    # constant window-pooling operator over flattened pixels
    # TODO(synk): could be bf16 (values are 0/1) but kept f32 so the variance
    # path is bit-identical to the f32 reference (top-k is discrete).
    pix = jnp.arange(H * W)
    win_id = (pix // W // ws) * nW + (pix % W) // ws                 # (H*W,)
    p_win = (win_id[None, :] == jnp.arange(N)[:, None]).astype(jnp.float32)  # (N, H*W)

    sa, ca, var = _fused_call(x_flat, w_cat, b_cat, p["gamma"], p["beta"],
                              w_taps, p["b_sa"], w_ca, p["b_ca"], p_win,
                              H=H, W=W, C4=C4, ws=ws, N=N)

    sa = sa.reshape(B, 1, H, W)           # matches torch (B, 1, H, W)
    ca = ca.reshape(B, C, 1, 1)           # matches torch (B, dim, 1, 1)
    var = var.reshape(B, N)

    # topk(largest=False): zero out the k_top lowest-variance windows
    # (sort/topk has no clean Pallas TPU equivalent -> wrapper glue)
    k_top = int(0.5 * N)
    idx = jnp.argsort(var, axis=1)[:, :k_top]
    mask = jnp.ones((B, N), jnp.float32).at[jnp.arange(B)[:, None], idx].set(0.0)

    # TODO(synk): the reference PyTorch code feeds a (B, N, 1) mask into
    # Linear(embed_dim, ...), a shape mismatch; we interpret it as the scalar
    # window mask broadcast over embed_dim (rank-1, values in {0,1}).
    # Hoist the MLP math for the two candidate rows out of the kernel:
    colsum = jnp.sum(p["w_m1"], axis=0, keepdims=True)               # (1, Eh)
    h0 = _leaky_relu(p["b_m1"])
    h1 = _leaky_relu(colsum + p["b_m1"])
    out0 = h0 @ p["w_m2"] + p["b_m2"]                                # (1, E)
    out1 = h1 @ p["w_m2"] + p["b_m2"]                                # (1, E)
    mask_out = _mask_blend_call(mask.reshape(B * N, 1), out0, out1 - out0)
    return mask_out.reshape(B, N, E), ca, sa


# ----------------------------------------------------------------------------
# Pure-JAX reference (for a correctness check)
# ----------------------------------------------------------------------------
def reference_forward(x_nchw, p, ws):
    B, C, H, W = x_nchw.shape
    x = jnp.transpose(x_nchw, (0, 2, 3, 1)).astype(jnp.float32)

    y = _leaky_relu(x @ p["w_in"] + p["b_in"])
    t = x @ p["w_c"] + p["b_c"]
    u = t.mean(-1, keepdims=True)
    s = ((t - u) ** 2).mean(-1, keepdims=True)
    xf = _leaky_relu((t - u) / jnp.sqrt(s + LN_EPS) * p["gamma"] + p["beta"])

    pooled = xf.mean(axis=(1, 2))
    ca = jax.nn.sigmoid(pooled @ p["w_ca"] + p["b_ca"]).reshape(B, C, 1, 1)

    xp = jnp.pad(xf, ((0, 0), (1, 1), (1, 1), (0, 0)))
    acc = jnp.zeros((B, H, W), jnp.float32)
    for di in range(3):
        for dj in range(3):
            acc = acc + jnp.sum(xp[:, di:di + H, dj:dj + W, :] * p["w_sa"][di, dj], axis=-1)
    sa = jax.nn.sigmoid(acc + p["b_sa"][0, 0]).reshape(B, 1, H, W)

    xm = y.mean(-1)
    nH, nW = H // ws, W // ws
    N = nH * nW
    xw = xm.reshape(B, nH, ws, nW, ws).transpose(0, 1, 3, 2, 4).reshape(B, N, ws * ws)
    var = jnp.var(xw, axis=-1, ddof=1)
    k_top = int(0.5 * N)
    idx = jnp.argsort(var, axis=1)[:, :k_top]
    mask = jnp.ones((B, N), jnp.float32).at[jnp.arange(B)[:, None], idx].set(0.0)
    E = ws * ws * C
    m_in = jnp.broadcast_to(mask[:, :, None], (B, N, E))
    h = _leaky_relu(m_in @ p["w_m1"] + p["b_m1"])
    return h @ p["w_m2"] + p["b_m2"], ca, sa


# ----------------------------------------------------------------------------
# Deterministic parameter init (shapes implied by MaskPre.__init__)
# ----------------------------------------------------------------------------
def init_params(key, dim, ws):
    C, C4, E = dim, dim // 4, ws * ws * dim
    ks = jax.random.split(key, 10)
    sc = 0.1
    p = {
        "w_in": jax.random.normal(ks[0], (C, C4)) * sc,
        "b_in": jax.random.normal(ks[1], (1, C4)) * sc,
        "w_c": jax.random.normal(ks[2], (C, C4)) * sc,
        "b_c": jax.random.normal(ks[3], (1, C4)) * sc,
        "gamma": jnp.ones((1, C4)),
        "beta": jnp.zeros((1, C4)),
        "w_sa": jax.random.normal(ks[4], (3, 3, C4)) * sc,
        "b_sa": jax.random.normal(ks[5], (1, 1)) * sc,
        "w_ca": jax.random.normal(ks[6], (C4, C)) * sc,
        "b_ca": jax.random.normal(ks[7], (1, C)) * sc,
        "w_m1": jax.random.normal(ks[8], (E, E // 2)) * sc,
        "b_m1": jnp.zeros((1, E // 2)),
        "w_m2": jax.random.normal(ks[9], (E // 2, E)) * sc,
        "b_m2": jnp.zeros((1, E)),
    }
    return {k: v.astype(jnp.float32) for k, v in p.items()}


if __name__ == "__main__":
    dim, ws = 8, 4
    B, H, W = 2, 16, 16

    key = jax.random.PRNGKey(0)
    kx, kp = jax.random.split(key)
    x = jax.random.normal(kx, (B, dim, H, W), jnp.float32)   # NCHW like PyTorch
    params = init_params(kp, dim, ws)

    mask_k, ca_k, sa_k = jax.block_until_ready(mask_pre_forward(x, params, ws))
    mask_r, ca_r, sa_r = reference_forward(x, params, ws)

    assert mask_k.shape == (B, (H // ws) * (W // ws), ws * ws * dim)
    assert ca_k.shape == (B, dim, 1, 1) and sa_k.shape == (B, 1, H, W)
    assert jnp.allclose(mask_k, mask_r, rtol=1e-2, atol=1e-2)
    assert jnp.allclose(ca_k, ca_r, rtol=1e-2, atol=1e-2)
    assert jnp.allclose(sa_k, sa_r, rtol=1e-2, atol=1e-2)

    print("KERNEL_OK")
</pallas_src>

<mosaic_0001>
module attributes {stable_mosaic.version = 11 : i64} {
  func.func @_fused_kernel(%arg0: i32, %arg1: memref<1x256x8xf32, #tpu.memory_space<vmem>>, %arg2: memref<8x4xf32, #tpu.memory_space<vmem>>, %arg3: memref<1x4xf32, #tpu.memory_space<vmem>>, %arg4: memref<1x2xf32, #tpu.memory_space<vmem>>, %arg5: memref<1x2xf32, #tpu.memory_space<vmem>>, %arg6: memref<2x9xbf16, #tpu.memory_space<vmem>>, %arg7: memref<1x1xf32, #tpu.memory_space<smem>>, %arg8: memref<2x8xbf16, #tpu.memory_space<vmem>>, %arg9: memref<1x8xf32, #tpu.memory_space<vmem>>, %arg10: memref<16x256xf32, #tpu.memory_space<vmem>>, %arg11: memref<1x16x16xf32, #tpu.memory_space<vmem>>, %arg12: memref<1x1x8xf32, #tpu.memory_space<vmem>>, %arg13: memref<1x16x1xf32, #tpu.memory_space<vmem>>, %arg14: memref<18x18x9xf32, #tpu.memory_space<vmem>>) attributes {dimension_semantics = [#tpu.dimension_semantics<parallel>], iteration_bounds = array<i64: 2>, scalar_prefetch = 0 : i64, scratch_operands = 1 : i64, tpu.core_type = #tpu.core_type<tc>, window_params = [{transform_indices = @transform_0, window_bounds = array<i64: 1, 256, 8>}, {pipeline_mode = #tpu.pipeline_mode<synchronous>, transform_indices = @transform_1, window_bounds = array<i64: 8, 4>}, {pipeline_mode = #tpu.pipeline_mode<synchronous>, transform_indices = @transform_2, window_bounds = array<i64: 1, 4>}, {pipeline_mode = #tpu.pipeline_mode<synchronous>, transform_indices = @transform_3, window_bounds = array<i64: 1, 2>}, {pipeline_mode = #tpu.pipeline_mode<synchronous>, transform_indices = @transform_4, window_bounds = array<i64: 1, 2>}, {pipeline_mode = #tpu.pipeline_mode<synchronous>, transform_indices = @transform_5, window_bounds = array<i64: 2, 9>}, {transform_indices = @transform_6, window_bounds = array<i64: 1, 1>}, {pipeline_mode = #tpu.pipeline_mode<synchronous>, transform_indices = @transform_7, window_bounds = array<i64: 2, 8>}, {pipeline_mode = #tpu.pipeline_mode<synchronous>, transform_indices = @transform_8, window_bounds = array<i64: 1, 8>}, {pipeline_mode = #tpu.pipeline_mode<synchronous>, transform_indices = @transform_9, window_bounds = array<i64: 16, 256>}, {transform_indices = @transform_10, window_bounds = array<i64: 1, 16, 16>}, {transform_indices = @transform_11, window_bounds = array<i64: 1, 1, 8>}, {transform_indices = @transform_12, window_bounds = array<i64: 1, 16, 1>}]} {
    %c0 = arith.constant 0 : index
    %c0_0 = arith.constant 0 : index
    %c0_1 = arith.constant 0 : index
    %0 = vector.load %arg1[%c0, %c0_0, %c0_1] : memref<1x256x8xf32, #tpu.memory_space<vmem>>, vector<1x256x8xf32>
    %1 = vector.shape_cast %0 : vector<1x256x8xf32> to vector<256x8xf32>
    %c0_2 = arith.constant 0 : index
    %c0_3 = arith.constant 0 : index
    %2 = vector.load %arg2[%c0_2, %c0_3] : memref<8x4xf32, #tpu.memory_space<vmem>>, vector<8x4xf32>
    %cst = arith.constant dense<0.000000e+00> : vector<256x4xf32>
    %3 = tpu.matmul %1, %2, %cst {dimension_numbers = #tpu.dot_dimension_numbers<[1], [0], [0], [1], [0, 0, 1, 1], [], []>} : vector<256x8xf32>, vector<8x4xf32>, vector<256x4xf32> -> vector<256x4xf32>
    %c0_4 = arith.constant 0 : index
    %c0_5 = arith.constant 0 : index
    %4 = vector.load %arg3[%c0_4, %c0_5] : memref<1x4xf32, #tpu.memory_space<vmem>>, vector<1x4xf32>
    %5 = vector.broadcast %4 : vector<1x4xf32> to vector<256x4xf32>
    %6 = arith.addf %3, %5 : vector<256x4xf32>
    %7 = vector.extract_strided_slice %6 {offsets = [0, 0], sizes = [256, 2], strides = [1, 1]} : vector<256x4xf32> to vector<256x2xf32>
    %cst_6 = arith.constant 1.000000e-01 : f32
    %8 = vector.broadcast %cst_6 : f32 to vector<256x2xf32>
    %9 = arith.mulf %8, %7 : vector<256x2xf32>
    %10 = arith.maximumf %7, %9 : vector<256x2xf32>
    %cst_7 = arith.constant dense<0.000000e+00> : vector<256xf32>
    %11 = vector.multi_reduction <add>, %10, %cst_7 [1] : vector<256x2xf32> to vector<256xf32>
    %12 = vector.shape_cast %11 : vector<256xf32> to vector<256x1xf32>
    %cst_8 = arith.constant 2.000000e+00 : f32
    %13 = vector.broadcast %cst_8 : f32 to vector<256x1xf32>
    %14 = arith.divf %12, %13 : vector<256x1xf32>
    %15 = vector.extract_strided_slice %6 {offsets = [0, 2], sizes = [256, 2], strides = [1, 1]} : vector<256x4xf32> to vector<256x2xf32>
    %cst_9 = arith.constant dense<0.000000e+00> : vector<256xf32>
    %16 = vector.multi_reduction <add>, %15, %cst_9 [1] : vector<256x2xf32> to vector<256xf32>
    %17 = vector.shape_cast %16 : vector<256xf32> to vector<256x1xf32>
    %cst_10 = arith.constant 2.000000e+00 : f32
    %18 = vector.broadcast %cst_10 : f32 to vector<256x1xf32>
    %19 = arith.divf %17, %18 : vector<256x1xf32>
    %20 = vector.broadcast %19 : vector<256x1xf32> to vector<256x2xf32>
    %21 = arith.subf %15, %20 : vector<256x2xf32>
    %22 = arith.mulf %21, %21 : vector<256x2xf32>
    %cst_11 = arith.constant dense<0.000000e+00> : vector<256xf32>
    %23 = vector.multi_reduction <add>, %22, %cst_11 [1] : vector<256x2xf32> to vector<256xf32>
    %24 = vector.shape_cast %23 : vector<256xf32> to vector<256x1xf32>
    %cst_12 = arith.constant 2.000000e+00 : f32
    %25 = vector.broadcast %cst_12 : f32 to vector<256x1xf32>
    %26 = arith.divf %24, %25 : vector<256x1xf32>
    %c0_13 = arith.constant 0 : index
    %c0_14 = arith.constant 0 : index
    %27 = vector.load %arg4[%c0_13, %c0_14] : memref<1x2xf32, #tpu.memory_space<vmem>>, vector<1x2xf32>
    %28 = vector.broadcast %19 : vector<256x1xf32> to vector<256x2xf32>
    %29 = arith.subf %15, %28 : vector<256x2xf32>
    %cst_15 = arith.constant 9.99999997E-7 : f32
    %30 = vector.broadcast %cst_15 : f32 to vector<256x1xf32>
    %31 = arith.addf %26, %30 : vector<256x1xf32>
    %32 = math.rsqrt %31 : vector<256x1xf32>
    %33 = vector.broadcast %32 : vector<256x1xf32> to vector<256x2xf32>
    %34 = arith.mulf %29, %33 : vector<256x2xf32>
    %35 = vector.broadcast %27 : vector<1x2xf32> to vector<256x2xf32>
    %36 = arith.mulf %35, %34 : vector<256x2xf32>
    %c0_16 = arith.constant 0 : index
    %c0_17 = arith.constant 0 : index
    %37 = vector.load %arg5[%c0_16, %c0_17] : memref<1x2xf32, #tpu.memory_space<vmem>>, vector<1x2xf32>
    %38 = vector.broadcast %37 : vector<1x2xf32> to vector<256x2xf32>
    %39 = arith.addf %36, %38 : vector<256x2xf32>
    %cst_18 = arith.constant 1.000000e-01 : f32
    %40 = vector.broadcast %cst_18 : f32 to vector<256x2xf32>
    %41 = arith.mulf %40, %39 : vector<256x2xf32>
    %42 = arith.maximumf %39, %41 : vector<256x2xf32>
    %cst_19 = arith.constant dense<0.000000e+00> : vector<2xf32>
    %43 = vector.multi_reduction <add>, %42, %cst_19 [0] : vector<256x2xf32> to vector<2xf32>
    %44 = vector.shape_cast %43 : vector<2xf32> to vector<1x2xf32>
    %cst_20 = arith.constant 2.560000e+02 : f32
    %45 = vector.broadcast %cst_20 : f32 to vector<1x2xf32>
    %46 = arith.divf %44, %45 : vector<1x2xf32>
    %47 = arith.truncf %46 : vector<1x2xf32> to vector<1x2xbf16>
    %c0_21 = arith.constant 0 : index
    %c0_22 = arith.constant 0 : index
    %48 = vector.load %arg8[%c0_21, %c0_22] : memref<2x8xbf16, #tpu.memory_space<vmem>>, vector<2x8xbf16>
    %cst_23 = arith.constant dense<0.000000e+00> : vector<1x8xf32>
    %49 = tpu.matmul %47, %48, %cst_23 {dimension_numbers = #tpu.dot_dimension_numbers<[1], [0], [0], [1], [0, 0, 1, 1], [], []>} : vector<1x2xbf16>, vector<2x8xbf16>, vector<1x8xf32> -> vector<1x8xf32>
    %c0_24 = arith.constant 0 : index
    %c0_25 = arith.constant 0 : index
    %50 = vector.load %arg9[%c0_24, %c0_25] : memref<1x8xf32, #tpu.memory_space<vmem>>, vector<1x8xf32>
    %51 = arith.addf %49, %50 : vector<1x8xf32>
    %52 = arith.negf %51 : vector<1x8xf32>
    %53 = math.exp %52 : vector<1x8xf32>
    %cst_26 = arith.constant 1.000000e+00 : f32
    %54 = vector.broadcast %cst_26 : f32 to vector<1x8xf32>
    %55 = arith.addf %54, %53 : vector<1x8xf32>
    %56 = arith.divf %54, %55 : vector<1x8xf32>
    %c0_27 = arith.constant 0 : index
    %c0_28 = arith.constant 0 : index
    %c0_29 = arith.constant 0 : index
    %57 = vector.load %arg12[%c0_27, %c0_28, %c0_29] : memref<1x1x8xf32, #tpu.memory_space<vmem>>, vector<1x1x8xf32>
    %58 = vector.shape_cast %57 : vector<1x1x8xf32> to vector<1x8xf32>
    %59 = vector.shape_cast %56 : vector<1x8xf32> to vector<1x1x8xf32>
    tpu.vector_store %arg12[%c0_27, %c0_28, %c0_29], %59 {strides = array<i32>} : memref<1x1x8xf32, #tpu.memory_space<vmem>>, vector<1x1x8xf32>,
    %60 = arith.truncf %42 : vector<256x2xf32> to vector<256x2xbf16>
    %c0_30 = arith.constant 0 : index
    %c0_31 = arith.constant 0 : index
    %61 = vector.load %arg6[%c0_30, %c0_31] : memref<2x9xbf16, #tpu.memory_space<vmem>>, vector<2x9xbf16>
    %cst_32 = arith.constant dense<0.000000e+00> : vector<256x9xf32>
    %62 = tpu.matmul %60, %61, %cst_32 {dimension_numbers = #tpu.dot_dimension_numbers<[1], [0], [0], [1], [0, 0, 1, 1], [], []>} : vector<256x2xbf16>, vector<2x9xbf16>, vector<256x9xf32> -> vector<256x9xf32>
    %cst_33 = arith.constant 0.000000e+00 : f32
    %63 = vector.broadcast %cst_33 : f32 to vector<18x1x9xf32>
    %cst_34 = arith.constant 0.000000e+00 : f32
    %64 = vector.broadcast %cst_34 : f32 to vector<1x18x9xf32>
    %c0_35 = arith.constant 0 : index
    %c0_36 = arith.constant 0 : index
    %c0_37 = arith.constant 0 : index
    %65 = vector.load %arg14[%c0_35, %c0_36, %c0_37] : memref<18x18x9xf32, #tpu.memory_space<vmem>>, vector<18x1x9xf32>
    tpu.vector_store %arg14[%c0_35, %c0_36, %c0_37], %63 {strides = array<i32>} : memref<18x18x9xf32, #tpu.memory_space<vmem>>, vector<18x1x9xf32>,
    %c0_38 = arith.constant 0 : index
    %c17 = arith.constant 17 : index
    %c0_39 = arith.constant 0 : index
    %66 = vector.load %arg14[%c0_38, %c17, %c0_39] : memref<18x18x9xf32, #tpu.memory_space<vmem>>, vector<18x1x9xf32>
    tpu.vector_store %arg14[%c0_38, %c17, %c0_39], %63 {strides = array<i32>} : memref<18x18x9xf32, #tpu.memory_space<vmem>>, vector<18x1x9xf32>,
    %c0_40 = arith.constant 0 : index
    %c0_41 = arith.constant 0 : index
    %c0_42 = arith.constant 0 : index
    %67 = vector.load %arg14[%c0_40, %c0_41, %c0_42] : memref<18x18x9xf32, #tpu.memory_space<vmem>>, vector<1x18x9xf32>
    tpu.vector_store %arg14[%c0_40, %c0_41, %c0_42], %64 {strides = array<i32>} : memref<18x18x9xf32, #tpu.memory_space<vmem>>, vector<1x18x9xf32>,
    %c17_43 = arith.constant 17 : index
    %c0_44 = arith.constant 0 : index
    %c0_45 = arith.constant 0 : index
    %68 = vector.load %arg14[%c17_43, %c0_44, %c0_45] : memref<18x18x9xf32, #tpu.memory_space<vmem>>, vector<1x18x9xf32>
    tpu.vector_store %arg14[%c17_43, %c0_44, %c0_45], %64 {strides = array<i32>} : memref<18x18x9xf32, #tpu.memory_space<vmem>>, vector<1x18x9xf32>,
    %69 = vector.shape_cast %62 : vector<256x9xf32> to vector<16x16x9xf32>
    %c1 = arith.constant 1 : index
    %c1_46 = arith.constant 1 : index
    %c0_47 = arith.constant 0 : index
    %70 = vector.load %arg14[%c1, %c1_46, %c0_47] : memref<18x18x9xf32, #tpu.memory_space<vmem>>, vector<16x16x9xf32>
    tpu.vector_store %arg14[%c1, %c1_46, %c0_47], %69 {strides = array<i32>} : memref<18x18x9xf32, #tpu.memory_space<vmem>>, vector<16x16x9xf32>,
    %c0_48 = arith.constant 0 : index
    %c0_49 = arith.constant 0 : index
    %c0_50 = arith.constant 0 : index
    %71 = vector.load %arg14[%c0_48, %c0_49, %c0_50] : memref<18x18x9xf32, #tpu.memory_space<vmem>>, vector<18x18x9xf32>
    %72 = tpu.iota {dimensions = array<i32: 2>} : vector<1x1x9xi32>
    %cst_51 = arith.constant 0.000000e+00 : f32
    %73 = vector.broadcast %cst_51 : f32 to vector<16x16x9xf32>
    %c0_i32 = arith.constant 0 : i32
    %74 = vector.broadcast %c0_i32 : i32 to vector<1x1x9xi32>
    %75 = arith.cmpi eq, %72, %74 : vector<1x1x9xi32>
    %76 = vector.extract_strided_slice %71 {offsets = [0, 0, 0], sizes = [16, 16, 9], strides = [1, 1, 1]} : vector<18x18x9xf32> to vector<16x16x9xf32>
    %cst_52 = arith.constant 0.000000e+00 : f32
    %77 = vector.shape_cast %75 : vector<1x1x9xi1> to vector<1x1x9xi1>
    %78 = vector.broadcast %77 : vector<1x1x9xi1> to vector<16x16x9xi1>
    %79 = vector.broadcast %cst_52 : f32 to vector<16x16x9xf32>
    %80 = arith.select %78, %76, %79 : vector<16x16x9xi1>, vector<16x16x9xf32>
    %81 = arith.addf %73, %80 : vector<16x16x9xf32>
    %c1_i32 = arith.constant 1 : i32
    %82 = vector.broadcast %c1_i32 : i32 to vector<1x1x9xi32>
    %83 = arith.cmpi eq, %72, %82 : vector<1x1x9xi32>
    %84 = vector.extract_strided_slice %71 {offsets = [0, 1, 0], sizes = [16, 16, 9], strides = [1, 1, 1]} : vector<18x18x9xf32> to vector<16x16x9xf32>
    %cst_53 = arith.constant 0.000000e+00 : f32
    %85 = vector.shape_cast %83 : vector<1x1x9xi1> to vector<1x1x9xi1>
    %86 = vector.broadcast %85 : vector<1x1x9xi1> to vector<16x16x9xi1>
    %87 = vector.broadcast %cst_53 : f32 to vector<16x16x9xf32>
    %88 = arith.select %86, %84, %87 : vector<16x16x9xi1>, vector<16x16x9xf32>
    %89 = arith.addf %81, %88 : vector<16x16x9xf32>
    %c2_i32 = arith.constant 2 : i32
    %90 = vector.broadcast %c2_i32 : i32 to vector<1x1x9xi32>
    %91 = arith.cmpi eq, %72, %90 : vector<1x1x9xi32>
    %92 = vector.extract_strided_slice %71 {offsets = [0, 2, 0], sizes = [16, 16, 9], strides = [1, 1, 1]} : vector<18x18x9xf32> to vector<16x16x9xf32>
    %cst_54 = arith.constant 0.000000e+00 : f32
    %93 = vector.shape_cast %91 : vector<1x1x9xi1> to vector<1x1x9xi1>
    %94 = vector.broadcast %93 : vector<1x1x9xi1> to vector<16x16x9xi1>
    %95 = vector.broadcast %cst_54 : f32 to vector<16x16x9xf32>
    %96 = arith.select %94, %92, %95 : vector<16x16x9xi1>, vector<16x16x9xf32>
    %97 = arith.addf %89, %96 : vector<16x16x9xf32>
    %c3_i32 = arith.constant 3 : i32
    %98 = vector.broadcast %c3_i32 : i32 to vector<1x1x9xi32>
    %99 = arith.cmpi eq, %72, %98 : vector<1x1x9xi32>
    %100 = vector.extract_strided_slice %71 {offsets = [1, 0, 0], sizes = [16, 16, 9], strides = [1, 1, 1]} : vector<18x18x9xf32> to vector<16x16x9xf32>
    %cst_55 = arith.constant 0.000000e+00 : f32
    %101 = vector.shape_cast %99 : vector<1x1x9xi1> to vector<1x1x9xi1>
    %102 = vector.broadcast %101 : vector<1x1x9xi1> to vector<16x16x9xi1>
    %103 = vector.broadcast %cst_55 : f32 to vector<16x16x9xf32>
    %104 = arith.select %102, %100, %103 : vector<16x16x9xi1>, vector<16x16x9xf32>
    %105 = arith.addf %97, %104 : vector<16x16x9xf32>
    %c4_i32 = arith.constant 4 : i32
    %106 = vector.broadcast %c4_i32 : i32 to vector<1x1x9xi32>
    %107 = arith.cmpi eq, %72, %106 : vector<1x1x9xi32>
    %108 = vector.extract_strided_slice %71 {offsets = [1, 1, 0], sizes = [16, 16, 9], strides = [1, 1, 1]} : vector<18x18x9xf32> to vector<16x16x9xf32>
    %cst_56 = arith.constant 0.000000e+00 : f32
    %109 = vector.shape_cast %107 : vector<1x1x9xi1> to vector<1x1x9xi1>
    %110 = vector.broadcast %109 : vector<1x1x9xi1> to vector<16x16x9xi1>
    %111 = vector.broadcast %cst_56 : f32 to vector<16x16x9xf32>
    %112 = arith.select %110, %108, %111 : vector<16x16x9xi1>, vector<16x16x9xf32>
    %113 = arith.addf %105, %112 : vector<16x16x9xf32>
    %c5_i32 = arith.constant 5 : i32
    %114 = vector.broadcast %c5_i32 : i32 to vector<1x1x9xi32>
    %115 = arith.cmpi eq, %72, %114 : vector<1x1x9xi32>
    %116 = vector.extract_strided_slice %71 {offsets = [1, 2, 0], sizes = [16, 16, 9], strides = [1, 1, 1]} : vector<18x18x9xf32> to vector<16x16x9xf32>
    %cst_57 = arith.constant 0.000000e+00 : f32
    %117 = vector.shape_cast %115 : vector<1x1x9xi1> to vector<1x1x9xi1>
    %118 = vector.broadcast %117 : vector<1x1x9xi1> to vector<16x16x9xi1>
    %119 = vector.broadcast %cst_57 : f32 to vector<16x16x9xf32>
    %120 = arith.select %118, %116, %119 : vector<16x16x9xi1>, vector<16x16x9xf32>
    %121 = arith.addf %113, %120 : vector<16x16x9xf32>
    %c6_i32 = arith.constant 6 : i32
    %122 = vector.broadcast %c6_i32 : i32 to vector<1x1x9xi32>
    %123 = arith.cmpi eq, %72, %122 : vector<1x1x9xi32>
    %124 = vector.extract_strided_slice %71 {offsets = [2, 0, 0], sizes = [16, 16, 9], strides = [1, 1, 1]} : vector<18x18x9xf32> to vector<16x16x9xf32>
    %cst_58 = arith.constant 0.000000e+00 : f32
    %125 = vector.shape_cast %123 : vector<1x1x9xi1> to vector<1x1x9xi1>
    %126 = vector.broadcast %125 : vector<1x1x9xi1> to vector<16x16x9xi1>
    %127 = vector.broadcast %cst_58 : f32 to vector<16x16x9xf32>
    %128 = arith.select %126, %124, %127 : vector<16x16x9xi1>, vector<16x16x9xf32>
    %129 = arith.addf %121, %128 : vector<16x16x9xf32>
    %c7_i32 = arith.constant 7 : i32
    %130 = vector.broadcast %c7_i32 : i32 to vector<1x1x9xi32>
    %131 = arith.cmpi eq, %72, %130 : vector<1x1x9xi32>
    %132 = vector.extract_strided_slice %71 {offsets = [2, 1, 0], sizes = [16, 16, 9], strides = [1, 1, 1]} : vector<18x18x9xf32> to vector<16x16x9xf32>
    %cst_59 = arith.constant 0.000000e+00 : f32
    %133 = vector.shape_cast %131 : vector<1x1x9xi1> to vector<1x1x9xi1>
    %134 = vector.broadcast %133 : vector<1x1x9xi1> to vector<16x16x9xi1>
    %135 = vector.broadcast %cst_59 : f32 to vector<16x16x9xf32>
    %136 = arith.select %134, %132, %135 : vector<16x16x9xi1>, vector<16x16x9xf32>
    %137 = arith.addf %129, %136 : vector<16x16x9xf32>
    %c8_i32 = arith.constant 8 : i32
    %138 = vector.broadcast %c8_i32 : i32 to vector<1x1x9xi32>
    %139 = arith.cmpi eq, %72, %138 : vector<1x1x9xi32>
    %140 = vector.extract_strided_slice %71 {offsets = [2, 2, 0], sizes = [16, 16, 9], strides = [1, 1, 1]} : vector<18x18x9xf32> to vector<16x16x9xf32>
    %cst_60 = arith.constant 0.000000e+00 : f32
    %141 = vector.shape_cast %139 : vector<1x1x9xi1> to vector<1x1x9xi1>
    %142 = vector.broadcast %141 : vector<1x1x9xi1> to vector<16x16x9xi1>
    %143 = vector.broadcast %cst_60 : f32 to vector<16x16x9xf32>
    %144 = arith.select %142, %140, %143 : vector<16x16x9xi1>, vector<16x16x9xf32>
    %145 = arith.addf %137, %144 : vector<16x16x9xf32>
    %cst_61 = arith.constant dense<0.000000e+00> : vector<16x16xf32>
    %146 = vector.multi_reduction <add>, %145, %cst_61 [2] : vector<16x16x9xf32> to vector<16x16xf32>
    %c0_62 = arith.constant 0 : index
    %c0_63 = arith.constant 0 : index
    %147 = memref.load %arg7[%c0_62, %c0_63] : memref<1x1xf32, #tpu.memory_space<smem>>
    %148 = vector.broadcast %147 : f32 to vector<16x16xf32>
    %149 = arith.addf %146, %148 : vector<16x16xf32>
    %150 = arith.negf %149 : vector<16x16xf32>
    %151 = math.exp %150 : vector<16x16xf32>
    %cst_64 = arith.constant 1.000000e+00 : f32
    %152 = vector.broadcast %cst_64 : f32 to vector<16x16xf32>
    %153 = arith.addf %152, %151 : vector<16x16xf32>
    %154 = arith.divf %152, %153 : vector<16x16xf32>
    %c0_65 = arith.constant 0 : index
    %c0_66 = arith.constant 0 : index
    %c0_67 = arith.constant 0 : index
    %155 = vector.load %arg11[%c0_65, %c0_66, %c0_67] : memref<1x16x16xf32, #tpu.memory_space<vmem>>, vector<1x16x16xf32>
    %156 = vector.shape_cast %155 : vector<1x16x16xf32> to vector<16x16xf32>
    %157 = vector.shape_cast %154 : vector<16x16xf32> to vector<1x16x16xf32>
    tpu.vector_store %arg11[%c0_65, %c0_66, %c0_67], %157 {strides = array<i32>} : memref<1x16x16xf32, #tpu.memory_space<vmem>>, vector<1x16x16xf32>,
    %158 = tpu.iota {dimensions = array<i32: 1>} : vector<256x2xi32>
    %159 = vector.shape_cast %14 : vector<256x1xf32> to vector<256x1xf32>
    %160 = vector.broadcast %159 : vector<256x1xf32> to vector<256x2xf32>
    %c0_i32_68 = arith.constant 0 : i32
    %161 = vector.broadcast %c0_i32_68 : i32 to vector<256x2xi32>
    %162 = arith.cmpi eq, %158, %161 : vector<256x2xi32>
    %163 = arith.mulf %160, %160 : vector<256x2xf32>
    %164 = arith.select %162, %160, %163 : vector<256x2xi1>, vector<256x2xf32>
    %c0_69 = arith.constant 0 : index
    %c0_70 = arith.constant 0 : index
    %165 = vector.load %arg10[%c0_69, %c0_70] : memref<16x256xf32, #tpu.memory_space<vmem>>, vector<16x256xf32>
    %cst_71 = arith.constant dense<0.000000e+00> : vector<16x2xf32>
    %166 = tpu.matmul %165, %164, %cst_71 {dimension_numbers = #tpu.dot_dimension_numbers<[1], [0], [0], [1], [0, 0, 1, 1], [], []>} : vector<16x256xf32>, vector<256x2xf32>, vector<16x2xf32> -> vector<16x2xf32>
    %167 = vector.extract_strided_slice %166 {offsets = [0, 0], sizes = [16, 1], strides = [1, 1]} : vector<16x2xf32> to vector<16x1xf32>
    %cst_72 = arith.constant 6.250000e-02 : f32
    %168 = vector.broadcast %cst_72 : f32 to vector<16x1xf32>
    %169 = arith.mulf %167, %168 : vector<16x1xf32>
    %170 = vector.extract_strided_slice %166 {offsets = [0, 1], sizes = [16, 1], strides = [1, 1]} : vector<16x2xf32> to vector<16x1xf32>
    %cst_73 = arith.constant 1.600000e+01 : f32
    %171 = vector.broadcast %cst_73 : f32 to vector<16x1xf32>
    %172 = arith.mulf %171, %169 : vector<16x1xf32>
    %173 = arith.mulf %172, %169 : vector<16x1xf32>
    %174 = arith.subf %170, %173 : vector<16x1xf32>
    %cst_74 = arith.constant 0.0666666701 : f32
    %175 = vector.broadcast %cst_74 : f32 to vector<16x1xf32>
    %176 = arith.mulf %174, %175 : vector<16x1xf32>
    %c0_75 = arith.constant 0 : index
    %c0_76 = arith.constant 0 : index
    %c0_77 = arith.constant 0 : index
    %177 = vector.load %arg13[%c0_75, %c0_76, %c0_77] : memref<1x16x1xf32, #tpu.memory_space<vmem>>, vector<1x16x1xf32>
    %178 = vector.shape_cast %177 : vector<1x16x1xf32> to vector<16x1xf32>
    %179 = vector.shape_cast %176 : vector<16x1xf32> to vector<1x16x1xf32>
    tpu.vector_store %arg13[%c0_75, %c0_76, %c0_77], %179 {strides = array<i32>} : memref<1x16x1xf32, #tpu.memory_space<vmem>>, vector<1x16x1xf32>,
    return
  }
  func.func @transform_0(%arg0: i32) -> (i32, i32, i32) {
    %c0_i32 = arith.constant 0 : i32
    %c0_i32_0 = arith.constant 0 : i32
    %c0_i32_1 = arith.constant 0 : i32
    return %arg0, %c0_i32, %c0_i32_0 : i32, i32, i32
  }
  func.func @transform_1(%arg0: i32) -> (i32, i32) {
    %c0_i32 = arith.constant 0 : i32
    %c0_i32_0 = arith.constant 0 : i32
    %c0_i32_1 = arith.constant 0 : i32
    return %c0_i32, %c0_i32_0 : i32, i32
  }
  func.func @transform_2(%arg0: i32) -> (i32, i32) {
    %c0_i32 = arith.constant 0 : i32
    %c0_i32_0 = arith.constant 0 : i32
    %c0_i32_1 = arith.constant 0 : i32
    return %c0_i32, %c0_i32_0 : i32, i32
  }
  func.func @transform_3(%arg0: i32) -> (i32, i32) {
    %c0_i32 = arith.constant 0 : i32
    %c0_i32_0 = arith.constant 0 : i32
    %c0_i32_1 = arith.constant 0 : i32
    return %c0_i32, %c0_i32_0 : i32, i32
  }
  func.func @transform_4(%arg0: i32) -> (i32, i32) {
    %c0_i32 = arith.constant 0 : i32
    %c0_i32_0 = arith.constant 0 : i32
    %c0_i32_1 = arith.constant 0 : i32
    return %c0_i32, %c0_i32_0 : i32, i32
  }
  func.func @transform_5(%arg0: i32) -> (i32, i32) {
    %c0_i32 = arith.constant 0 : i32
    %c0_i32_0 = arith.constant 0 : i32
    %c0_i32_1 = arith.constant 0 : i32
    return %c0_i32, %c0_i32_0 : i32, i32
  }
  func.func @transform_6(%arg0: i32) -> (i32, i32) {
    %c0_i32 = arith.constant 0 : i32
    %c0_i32_0 = arith.constant 0 : i32
    %c0_i32_1 = arith.constant 0 : i32
    return %c0_i32, %c0_i32_0 : i32, i32
  }
  func.func @transform_7(%arg0: i32) -> (i32, i32) {
    %c0_i32 = arith.constant 0 : i32
    %c0_i32_0 = arith.constant 0 : i32
    %c0_i32_1 = arith.constant 0 : i32
    return %c0_i32, %c0_i32_0 : i32, i32
  }
  func.func @transform_8(%arg0: i32) -> (i32, i32) {
    %c0_i32 = arith.constant 0 : i32
    %c0_i32_0 = arith.constant 0 : i32
    %c0_i32_1 = arith.constant 0 : i32
    return %c0_i32, %c0_i32_0 : i32, i32
  }
  func.func @transform_9(%arg0: i32) -> (i32, i32) {
    %c0_i32 = arith.constant 0 : i32
    %c0_i32_0 = arith.constant 0 : i32
    %c0_i32_1 = arith.constant 0 : i32
    return %c0_i32, %c0_i32_0 : i32, i32
  }
  func.func @transform_10(%arg0: i32) -> (i32, i32, i32) {
    %c0_i32 = arith.constant 0 : i32
    %c0_i32_0 = arith.constant 0 : i32
    %c0_i32_1 = arith.constant 0 : i32
    return %arg0, %c0_i32, %c0_i32_0 : i32, i32, i32
  }
  func.func @transform_11(%arg0: i32) -> (i32, i32, i32) {
    %c0_i32 = arith.constant 0 : i32
    %c0_i32_0 = arith.constant 0 : i32
    %c0_i32_1 = arith.constant 0 : i32
    return %arg0, %c0_i32, %c0_i32_0 : i32, i32, i32
  }
  func.func @transform_12(%arg0: i32) -> (i32, i32, i32) {
    %c0_i32 = arith.constant 0 : i32
    %c0_i32_0 = arith.constant 0 : i32
    %c0_i32_1 = arith.constant 0 : i32
    return %arg0, %c0_i32, %c0_i32_0 : i32, i32, i32
  }
}

</mosaic_0001>

<llo_original>
// kernel: tpu_custom_call.1
$region0: #{tpu_custom_call.1}
  #allocation0 [shape = 'u32[]', space=smem, size = 0x4, offset = 0x4, fixed_abs, tag = 'smem constant byte address 0x4 - core index']
  #allocation1 [shape = 'u32[72,128]{1,0:T(1,128)}', space=vmem, size = 0x9000, scoped, tag = 'internal scratch']
  #allocation2 [shape = 'f32[18,18,9]{2,1,0:T(8,128)}', space=vmem, size = 0x36000, scoped, tag = 'scratch operand']
  #allocation3 [shape = 'f32[1,1]{1,0:T(1,128)S(6)}', space=smem, size = 0x200, scoped, tag = 'scoped memory for tpu_custom_call.1']
  %s0 = inlined_call_operand.vmem [shape: f32[2,256,8], index: 0, kind: input, shape index: {}]
  %s1 = inlined_call_operand.vmem [shape: f32[8,4], index: 1, kind: input, shape index: {}]
  %s2 = inlined_call_operand.vmem [shape: f32[1,4], index: 2, kind: input, shape index: {}]
  %s3 = inlined_call_operand.vmem [shape: f32[1,2], index: 3, kind: input, shape index: {}]
  %s4 = inlined_call_operand.vmem [shape: f32[1,2], index: 4, kind: input, shape index: {}]
  %s5 = inlined_call_operand.vmem [shape: bf16[2,9], index: 5, kind: input, shape index: {}]
  %s6 = inlined_call_operand.<no memory space> [shape: f32[1,1], index: 6, kind: input, shape index: {}]
  %s7 = inlined_call_operand.vmem [shape: bf16[2,8], index: 7, kind: input, shape index: {}]
  %s8 = inlined_call_operand.vmem [shape: f32[1,8], index: 8, kind: input, shape index: {}]
  %s9 = inlined_call_operand.vmem [shape: f32[16,256], index: 9, kind: input, shape index: {}]
  %s10 = inlined_call_operand.hbm [shape: f32[2,16,16], index: 10, kind: output, shape index: {0}]
  %s11 = inlined_call_operand.hbm [shape: f32[2,1,8], index: 11, kind: output, shape index: {1}]
  %s12 = inlined_call_operand.vmem [shape: f32[2,16,1], index: 12, kind: output, shape index: {2}]
  %13 = xla_tuple %s10, %s11, %s12
  %s14 = sld [smem:[#allocation0]]
  $region89: #{tpu_custom_call.1} parent=0
    _
  %s16 = ssub.s32 1, %s14
  %s17 = scalar_select 0, %s16, %s14
  %18 = sst [smem:[#allocation3]] %s6
  $region1: #{tpu_custom_call.1} parent=0
    #allocation4 [shape = 'u8[16384]{0}', space=vmem, size = 0x4000, scoped, tag = 'output window, operand 0']
    #allocation5 [shape = 's32[2]{0}', space=sflag, size = 0x8, scoped, tag = 'scoped memory for tpu_custom_call.1']
    #allocation6 [shape = 'u8[1024]{0}', space=vmem, size = 0x400, scoped, tag = 'output window, operand 1']
    #allocation7 [shape = 's32[2]{0}', space=sflag, size = 0x8, scoped, tag = 'scoped memory for tpu_custom_call.1']
    %19 = vsyncpa [#allocation5], 0
    %s20 = scalar_lea.sflag [#allocation5], 1
    %21 = vsyncpa %s20, 0
    %22 = vsyncpa [#allocation7], 0
    %s23 = scalar_lea.sflag [#allocation7], 1
    %24 = vsyncpa %s23, 0
    loop: start=0, step=1, limit=4
    $region2: #{tpu_custom_call.1} parent=1 // loop_pre_header
      _
    $region3: #{tpu_custom_call.1} parent=1 // loop_header
      %s26 = sphi 0, %s30
      %p27 = scmp.ge.s32.totalorder %s26, 4
      %s36 = sphi 0, %s38
      %s39 = sphi 0, %s36
      %s40 = sphi 0, %s39
      %s56 = sphi 0, %s40
      %s60 = sphi 0, %s60
      %s62 = sphi 0, %s60
      %s63 = sphi 0, %s62
      %s77 = sphi 0, %s63
      %s81 = sphi 0, %s81
      %s83 = sphi 0, %s81
      %s84 = sphi 0, %s83
      %s98 = sphi 0, %s84
      %s102 = sphi 0, %s102
      %s104 = sphi 0, %s102
      %s105 = sphi 0, %s104
      %s119 = sphi 0, %s105
      %s123 = sphi 0, %s123
      %s125 = sphi 0, %s123
      %s126 = sphi 0, %s125
      %s140 = sphi 0, %s126
      %s144 = sphi 0, %s144
      %s146 = sphi 0, %s144
      %s147 = sphi 0, %s146
      %s161 = sphi 0, %s147
      %s165 = sphi 0, %s165
      %s167 = sphi 0, %s165
      %s168 = sphi 0, %s167
      %s182 = sphi 0, %s168
      %s186 = sphi 0, %s186
      %s188 = sphi 0, %s186
      %s189 = sphi 0, %s188
      %s203 = sphi 0, %s189
      %s207 = sphi 0, %s207
      %s209 = sphi 0, %s207
      %s210 = sphi 0, %s209
      %s224 = sphi 0, %s210
      %s228 = sphi 0, %s228
      %s230 = sphi 0, %s228
      %s231 = sphi 0, %s230
      %s245 = sphi 0, %s231
      %s251 = sphi 0, %s253
      %s254 = sphi 0, %s251
      %s255 = sphi 0, %s254
      %s271 = sphi 0, %s255
      %s277 = sphi 0, %s279
      %s280 = sphi 0, %s277
      %s281 = sphi 0, %s280
      %s297 = sphi 0, %s281
      %s303 = sphi 0, %s305
      %s306 = sphi 0, %s303
      %s307 = sphi 0, %s306
      %s323 = sphi 0, %s307
    $region4: #{tpu_custom_call.1} parent=1 // loop_header_branch
      %29 = sbr.rel (%p27) target = $region8
    $region5: #{tpu_custom_call.1} parent=1 // loop_body
      %s31 = ssub.s32 %s26, 1
      %s32 = ssub.s32 %s26, 2
      %s33 = sadd.s32 %s26, 1
      %s34 = ssub.s32 %s26, %s33
      %p35 = scmp.eq.s32.totalorder %s34, 0
      %s37 = sadd.s32 %s36, 1
      %s38 = scalar_select %p35, %s36, %s37
      %p41 = pneg %p35
      %p42 = scmp.eq.s32.totalorder %s26, 1
      %p43 = por %p41, %p42
      %p44 = scmp.ne.s32.totalorder %s36, %s39
      %p45 = scmp.eq.s32.totalorder %s26, 0
      %p46 = por %p44, %p45
      %p47 = scmp.ne.s32.totalorder %s36, %s39
      %p48 = scmp.eq.s32.totalorder %s31, 1
      %p49 = por %p47, %p48
      %p50 = scmp.ne.s32.totalorder %s39, %s40
      %p51 = scmp.eq.s32.totalorder %s31, 0
      %p52 = por %p50, %p51
      %p53 = scmp.ne.s32.totalorder %s39, %s40
      %p54 = scmp.eq.s32.totalorder %s32, 1
      %p55 = por %p53, %p54
      %p57 = scmp.ne.s32.totalorder %s40, %s56
      %p58 = scmp.eq.s32.totalorder %s32, 0
      %p59 = por %p57, %p58
      %s61 = sadd.s32 %s60, 1
      %p64 = scmp.eq.s32.totalorder %s26, 1
      %p65 = scmp.ne.s32.totalorder %s60, %s62
      %p66 = scmp.eq.s32.totalorder %s26, 0
      %p67 = por %p65, %p66
      %p68 = scmp.ne.s32.totalorder %s60, %s62
      %p69 = scmp.eq.s32.totalorder %s31, 1
      %p70 = por %p68, %p69
      %p71 = scmp.ne.s32.totalorder %s62, %s63
      %p72 = scmp.eq.s32.totalorder %s31, 0
      %p73 = por %p71, %p72
      %p74 = scmp.ne.s32.totalorder %s62, %s63
      %p75 = scmp.eq.s32.totalorder %s32, 1
      %p76 = por %p74, %p75
      %p78 = scmp.ne.s32.totalorder %s63, %s77
      %p79 = scmp.eq.s32.totalorder %s32, 0
      %p80 = por %p78, %p79
      %s82 = sadd.s32 %s81, 1
      %p85 = scmp.eq.s32.totalorder %s26, 1
      %p86 = scmp.ne.s32.totalorder %s81, %s83
      %p87 = scmp.eq.s32.totalorder %s26, 0
      %p88 = por %p86, %p87
      %p89 = scmp.ne.s32.totalorder %s81, %s83
      %p90 = scmp.eq.s32.totalorder %s31, 1
      %p91 = por %p89, %p90
      %p92 = scmp.ne.s32.totalorder %s83, %s84
      %p93 = scmp.eq.s32.totalorder %s31, 0
      %p94 = por %p92, %p93
      %p95 = scmp.ne.s32.totalorder %s83, %s84
      %p96 = scmp.eq.s32.totalorder %s32, 1
      %p97 = por %p95, %p96
      %p99 = scmp.ne.s32.totalorder %s84, %s98
      %p100 = scmp.eq.s32.totalorder %s32, 0
      %p101 = por %p99, %p100
      %s103 = sadd.s32 %s102, 1
      %p106 = scmp.eq.s32.totalorder %s26, 1
      %p107 = scmp.ne.s32.totalorder %s102, %s104
      %p108 = scmp.eq.s32.totalorder %s26, 0
      %p109 = por %p107, %p108
      %p110 = scmp.ne.s32.totalorder %s102, %s104
      %p111 = scmp.eq.s32.totalorder %s31, 1
      %p112 = por %p110, %p111
      %p113 = scmp.ne.s32.totalorder %s104, %s105
      %p114 = scmp.eq.s32.totalorder %s31, 0
      %p115 = por %p113, %p114
      %p116 = scmp.ne.s32.totalorder %s104, %s105
      %p117 = scmp.eq.s32.totalorder %s32, 1
      %p118 = por %p116, %p117
      %p120 = scmp.ne.s32.totalorder %s105, %s119
      %p121 = scmp.eq.s32.totalorder %s32, 0
      %p122 = por %p120, %p121
      %s124 = sadd.s32 %s123, 1
      %p127 = scmp.eq.s32.totalorder %s26, 1
      %p128 = scmp.ne.s32.totalorder %s123, %s125
      %p129 = scmp.eq.s32.totalorder %s26, 0
      %p130 = por %p128, %p129
      %p131 = scmp.ne.s32.totalorder %s123, %s125
      %p132 = scmp.eq.s32.totalorder %s31, 1
      %p133 = por %p131, %p132
      %p134 = scmp.ne.s32.totalorder %s125, %s126
      %p135 = scmp.eq.s32.totalorder %s31, 0
      %p136 = por %p134, %p135
      %p137 = scmp.ne.s32.totalorder %s125, %s126
      %p138 = scmp.eq.s32.totalorder %s32, 1
      %p139 = por %p137, %p138
      %p141 = scmp.ne.s32.totalorder %s126, %s140
      %p142 = scmp.eq.s32.totalorder %s32, 0
      %p143 = por %p141, %p142
      %s145 = sadd.s32 %s144, 1
      %p148 = scmp.eq.s32.totalorder %s26, 1
      %p149 = scmp.ne.s32.totalorder %s144, %s146
      %p150 = scmp.eq.s32.totalorder %s26, 0
      %p151 = por %p149, %p150
      %p152 = scmp.ne.s32.totalorder %s144, %s146
      %p153 = scmp.eq.s32.totalorder %s31, 1
      %p154 = por %p152, %p153
      %p155 = scmp.ne.s32.totalorder %s146, %s147
      %p156 = scmp.eq.s32.totalorder %s31, 0
      %p157 = por %p155, %p156
      %p158 = scmp.ne.s32.totalorder %s146, %s147
      %p159 = scmp.eq.s32.totalorder %s32, 1
      %p160 = por %p158, %p159
      %p162 = scmp.ne.s32.totalorder %s147, %s161
      %p163 = scmp.eq.s32.totalorder %s32, 0
      %p164 = por %p162, %p163
      %s166 = sadd.s32 %s165, 1
      %p169 = scmp.eq.s32.totalorder %s26, 1
      %p170 = scmp.ne.s32.totalorder %s165, %s167
      %p171 = scmp.eq.s32.totalorder %s26, 0
      %p172 = por %p170, %p171
      %p173 = scmp.ne.s32.totalorder %s165, %s167
      %p174 = scmp.eq.s32.totalorder %s31, 1
      %p175 = por %p173, %p174
      %p176 = scmp.ne.s32.totalorder %s167, %s168
      %p177 = scmp.eq.s32.totalorder %s31, 0
      %p178 = por %p176, %p177
      %p179 = scmp.ne.s32.totalorder %s167, %s168
      %p180 = scmp.eq.s32.totalorder %s32, 1
      %p181 = por %p179, %p180
      %p183 = scmp.ne.s32.totalorder %s168, %s182
      %p184 = scmp.eq.s32.totalorder %s32, 0
      %p185 = por %p183, %p184
      %s187 = sadd.s32 %s186, 1
      %p190 = scmp.eq.s32.totalorder %s26, 1
      %p191 = scmp.ne.s32.totalorder %s186, %s188
      %p192 = scmp.eq.s32.totalorder %s26, 0
      %p193 = por %p191, %p192
      %p194 = scmp.ne.s32.totalorder %s186, %s188
      %p195 = scmp.eq.s32.totalorder %s31, 1
      %p196 = por %p194, %p195
      %p197 = scmp.ne.s32.totalorder %s188, %s189
      %p198 = scmp.eq.s32.totalorder %s31, 0
      %p199 = por %p197, %p198
      %p200 = scmp.ne.s32.totalorder %s188, %s189
      %p201 = scmp.eq.s32.totalorder %s32, 1
      %p202 = por %p200, %p201
      %p204 = scmp.ne.s32.totalorder %s189, %s203
      %p205 = scmp.eq.s32.totalorder %s32, 0
      %p206 = por %p204, %p205
      %s208 = sadd.s32 %s207, 1
      %p211 = scmp.eq.s32.totalorder %s26, 1
      %p212 = scmp.ne.s32.totalorder %s207, %s209
      %p213 = scmp.eq.s32.totalorder %s26, 0
      %p214 = por %p212, %p213
      %p215 = scmp.ne.s32.totalorder %s207, %s209
      %p216 = scmp.eq.s32.totalorder %s31, 1
      %p217 = por %p215, %p216
      %p218 = scmp.ne.s32.totalorder %s209, %s210
      %p219 = scmp.eq.s32.totalorder %s31, 0
      %p220 = por %p218, %p219
      %p221 = scmp.ne.s32.totalorder %s209, %s210
      %p222 = scmp.eq.s32.totalorder %s32, 1
      %p223 = por %p221, %p222
      %p225 = scmp.ne.s32.totalorder %s210, %s224
      %p226 = scmp.eq.s32.totalorder %s32, 0
      %p227 = por %p225, %p226
      %s229 = sadd.s32 %s228, 1
      %p232 = scmp.eq.s32.totalorder %s26, 1
      %p233 = scmp.ne.s32.totalorder %s228, %s230
      %p234 = scmp.eq.s32.totalorder %s26, 0
      %p235 = por %p233, %p234
      %p236 = scmp.ne.s32.totalorder %s228, %s230
      %p237 = scmp.eq.s32.totalorder %s31, 1
      %p238 = por %p236, %p237
      %p239 = scmp.ne.s32.totalorder %s230, %s231
      %p240 = scmp.eq.s32.totalorder %s31, 0
      %p241 = por %p239, %p240
      %p242 = scmp.ne.s32.totalorder %s230, %s231
      %p243 = scmp.eq.s32.totalorder %s32, 1
      %p244 = por %p242, %p243
      %p246 = scmp.ne.s32.totalorder %s231, %s245
      %p247 = scmp.eq.s32.totalorder %s32, 0
      %p248 = por %p246, %p247
      %s249 = ssub.s32 %s26, %s33
      %p250 = scmp.eq.s32.totalorder %s249, 0
      %s252 = sadd.s32 %s251, 1
      %s253 = scalar_select %p250, %s251, %s252
      %p256 = pneg %p250
      %p257 = scmp.eq.s32.totalorder %s26, 1
      %p258 = por %p256, %p257
      %p259 = scmp.ne.s32.totalorder %s251, %s254
      %p260 = scmp.eq.s32.totalorder %s26, 0
      %p261 = por %p259, %p260
      %p262 = scmp.ne.s32.totalorder %s251, %s254
      %p263 = scmp.eq.s32.totalorder %s31, 1
      %p264 = por %p262, %p263
      %p265 = scmp.ne.s32.totalorder %s254, %s255
      %p266 = scmp.eq.s32.totalorder %s31, 0
      %p267 = por %p265, %p266
      %p268 = scmp.ne.s32.totalorder %s254, %s255
      %p269 = scmp.eq.s32.totalorder %s32, 1
      %p270 = por %p268, %p269
      %p272 = scmp.ne.s32.totalorder %s255, %s271
      %p273 = scmp.eq.s32.totalorder %s32, 0
      %p274 = por %p272, %p273
      %s275 = ssub.s32 %s26, %s33
      %p276 = scmp.eq.s32.totalorder %s275, 0
      %s278 = sadd.s32 %s277, 1
      %s279 = scalar_select %p276, %s277, %s278
      %p282 = pneg %p276
      %p283 = scmp.eq.s32.totalorder %s26, 1
      %p284 = por %p282, %p283
      %p285 = scmp.ne.s32.totalorder %s277, %s280
      %p286 = scmp.eq.s32.totalorder %s26, 0
      %p287 = por %p285, %p286
      %p288 = scmp.ne.s32.totalorder %s277, %s280
      %p289 = scmp.eq.s32.totalorder %s31, 1
      %p290 = por %p288, %p289
      %p291 = scmp.ne.s32.totalorder %s280, %s281
      %p292 = scmp.eq.s32.totalorder %s31, 0
      %p293 = por %p291, %p292
      %p294 = scmp.ne.s32.totalorder %s280, %s281
      %p295 = scmp.eq.s32.totalorder %s32, 1
      %p296 = por %p294, %p295
      %p298 = scmp.ne.s32.totalorder %s281, %s297
      %p299 = scmp.eq.s32.totalorder %s32, 0
      %p300 = por %p298, %p299
      %s301 = ssub.s32 %s26, %s33
      %p302 = scmp.eq.s32.totalorder %s301, 0
      %s304 = sadd.s32 %s303, 1
      %s305 = scalar_select %p302, %s303, %s304
      %p308 = pneg %p302
      %p309 = scmp.eq.s32.totalorder %s26, 1
      %p310 = por %p308, %p309
      %p311 = scmp.ne.s32.totalorder %s303, %s306
      %p312 = scmp.eq.s32.totalorder %s26, 0
      %p313 = por %p311, %p312
      %p314 = scmp.ne.s32.totalorder %s303, %s306
      %p315 = scmp.eq.s32.totalorder %s31, 1
      %p316 = por %p314, %p315
      %p317 = scmp.ne.s32.totalorder %s306, %s307
      %p318 = scmp.eq.s32.totalorder %s31, 0
      %p319 = por %p317, %p318
      %p320 = scmp.ne.s32.totalorder %s306, %s307
      %p321 = scmp.eq.s32.totalorder %s32, 1
      %p322 = por %p320, %p321
      %p324 = scmp.ne.s32.totalorder %s307, %s323
      %p325 = scmp.eq.s32.totalorder %s32, 0
      %p326 = por %p324, %p325
      %p327 = scmp.le.s32.totalorder 1, %s26
      %p328 = scmp.lt.s32.totalorder %s26, 3
      %p329 = pnand %p327, %p328
      %p330 = pneg %p329
      // Predicated region
      $region9: #{tpu_custom_call.1} parent=5 // pred_check
        _
      $region10: #{tpu_custom_call.1} parent=5 // pred_check_branch
        %332 = sbr.rel (%p329) target = $region12
      $region11: #{tpu_custom_call.1} parent=5 // pred_region
        %s333 = ssub.s32 %s26, 1
        // Predicated region
        $region13: #{tpu_custom_call.1} parent=11 // pred_check
          %p334 = pneg %p73
        $region14: #{tpu_custom_call.1} parent=11 // pred_check_branch
          %336 = sbr.rel (%p334) target = $region16
        $region15: #{tpu_custom_call.1} parent=11 // pred_region
          _
        $region16: #{tpu_custom_call.1} parent=11 // pred_fallthru
          _
        // Predicated region
        $region17: #{tpu_custom_call.1} parent=11 // pred_check
          %p337 = pneg %p94
        $region18: #{tpu_custom_call.1} parent=11 // pred_check_branch
          %339 = sbr.rel (%p337) target = $region20
        $region19: #{tpu_custom_call.1} parent=11 // pred_region
          _
        $region20: #{tpu_custom_call.1} parent=11 // pred_fallthru
          _
        // Predicated region
        $region21: #{tpu_custom_call.1} parent=11 // pred_check
          %p340 = pneg %p115
        $region22: #{tpu_custom_call.1} parent=11 // pred_check_branch
          %342 = sbr.rel (%p340) target = $region24
        $region23: #{tpu_custom_call.1} parent=11 // pred_region
          _
        $region24: #{tpu_custom_call.1} parent=11 // pred_fallthru
          _
        // Predicated region
        $region25: #{tpu_custom_call.1} parent=11 // pred_check
          %p343 = pneg %p136
        $region26: #{tpu_custom_call.1} parent=11 // pred_check_branch
          %345 = sbr.rel (%p343) target = $region28
        $region27: #{tpu_custom_call.1} parent=11 // pred_region
          _
        $region28: #{tpu_custom_call.1} parent=11 // pred_fallthru
          _
        // Predicated region
        $region29: #{tpu_custom_call.1} parent=11 // pred_check
          %p346 = pneg %p157
        $region30: #{tpu_custom_call.1} parent=11 // pred_check_branch
          %348 = sbr.rel (%p346) target = $region32
        $region31: #{tpu_custom_call.1} parent=11 // pred_region
          _
        $region32: #{tpu_custom_call.1} parent=11 // pred_fallthru
          _
        // Predicated region
        $region33: #{tpu_custom_call.1} parent=11 // pred_check
          %p349 = pneg %p178
        $region34: #{tpu_custom_call.1} parent=11 // pred_check_branch
          %351 = sbr.rel (%p349) target = $region36
        $region35: #{tpu_custom_call.1} parent=11 // pred_region
          _
        $region36: #{tpu_custom_call.1} parent=11 // pred_fallthru
          _
        // Predicated region
        $region37: #{tpu_custom_call.1} parent=11 // pred_check
          %p352 = pneg %p199
        $region38: #{tpu_custom_call.1} parent=11 // pred_check_branch
          %354 = sbr.rel (%p352) target = $region40
        $region39: #{tpu_custom_call.1} parent=11 // pred_region
          _
        $region40: #{tpu_custom_call.1} parent=11 // pred_fallthru
          _
        // Predicated region
        $region41: #{tpu_custom_call.1} parent=11 // pred_check
          %p355 = pneg %p220
        $region42: #{tpu_custom_call.1} parent=11 // pred_check_branch
          %357 = sbr.rel (%p355) target = $region44
        $region43: #{tpu_custom_call.1} parent=11 // pred_region
          _
        $region44: #{tpu_custom_call.1} parent=11 // pred_fallthru
          _
        // Predicated region
        $region45: #{tpu_custom_call.1} parent=11 // pred_check
          %p358 = pneg %p241
        $region46: #{tpu_custom_call.1} parent=11 // pred_check_branch
          %360 = sbr.rel (%p358) target = $region48
        $region47: #{tpu_custom_call.1} parent=11 // pred_region
          _
        $region48: #{tpu_custom_call.1} parent=11 // pred_fallthru
          _
      $region12: #{tpu_custom_call.1} parent=5 // pred_fallthru
        _
      %p361 = scmp.lt.s32.totalorder %s26, 2
      // Predicated region
      $region49: #{tpu_custom_call.1} parent=5 // pred_check
        %p362 = pneg %p361
      $region50: #{tpu_custom_call.1} parent=5 // pred_check_branch
        %364 = sbr.rel (%p362) target = $region52
      $region51: #{tpu_custom_call.1} parent=5 // pred_region
        // Predicated region
        $region53: #{tpu_custom_call.1} parent=51 // pred_check
          %p365 = pneg %p46
        $region54: #{tpu_custom_call.1} parent=51 // pred_check_branch
          %367 = sbr.rel (%p365) target = $region56
        $region55: #{tpu_custom_call.1} parent=51 // pred_region
          %p368 = scmp.lt.s32.totalorder %s26, 1
          %s369 = scalar_select %p368, %s26, 1
          %s370 = smul.addr %s369, 32
          %s371 = smul.addr %s370, 8
          %s372 = scalar_lea.vmem %s0, %s371
        $region56: #{tpu_custom_call.1} parent=51 // pred_fallthru
          _
      $region52: #{tpu_custom_call.1} parent=5 // pred_fallthru
        _
      %p373 = scmp.le.s32.totalorder 1, %s26
      %p374 = scmp.lt.s32.totalorder %s26, 3
      %p375 = pnand %p373, %p374
      %p376 = pneg %p375
      // Predicated region
      $region57: #{tpu_custom_call.1} parent=5 // pred_check
        _
      $region58: #{tpu_custom_call.1} parent=5 // pred_check_branch
        %378 = sbr.rel (%p375) target = $region60
      $region59: #{tpu_custom_call.1} parent=5 // pred_region
        %s379 = ssub.s32 %s26, 1
        %p380 = scmp.lt.s32.totalorder %s31, 1
        %s381 = scalar_select %p380, %s31, 1
        %s382 = smul.addr %s381, 32
        %s383 = smul.addr %s382, 8
        %s384 = scalar_lea.vmem %s0, %s383
        %p385 = pneg %p52
        %p386 = pneg %p49
        %p387 = pneg %p73
        %p388 = pneg %p70
        %p389 = pneg %p94
        %p390 = pneg %p91
        %p391 = pneg %p115
        %p392 = pneg %p112
        %p393 = pneg %p136
        %p394 = pneg %p133
        %p395 = pneg %p157
        %p396 = pneg %p154
        %p397 = pneg %p178
        %p398 = pneg %p175
        %p399 = pneg %p199
        %p400 = pneg %p196
        %p401 = pneg %p220
        %p402 = pneg %p217
        %p403 = pneg %p241
        %p404 = pneg %p238
        %p405 = pneg %p267
        %p406 = pneg %p264
        %s407 = sand.u32 %s254, 1
        %s408 = scalar_lea.sflag [#allocation5], %s407
        %s409 = sand.u32 %s254, 1
        %s410 = smul.addr %s409, 16
        %s411 = scalar_lea.vmem [#allocation4], %s410
        %p412 = pneg %p293
        %p413 = pneg %p290
        %s414 = sand.u32 %s280, 1
        %s415 = scalar_lea.sflag [#allocation7], %s414
        %s416 = sand.u32 %s280, 1
        %s417 = scalar_lea.vmem [#allocation6], %s416
        %p418 = pneg %p319
        %p419 = pneg %p316
        %p420 = scmp.lt.s32.totalorder %s31, 1
        %s421 = scalar_select %p420, %s31, 1
        %s422 = smul.addr %s421, 2
        %s423 = smul.addr %s422, 8
        %s424 = scalar_lea.vmem %s12, %s423
        %p425 = scmp.lt.s32.totalorder %s31, 1
        %s426 = scalar_select %p425, %s31, 1
        %s427 = smul.addr %s426, 32
        %s428 = smul.addr %s427, 8
        %s429 = scalar_lea.vmem %s0, %s428
        %p430 = scmp.lt.s32.totalorder %s31, 1
        %s431 = scalar_select %p430, %s31, 1
        %s432 = smul.addr %s431, 2
        %s433 = smul.addr %s432, 8
        %s434 = scalar_lea.vmem %s12, %s433
        %v436 = vld [vmem:[%s429] sm:$0xff]
        %v437 = vld [vmem:[%s429 + $0x8] sm:$0xff]
        %v438 = vld [vmem:[%s429 + $0x10] sm:$0xff]
        %v439 = vld [vmem:[%s429 + $0x18] sm:$0xff]
        %v440 = vld [vmem:[%s429 + $0x20] sm:$0xff]
        %v441 = vld [vmem:[%s429 + $0x28] sm:$0xff]
        %v442 = vld [vmem:[%s429 + $0x30] sm:$0xff]
        %v443 = vld [vmem:[%s429 + $0x38] sm:$0xff]
        %v444 = vld [vmem:[%s429 + $0x40] sm:$0xff]
        %v445 = vld [vmem:[%s429 + $0x48] sm:$0xff]
        %v446 = vld [vmem:[%s429 + $0x50] sm:$0xff]
        %v447 = vld [vmem:[%s429 + $0x58] sm:$0xff]
        %v448 = vld [vmem:[%s429 + $0x60] sm:$0xff]
        %v449 = vld [vmem:[%s429 + $0x68] sm:$0xff]
        %v450 = vld [vmem:[%s429 + $0x70] sm:$0xff]
        %v451 = vld [vmem:[%s429 + $0x78] sm:$0xff]
        %v452 = vld [vmem:[%s429 + $0x80] sm:$0xff]
        %v453 = vld [vmem:[%s429 + $0x88] sm:$0xff]
        %v454 = vld [vmem:[%s429 + $0x90] sm:$0xff]
        %v455 = vld [vmem:[%s429 + $0x98] sm:$0xff]
        %v456 = vld [vmem:[%s429 + $0xa0] sm:$0xff]
        %v457 = vld [vmem:[%s429 + $0xa8] sm:$0xff]
        %v458 = vld [vmem:[%s429 + $0xb0] sm:$0xff]
        %v459 = vld [vmem:[%s429 + $0xb8] sm:$0xff]
        %v460 = vld [vmem:[%s429 + $0xc0] sm:$0xff]
        %v461 = vld [vmem:[%s429 + $0xc8] sm:$0xff]
        %v462 = vld [vmem:[%s429 + $0xd0] sm:$0xff]
        %v463 = vld [vmem:[%s429 + $0xd8] sm:$0xff]
        %v464 = vld [vmem:[%s429 + $0xe0] sm:$0xff]
        %v465 = vld [vmem:[%s429 + $0xe8] sm:$0xff]
        %v466 = vld [vmem:[%s429 + $0xf0] sm:$0xff]
        %v467 = vld [vmem:[%s429 + $0xf8] sm:$0xff]
        %v468 = vld [vmem:[%s1] sm:$0xff]
        %v469 = vld [vmem:[%s2] sm:$0x1]
        %v471 = vperm.slane %v469, 0
        %vm473 = vcmask 64512
        %v475 = vsel %vm473, %v436, 0
        %v478 = vsel %vm473, %v437, 0
        %v481 = vsel %vm473, %v438, 0
        %v484 = vsel %vm473, %v439, 0
        %v487 = vsel %vm473, %v440, 0
        %v490 = vsel %vm473, %v441, 0
        %v493 = vsel %vm473, %v442, 0
        %v496 = vsel %vm473, %v443, 0
        %v499 = vsel %vm473, %v444, 0
        %v502 = vsel %vm473, %v445, 0
        %v505 = vsel %vm473, %v446, 0
        %v508 = vsel %vm473, %v447, 0
        %v511 = vsel %vm473, %v448, 0
        %v514 = vsel %vm473, %v449, 0
        %v517 = vsel %vm473, %v450, 0
        %v520 = vsel %vm473, %v451, 0
        %v523 = vsel %vm473, %v452, 0
        %v526 = vsel %vm473, %v453, 0
        %v529 = vsel %vm473, %v454, 0
        %v532 = vsel %vm473, %v455, 0
        %v535 = vsel %vm473, %v456, 0
        %v538 = vsel %vm473, %v457, 0
        %v541 = vsel %vm473, %v458, 0
        %v544 = vsel %vm473, %v459, 0
        %v547 = vsel %vm473, %v460, 0
        %v550 = vsel %vm473, %v461, 0
        %v553 = vsel %vm473, %v462, 0
        %v556 = vsel %vm473, %v463, 0
        %v559 = vsel %vm473, %v464, 0
        %v562 = vsel %vm473, %v465, 0
        %v565 = vsel %vm473, %v466, 0
        %v568 = vsel %vm473, %v467, 0
        %570 = vmatpush.msra.mxu0 0.0
        %571 = vmatpush.msra.mxu0 0.0
        %572 = vmatpush.msra.mxu0 0.0
        %573 = vmatpush.msra.mxu0 0.0
        %574 = vmatpush.msra.mxu0 0.0
        %575 = vmatpush.msra.mxu0 0.0
        %576 = vmatpush.msra.mxu0 0.0
        %577 = vmatpush.msra.mxu0 0.0
        %578 = vmatpush.msra.mxu0 0.0
        %579 = vmatpush.msra.mxu0 0.0
        %580 = vmatpush.msra.mxu0 0.0
        %581 = vmatpush.msra.mxu0 0.0
        %582 = vmatpush.msra.mxu0 0.0
        %583 = vmatpush.msra.mxu0 0.0
        %584 = vmatpush.msra.mxu0 0.0
        %585 = vmatpush.msra.mxu0 %v468
        %586 = vmatmul.f32.gmra.mxu0 %v475
        %v587 = vpop.f32.mrf.mxu0
        %v588 = vadd.f32 %v471, %v587
        %589 = vmatmul.f32.gmra.mxu0 %v478
        %v590 = vpop.f32.mrf.mxu0
        %v591 = vadd.f32 %v471, %v590
        %592 = vmatmul.f32.gmra.mxu0 %v481
        %v593 = vpop.f32.mrf.mxu0
        %v594 = vadd.f32 %v471, %v593
        %595 = vmatmul.f32.gmra.mxu0 %v484
        %v596 = vpop.f32.mrf.mxu0
        %v597 = vadd.f32 %v471, %v596
        %598 = vmatmul.f32.gmra.mxu0 %v487
        %v599 = vpop.f32.mrf.mxu0
        %v600 = vadd.f32 %v471, %v599
        %601 = vmatmul.f32.gmra.mxu0 %v490
        %v602 = vpop.f32.mrf.mxu0
        %v603 = vadd.f32 %v471, %v602
        %604 = vmatmul.f32.gmra.mxu0 %v493
        %v605 = vpop.f32.mrf.mxu0
        %v606 = vadd.f32 %v471, %v605
        %607 = vmatmul.f32.gmra.mxu0 %v496
        %v608 = vpop.f32.mrf.mxu0
        %v609 = vadd.f32 %v471, %v608
        %610 = vmatmul.f32.gmra.mxu0 %v499
        %v611 = vpop.f32.mrf.mxu0
        %v612 = vadd.f32 %v471, %v611
        %613 = vmatmul.f32.gmra.mxu0 %v502
        %v614 = vpop.f32.mrf.mxu0
        %v615 = vadd.f32 %v471, %v614
        %616 = vmatmul.f32.gmra.mxu0 %v505
        %v617 = vpop.f32.mrf.mxu0
        %v618 = vadd.f32 %v471, %v617
        %619 = vmatmul.f32.gmra.mxu0 %v508
        %v620 = vpop.f32.mrf.mxu0
        %v621 = vadd.f32 %v471, %v620
        %622 = vmatmul.f32.gmra.mxu0 %v511
        %v623 = vpop.f32.mrf.mxu0
        %v624 = vadd.f32 %v471, %v623
        %625 = vmatmul.f32.gmra.mxu0 %v514
        %v626 = vpop.f32.mrf.mxu0
        %v627 = vadd.f32 %v471, %v626
        %628 = vmatmul.f32.gmra.mxu0 %v517
        %v629 = vpop.f32.mrf.mxu0
        %v630 = vadd.f32 %v471, %v629
        %631 = vmatmul.f32.gmra.mxu0 %v520
        %v632 = vpop.f32.mrf.mxu0
        %v633 = vadd.f32 %v471, %v632
        %634 = vmatmul.f32.gmra.mxu0 %v523
        %v635 = vpop.f32.mrf.mxu0
        %v636 = vadd.f32 %v471, %v635
        %637 = vmatmul.f32.gmra.mxu0 %v526
        %v638 = vpop.f32.mrf.mxu0
        %v639 = vadd.f32 %v471, %v638
        %640 = vmatmul.f32.gmra.mxu0 %v529
        %v641 = vpop.f32.mrf.mxu0
        %v642 = vadd.f32 %v471, %v641
        %643 = vmatmul.f32.gmra.mxu0 %v532
        %v644 = vpop.f32.mrf.mxu0
        %v645 = vadd.f32 %v471, %v644
        %646 = vmatmul.f32.gmra.mxu0 %v535
        %v647 = vpop.f32.mrf.mxu0
        %v648 = vadd.f32 %v471, %v647
        %649 = vmatmul.f32.gmra.mxu0 %v538
        %v650 = vpop.f32.mrf.mxu0
        %v651 = vadd.f32 %v471, %v650
        %652 = vmatmul.f32.gmra.mxu0 %v541
        %v653 = vpop.f32.mrf.mxu0
        %v654 = vadd.f32 %v471, %v653
        %655 = vmatmul.f32.gmra.mxu0 %v544
        %v656 = vpop.f32.mrf.mxu0
        %v657 = vadd.f32 %v471, %v656
        %658 = vmatmul.f32.gmra.mxu0 %v547
        %v659 = vpop.f32.mrf.mxu0
        %v660 = vadd.f32 %v471, %v659
        %661 = vmatmul.f32.gmra.mxu0 %v550
        %v662 = vpop.f32.mrf.mxu0
        %v663 = vadd.f32 %v471, %v662
        %664 = vmatmul.f32.gmra.mxu0 %v553
        %v665 = vpop.f32.mrf.mxu0
        %v666 = vadd.f32 %v471, %v665
        %667 = vmatmul.f32.gmra.mxu0 %v556
        %v668 = vpop.f32.mrf.mxu0
        %v669 = vadd.f32 %v471, %v668
        %670 = vmatmul.f32.gmra.mxu0 %v559
        %v671 = vpop.f32.mrf.mxu0
        %v672 = vadd.f32 %v471, %v671
        %673 = vmatmul.f32.gmra.mxu0 %v562
        %v674 = vpop.f32.mrf.mxu0
        %v675 = vadd.f32 %v471, %v674
        %676 = vmatmul.f32.gmra.mxu0 %v565
        %v677 = vpop.f32.mrf.mxu0
        %v678 = vadd.f32 %v471, %v677
        %679 = vmatmul.f32.gmra.mxu0 %v568
        %v680 = vpop.f32.mrf.mxu0
        %v681 = vadd.f32 %v471, %v680
        %682 = vdwg.mxu0
        %v683 = vmul.f32 %v588, 0.1
        %v684 = vmul.f32 %v591, 0.1
        %v685 = vmul.f32 %v594, 0.1
        %v686 = vmul.f32 %v597, 0.1
        %v687 = vmul.f32 %v600, 0.1
        %v688 = vmul.f32 %v603, 0.1
        %v689 = vmul.f32 %v606, 0.1
        %v690 = vmul.f32 %v609, 0.1
        %v691 = vmul.f32 %v612, 0.1
        %v692 = vmul.f32 %v615, 0.1
        %v693 = vmul.f32 %v618, 0.1
        %v694 = vmul.f32 %v621, 0.1
        %v695 = vmul.f32 %v624, 0.1
        %v696 = vmul.f32 %v627, 0.1
        %v697 = vmul.f32 %v630, 0.1
        %v698 = vmul.f32 %v633, 0.1
        %v699 = vmul.f32 %v636, 0.1
        %v700 = vmul.f32 %v639, 0.1
        %v701 = vmul.f32 %v642, 0.1
        %v702 = vmul.f32 %v645, 0.1
        %v703 = vmul.f32 %v648, 0.1
        %v704 = vmul.f32 %v651, 0.1
        %v705 = vmul.f32 %v654, 0.1
        %v706 = vmul.f32 %v657, 0.1
        %v707 = vmul.f32 %v660, 0.1
        %v708 = vmul.f32 %v663, 0.1
        %v709 = vmul.f32 %v666, 0.1
        %v710 = vmul.f32 %v669, 0.1
        %v711 = vmul.f32 %v672, 0.1
        %v712 = vmul.f32 %v675, 0.1
        %v713 = vmul.f32 %v678, 0.1
        %v714 = vmul.f32 %v681, 0.1
        %v715 = vmax.f32 %v588, %v683
        %v716 = vmax.f32 %v591, %v684
        %v717 = vmax.f32 %v594, %v685
        %v718 = vmax.f32 %v597, %v686
        %v719 = vmax.f32 %v600, %v687
        %v720 = vmax.f32 %v603, %v688
        %v721 = vmax.f32 %v606, %v689
        %v722 = vmax.f32 %v609, %v690
        %v723 = vmax.f32 %v612, %v691
        %v724 = vmax.f32 %v615, %v692
        %v725 = vmax.f32 %v618, %v693
        %v726 = vmax.f32 %v621, %v694
        %v727 = vmax.f32 %v624, %v695
        %v728 = vmax.f32 %v627, %v696
        %v729 = vmax.f32 %v630, %v697
        %v730 = vmax.f32 %v633, %v698
        %v731 = vmax.f32 %v636, %v699
        %v732 = vmax.f32 %v639, %v700
        %v733 = vmax.f32 %v642, %v701
        %v734 = vmax.f32 %v645, %v702
        %v735 = vmax.f32 %v648, %v703
        %v736 = vmax.f32 %v651, %v704
        %v737 = vmax.f32 %v654, %v705
        %v738 = vmax.f32 %v657, %v706
        %v739 = vmax.f32 %v660, %v707
        %v740 = vmax.f32 %v663, %v708
        %v741 = vmax.f32 %v666, %v709
        %v742 = vmax.f32 %v669, %v710
        %v743 = vmax.f32 %v672, %v711
        %v744 = vmax.f32 %v675, %v712
        %v745 = vmax.f32 %v678, %v713
        %v746 = vmax.f32 %v681, %v714
        %vm747 = vcmask 15360
        %v748 = vsel %vm747, %v715, 0.0
        %749 = vadd.xlane.f32.xlu0 %v748
        %v750 = vpop.xlane.xlu0 %749
        %v751 = vsel %vm747, %v716, 0.0
        %752 = vadd.xlane.f32.xlu0 %v751
        %v753 = vpop.xlane.xlu0 %752
        %v754 = vsel %vm747, %v717, 0.0
        %755 = vadd.xlane.f32.xlu0 %v754
        %v756 = vpop.xlane.xlu0 %755
        %v757 = vsel %vm747, %v718, 0.0
        %758 = vadd.xlane.f32.xlu0 %v757
        %v759 = vpop.xlane.xlu0 %758
        %v760 = vsel %vm747, %v719, 0.0
        %761 = vadd.xlane.f32.xlu0 %v760
        %v762 = vpop.xlane.xlu0 %761
        %v763 = vsel %vm747, %v720, 0.0
        %764 = vadd.xlane.f32.xlu0 %v763
        %v765 = vpop.xlane.xlu0 %764
        %v766 = vsel %vm747, %v721, 0.0
        %767 = vadd.xlane.f32.xlu0 %v766
        %v768 = vpop.xlane.xlu0 %767
        %v769 = vsel %vm747, %v722, 0.0
        %770 = vadd.xlane.f32.xlu0 %v769
        %v771 = vpop.xlane.xlu0 %770
        %v772 = vsel %vm747, %v723, 0.0
        %773 = vadd.xlane.f32.xlu0 %v772
        %v774 = vpop.xlane.xlu0 %773
        %v775 = vsel %vm747, %v724, 0.0
        %776 = vadd.xlane.f32.xlu0 %v775
        %v777 = vpop.xlane.xlu0 %776
        %v778 = vsel %vm747, %v725, 0.0
        %779 = vadd.xlane.f32.xlu0 %v778
        %v780 = vpop.xlane.xlu0 %779
        %v781 = vsel %vm747, %v726, 0.0
        %782 = vadd.xlane.f32.xlu0 %v781
        %v783 = vpop.xlane.xlu0 %782
        %v784 = vsel %vm747, %v727, 0.0
        %785 = vadd.xlane.f32.xlu0 %v784
        %v786 = vpop.xlane.xlu0 %785
        %v787 = vsel %vm747, %v728, 0.0
        %788 = vadd.xlane.f32.xlu0 %v787
        %v789 = vpop.xlane.xlu0 %788
        %v790 = vsel %vm747, %v729, 0.0
        %791 = vadd.xlane.f32.xlu0 %v790
        %v792 = vpop.xlane.xlu0 %791
        %v793 = vsel %vm747, %v730, 0.0
        %794 = vadd.xlane.f32.xlu0 %v793
        %v795 = vpop.xlane.xlu0 %794
        %v796 = vsel %vm747, %v731, 0.0
        %797 = vadd.xlane.f32.xlu0 %v796
        %v798 = vpop.xlane.xlu0 %797
        %v799 = vsel %vm747, %v732, 0.0
        %800 = vadd.xlane.f32.xlu0 %v799
        %v801 = vpop.xlane.xlu0 %800
        %v802 = vsel %vm747, %v733, 0.0
        %803 = vadd.xlane.f32.xlu0 %v802
        %v804 = vpop.xlane.xlu0 %803
        %v805 = vsel %vm747, %v734, 0.0
        %806 = vadd.xlane.f32.xlu0 %v805
        %v807 = vpop.xlane.xlu0 %806
        %v808 = vsel %vm747, %v735, 0.0
        %809 = vadd.xlane.f32.xlu0 %v808
        %v810 = vpop.xlane.xlu0 %809
        %v811 = vsel %vm747, %v736, 0.0
        %812 = vadd.xlane.f32.xlu0 %v811
        %v813 = vpop.xlane.xlu0 %812
        %v814 = vsel %vm747, %v737, 0.0
        %815 = vadd.xlane.f32.xlu0 %v814
        %v816 = vpop.xlane.xlu0 %815
        %v817 = vsel %vm747, %v738, 0.0
        %818 = vadd.xlane.f32.xlu0 %v817
        %v819 = vpop.xlane.xlu0 %818
        %v820 = vsel %vm747, %v739, 0.0
        %821 = vadd.xlane.f32.xlu0 %v820
        %v822 = vpop.xlane.xlu0 %821
        %v823 = vsel %vm747, %v740, 0.0
        %824 = vadd.xlane.f32.xlu0 %v823
        %v825 = vpop.xlane.xlu0 %824
        %v826 = vsel %vm747, %v741, 0.0
        %827 = vadd.xlane.f32.xlu0 %v826
        %v828 = vpop.xlane.xlu0 %827
        %v829 = vsel %vm747, %v742, 0.0
        %830 = vadd.xlane.f32.xlu0 %v829
        %v831 = vpop.xlane.xlu0 %830
        %v832 = vsel %vm747, %v743, 0.0
        %833 = vadd.xlane.f32.xlu0 %v832
        %v834 = vpop.xlane.xlu0 %833
        %v835 = vsel %vm747, %v744, 0.0
        %836 = vadd.xlane.f32.xlu0 %v835
        %v837 = vpop.xlane.xlu0 %836
        %v838 = vsel %vm747, %v745, 0.0
        %839 = vadd.xlane.f32.xlu0 %v838
        %v840 = vpop.xlane.xlu0 %839
        %v841 = vsel %vm747, %v746, 0.0
        %842 = vadd.xlane.f32.xlu0 %v841
        %v843 = vpop.xlane.xlu0 %842
        %v844 = vrcp.pop 2.0
        %v845 = vmul.f32 2.0, %v844
        %v846 = vsub.f32 1.0, %v845
        %v847 = vmul.f32 %v844, %v846
        %v848 = vadd.f32 %v844, %v847
        %vm849 = vweird.f32 %v844
        %v850 = vsel %vm849, %v844, %v848
        %v851 = vmul.f32 %v750, %v850
        %v852 = vmul.f32 %v753, %v850
        %v853 = vmul.f32 %v756, %v850
        %v854 = vmul.f32 %v759, %v850
        %v855 = vmul.f32 %v762, %v850
        %v856 = vmul.f32 %v765, %v850
        %v857 = vmul.f32 %v768, %v850
        %v858 = vmul.f32 %v771, %v850
        %v859 = vmul.f32 %v774, %v850
        %v860 = vmul.f32 %v777, %v850
        %v861 = vmul.f32 %v780, %v850
        %v862 = vmul.f32 %v783, %v850
        %v863 = vmul.f32 %v786, %v850
        %v864 = vmul.f32 %v789, %v850
        %v865 = vmul.f32 %v792, %v850
        %v866 = vmul.f32 %v795, %v850
        %v867 = vmul.f32 %v798, %v850
        %v868 = vmul.f32 %v801, %v850
        %v869 = vmul.f32 %v804, %v850
        %v870 = vmul.f32 %v807, %v850
        %v871 = vmul.f32 %v810, %v850
        %v872 = vmul.f32 %v813, %v850
        %v873 = vmul.f32 %v816, %v850
        %v874 = vmul.f32 %v819, %v850
        %v875 = vmul.f32 %v822, %v850
        %v876 = vmul.f32 %v825, %v850
        %v877 = vmul.f32 %v828, %v850
        %v878 = vmul.f32 %v831, %v850
        %v879 = vmul.f32 %v834, %v850
        %v880 = vmul.f32 %v837, %v850
        %v881 = vmul.f32 %v840, %v850
        %v882 = vmul.f32 %v843, %v850
        %915 = vrot.lane.b32.xlu0 %v588, 126
        %v916 = vpop.permute.xlu0 %915
        %917 = vrot.lane.b32.xlu0 %v591, 126
        %v918 = vpop.permute.xlu0 %917
        %919 = vrot.lane.b32.xlu0 %v594, 126
        %v920 = vpop.permute.xlu0 %919
        %921 = vrot.lane.b32.xlu0 %v597, 126
        %v922 = vpop.permute.xlu0 %921
        %923 = vrot.lane.b32.xlu0 %v600, 126
        %v924 = vpop.permute.xlu0 %923
        %925 = vrot.lane.b32.xlu0 %v603, 126
        %v926 = vpop.permute.xlu0 %925
        %927 = vrot.lane.b32.xlu0 %v606, 126
        %v928 = vpop.permute.xlu0 %927
        %929 = vrot.lane.b32.xlu0 %v609, 126
        %v930 = vpop.permute.xlu0 %929
        %931 = vrot.lane.b32.xlu0 %v612, 126
        %v932 = vpop.permute.xlu0 %931
        %933 = vrot.lane.b32.xlu0 %v615, 126
        %v934 = vpop.permute.xlu0 %933
        %935 = vrot.lane.b32.xlu0 %v618, 126
        %v936 = vpop.permute.xlu0 %935
        %937 = vrot.lane.b32.xlu0 %v621, 126
        %v938 = vpop.permute.xlu0 %937
        %939 = vrot.lane.b32.xlu0 %v624, 126
        %v940 = vpop.permute.xlu0 %939
        %941 = vrot.lane.b32.xlu0 %v627, 126
        %v942 = vpop.permute.xlu0 %941
        %943 = vrot.lane.b32.xlu0 %v630, 126
        %v944 = vpop.permute.xlu0 %943
        %945 = vrot.lane.b32.xlu0 %v633, 126
        %v946 = vpop.permute.xlu0 %945
        %947 = vrot.lane.b32.xlu0 %v636, 126
        %v948 = vpop.permute.xlu0 %947
        %949 = vrot.lane.b32.xlu0 %v639, 126
        %v950 = vpop.permute.xlu0 %949
        %951 = vrot.lane.b32.xlu0 %v642, 126
        %v952 = vpop.permute.xlu0 %951
        %953 = vrot.lane.b32.xlu0 %v645, 126
        %v954 = vpop.permute.xlu0 %953
        %955 = vrot.lane.b32.xlu0 %v648, 126
        %v956 = vpop.permute.xlu0 %955
        %957 = vrot.lane.b32.xlu0 %v651, 126
        %v958 = vpop.permute.xlu0 %957
        %959 = vrot.lane.b32.xlu0 %v654, 126
        %v960 = vpop.permute.xlu0 %959
        %961 = vrot.lane.b32.xlu0 %v657, 126
        %v962 = vpop.permute.xlu0 %961
        %963 = vrot.lane.b32.xlu0 %v660, 126
        %v964 = vpop.permute.xlu0 %963
        %965 = vrot.lane.b32.xlu0 %v663, 126
        %v966 = vpop.permute.xlu0 %965
        %967 = vrot.lane.b32.xlu0 %v666, 126
        %v968 = vpop.permute.xlu0 %967
        %969 = vrot.lane.b32.xlu0 %v669, 126
        %v970 = vpop.permute.xlu0 %969
        %971 = vrot.lane.b32.xlu0 %v672, 126
        %v972 = vpop.permute.xlu0 %971
        %973 = vrot.lane.b32.xlu0 %v675, 126
        %v974 = vpop.permute.xlu0 %973
        %975 = vrot.lane.b32.xlu0 %v678, 126
        %v976 = vpop.permute.xlu0 %975
        %977 = vrot.lane.b32.xlu0 %v681, 126
        %v978 = vpop.permute.xlu0 %977
        %v1011 = vsel %vm747, %v916, 0.0
        %1012 = vadd.xlane.f32.xlu0 %v1011
        %v1013 = vpop.xlane.xlu0 %1012
        %v1014 = vsel %vm747, %v918, 0.0
        %1015 = vadd.xlane.f32.xlu0 %v1014
        %v1016 = vpop.xlane.xlu0 %1015
        %v1017 = vsel %vm747, %v920, 0.0
        %1018 = vadd.xlane.f32.xlu0 %v1017
        %v1019 = vpop.xlane.xlu0 %1018
        %v1020 = vsel %vm747, %v922, 0.0
        %1021 = vadd.xlane.f32.xlu0 %v1020
        %v1022 = vpop.xlane.xlu0 %1021
        %v1023 = vsel %vm747, %v924, 0.0
        %1024 = vadd.xlane.f32.xlu0 %v1023
        %v1025 = vpop.xlane.xlu0 %1024
        %v1026 = vsel %vm747, %v926, 0.0
        %1027 = vadd.xlane.f32.xlu0 %v1026
        %v1028 = vpop.xlane.xlu0 %1027
        %v1029 = vsel %vm747, %v928, 0.0
        %1030 = vadd.xlane.f32.xlu0 %v1029
        %v1031 = vpop.xlane.xlu0 %1030
        %v1032 = vsel %vm747, %v930, 0.0
        %1033 = vadd.xlane.f32.xlu0 %v1032
        %v1034 = vpop.xlane.xlu0 %1033
        %v1035 = vsel %vm747, %v932, 0.0
        %1036 = vadd.xlane.f32.xlu0 %v1035
        %v1037 = vpop.xlane.xlu0 %1036
        %v1038 = vsel %vm747, %v934, 0.0
        %1039 = vadd.xlane.f32.xlu0 %v1038
        %v1040 = vpop.xlane.xlu0 %1039
        %v1041 = vsel %vm747, %v936, 0.0
        %1042 = vadd.xlane.f32.xlu0 %v1041
        %v1043 = vpop.xlane.xlu0 %1042
        %v1044 = vsel %vm747, %v938, 0.0
        %1045 = vadd.xlane.f32.xlu0 %v1044
        %v1046 = vpop.xlane.xlu0 %1045
        %v1047 = vsel %vm747, %v940, 0.0
        %1048 = vadd.xlane.f32.xlu0 %v1047
        %v1049 = vpop.xlane.xlu0 %1048
        %v1050 = vsel %vm747, %v942, 0.0
        %1051 = vadd.xlane.f32.xlu0 %v1050
        %v1052 = vpop.xlane.xlu0 %1051
        %v1053 = vsel %vm747, %v944, 0.0
        %1054 = vadd.xlane.f32.xlu0 %v1053
        %v1055 = vpop.xlane.xlu0 %1054
        %v1056 = vsel %vm747, %v946, 0.0
        %1057 = vadd.xlane.f32.xlu0 %v1056
        %v1058 = vpop.xlane.xlu0 %1057
        %v1059 = vsel %vm747, %v948, 0.0
        %1060 = vadd.xlane.f32.xlu0 %v1059
        %v1061 = vpop.xlane.xlu0 %1060
        %v1062 = vsel %vm747, %v950, 0.0
        %1063 = vadd.xlane.f32.xlu0 %v1062
        %v1064 = vpop.xlane.xlu0 %1063
        %v1065 = vsel %vm747, %v952, 0.0
        %1066 = vadd.xlane.f32.xlu0 %v1065
        %v1067 = vpop.xlane.xlu0 %1066
        %v1068 = vsel %vm747, %v954, 0.0
        %1069 = vadd.xlane.f32.xlu0 %v1068
        %v1070 = vpop.xlane.xlu0 %1069
        %v1071 = vsel %vm747, %v956, 0.0
        %1072 = vadd.xlane.f32.xlu0 %v1071
        %v1073 = vpop.xlane.xlu0 %1072
        %v1074 = vsel %vm747, %v958, 0.0
        %1075 = vadd.xlane.f32.xlu0 %v1074
        %v1076 = vpop.xlane.xlu0 %1075
        %v1077 = vsel %vm747, %v960, 0.0
        %1078 = vadd.xlane.f32.xlu0 %v1077
        %v1079 = vpop.xlane.xlu0 %1078
        %v1080 = vsel %vm747, %v962, 0.0
        %1081 = vadd.xlane.f32.xlu0 %v1080
        %v1082 = vpop.xlane.xlu0 %1081
        %v1083 = vsel %vm747, %v964, 0.0
        %1084 = vadd.xlane.f32.xlu0 %v1083
        %v1085 = vpop.xlane.xlu0 %1084
        %v1086 = vsel %vm747, %v966, 0.0
        %1087 = vadd.xlane.f32.xlu0 %v1086
        %v1088 = vpop.xlane.xlu0 %1087
        %v1089 = vsel %vm747, %v968, 0.0
        %1090 = vadd.xlane.f32.xlu0 %v1089
        %v1091 = vpop.xlane.xlu0 %1090
        %v1092 = vsel %vm747, %v970, 0.0
        %1093 = vadd.xlane.f32.xlu0 %v1092
        %v1094 = vpop.xlane.xlu0 %1093
        %v1095 = vsel %vm747, %v972, 0.0
        %1096 = vadd.xlane.f32.xlu0 %v1095
        %v1097 = vpop.xlane.xlu0 %1096
        %v1098 = vsel %vm747, %v974, 0.0
        %1099 = vadd.xlane.f32.xlu0 %v1098
        %v1100 = vpop.xlane.xlu0 %1099
        %v1101 = vsel %vm747, %v976, 0.0
        %1102 = vadd.xlane.f32.xlu0 %v1101
        %v1103 = vpop.xlane.xlu0 %1102
        %v1104 = vsel %vm747, %v978, 0.0
        %1105 = vadd.xlane.f32.xlu0 %v1104
        %v1106 = vpop.xlane.xlu0 %1105
        %v1107 = vmul.f32 %v1013, %v850
        %v1108 = vmul.f32 %v1016, %v850
        %v1109 = vmul.f32 %v1019, %v850
        %v1110 = vmul.f32 %v1022, %v850
        %v1111 = vmul.f32 %v1025, %v850
        %v1112 = vmul.f32 %v1028, %v850
        %v1113 = vmul.f32 %v1031, %v850
        %v1114 = vmul.f32 %v1034, %v850
        %v1115 = vmul.f32 %v1037, %v850
        %v1116 = vmul.f32 %v1040, %v850
        %v1117 = vmul.f32 %v1043, %v850
        %v1118 = vmul.f32 %v1046, %v850
        %v1119 = vmul.f32 %v1049, %v850
        %v1120 = vmul.f32 %v1052, %v850
        %v1121 = vmul.f32 %v1055, %v850
        %v1122 = vmul.f32 %v1058, %v850
        %v1123 = vmul.f32 %v1061, %v850
        %v1124 = vmul.f32 %v1064, %v850
        %v1125 = vmul.f32 %v1067, %v850
        %v1126 = vmul.f32 %v1070, %v850
        %v1127 = vmul.f32 %v1073, %v850
        %v1128 = vmul.f32 %v1076, %v850
        %v1129 = vmul.f32 %v1079, %v850
        %v1130 = vmul.f32 %v1082, %v850
        %v1131 = vmul.f32 %v1085, %v850
        %v1132 = vmul.f32 %v1088, %v850
        %v1133 = vmul.f32 %v1091, %v850
        %v1134 = vmul.f32 %v1094, %v850
        %v1135 = vmul.f32 %v1097, %v850
        %v1136 = vmul.f32 %v1100, %v850
        %v1137 = vmul.f32 %v1103, %v850
        %v1138 = vmul.f32 %v1106, %v850
        %v1139 = vsub.f32 %v588, %v1107
        %v1140 = vsub.f32 %v591, %v1108
        %v1141 = vsub.f32 %v594, %v1109
        %v1142 = vsub.f32 %v597, %v1110
        %v1143 = vsub.f32 %v600, %v1111
        %v1144 = vsub.f32 %v603, %v1112
        %v1145 = vsub.f32 %v606, %v1113
        %v1146 = vsub.f32 %v609, %v1114
        %v1147 = vsub.f32 %v612, %v1115
        %v1148 = vsub.f32 %v615, %v1116
        %v1149 = vsub.f32 %v618, %v1117
        %v1150 = vsub.f32 %v621, %v1118
        %v1151 = vsub.f32 %v624, %v1119
        %v1152 = vsub.f32 %v627, %v1120
        %v1153 = vsub.f32 %v630, %v1121
        %v1154 = vsub.f32 %v633, %v1122
        %v1155 = vsub.f32 %v636, %v1123
        %v1156 = vsub.f32 %v639, %v1124
        %v1157 = vsub.f32 %v642, %v1125
        %v1158 = vsub.f32 %v645, %v1126
        %v1159 = vsub.f32 %v648, %v1127
        %v1160 = vsub.f32 %v651, %v1128
        %v1161 = vsub.f32 %v654, %v1129
        %v1162 = vsub.f32 %v657, %v1130
        %v1163 = vsub.f32 %v660, %v1131
        %v1164 = vsub.f32 %v663, %v1132
        %v1165 = vsub.f32 %v666, %v1133
        %v1166 = vsub.f32 %v669, %v1134
        %v1167 = vsub.f32 %v672, %v1135
        %v1168 = vsub.f32 %v675, %v1136
        %v1169 = vsub.f32 %v678, %v1137
        %v1170 = vsub.f32 %v681, %v1138
        %v1171 = vmul.f32 %v1139, %v1139
        %v1172 = vmul.f32 %v1140, %v1140
        %v1173 = vmul.f32 %v1141, %v1141
        %v1174 = vmul.f32 %v1142, %v1142
        %v1175 = vmul.f32 %v1143, %v1143
        %v1176 = vmul.f32 %v1144, %v1144
        %v1177 = vmul.f32 %v1145, %v1145
        %v1178 = vmul.f32 %v1146, %v1146
        %v1179 = vmul.f32 %v1147, %v1147
        %v1180 = vmul.f32 %v1148, %v1148
        %v1181 = vmul.f32 %v1149, %v1149
        %v1182 = vmul.f32 %v1150, %v1150
        %v1183 = vmul.f32 %v1151, %v1151
        %v1184 = vmul.f32 %v1152, %v1152
        %v1185 = vmul.f32 %v1153, %v1153
        %v1186 = vmul.f32 %v1154, %v1154
        %v1187 = vmul.f32 %v1155, %v1155
        %v1188 = vmul.f32 %v1156, %v1156
        %v1189 = vmul.f32 %v1157, %v1157
        %v1190 = vmul.f32 %v1158, %v1158
        %v1191 = vmul.f32 %v1159, %v1159
        %v1192 = vmul.f32 %v1160, %v1160
        %v1193 = vmul.f32 %v1161, %v1161
        %v1194 = vmul.f32 %v1162, %v1162
        %v1195 = vmul.f32 %v1163, %v1163
        %v1196 = vmul.f32 %v1164, %v1164
        %v1197 = vmul.f32 %v1165, %v1165
        %v1198 = vmul.f32 %v1166, %v1166
        %v1199 = vmul.f32 %v1167, %v1167
        %v1200 = vmul.f32 %v1168, %v1168
        %v1201 = vmul.f32 %v1169, %v1169
        %v1202 = vmul.f32 %v1170, %v1170
        %1235 = vrot.lane.b32.xlu0 %v1171, 126
        %v1236 = vpop.permute.xlu0 %1235
        %1237 = vrot.lane.b32.xlu0 %v1172, 126
        %v1238 = vpop.permute.xlu0 %1237
        %1239 = vrot.lane.b32.xlu0 %v1173, 126
        %v1240 = vpop.permute.xlu0 %1239
        %1241 = vrot.lane.b32.xlu0 %v1174, 126
        %v1242 = vpop.permute.xlu0 %1241
        %1243 = vrot.lane.b32.xlu0 %v1175, 126
        %v1244 = vpop.permute.xlu0 %1243
        %1245 = vrot.lane.b32.xlu0 %v1176, 126
        %v1246 = vpop.permute.xlu0 %1245
        %1247 = vrot.lane.b32.xlu0 %v1177, 126
        %v1248 = vpop.permute.xlu0 %1247
        %1249 = vrot.lane.b32.xlu0 %v1178, 126
        %v1250 = vpop.permute.xlu0 %1249
        %1251 = vrot.lane.b32.xlu0 %v1179, 126
        %v1252 = vpop.permute.xlu0 %1251
        %1253 = vrot.lane.b32.xlu0 %v1180, 126
        %v1254 = vpop.permute.xlu0 %1253
        %1255 = vrot.lane.b32.xlu0 %v1181, 126
        %v1256 = vpop.permute.xlu0 %1255
        %1257 = vrot.lane.b32.xlu0 %v1182, 126
        %v1258 = vpop.permute.xlu0 %1257
        %1259 = vrot.lane.b32.xlu0 %v1183, 126
        %v1260 = vpop.permute.xlu0 %1259
        %1261 = vrot.lane.b32.xlu0 %v1184, 126
        %v1262 = vpop.permute.xlu0 %1261
        %1263 = vrot.lane.b32.xlu0 %v1185, 126
        %v1264 = vpop.permute.xlu0 %1263
        %1265 = vrot.lane.b32.xlu0 %v1186, 126
        %v1266 = vpop.permute.xlu0 %1265
        %1267 = vrot.lane.b32.xlu0 %v1187, 126
        %v1268 = vpop.permute.xlu0 %1267
        %1269 = vrot.lane.b32.xlu0 %v1188, 126
        %v1270 = vpop.permute.xlu0 %1269
        %1271 = vrot.lane.b32.xlu0 %v1189, 126
        %v1272 = vpop.permute.xlu0 %1271
        %1273 = vrot.lane.b32.xlu0 %v1190, 126
        %v1274 = vpop.permute.xlu0 %1273
        %1275 = vrot.lane.b32.xlu0 %v1191, 126
        %v1276 = vpop.permute.xlu0 %1275
        %1277 = vrot.lane.b32.xlu0 %v1192, 126
        %v1278 = vpop.permute.xlu0 %1277
        %1279 = vrot.lane.b32.xlu0 %v1193, 126
        %v1280 = vpop.permute.xlu0 %1279
        %1281 = vrot.lane.b32.xlu0 %v1194, 126
        %v1282 = vpop.permute.xlu0 %1281
        %1283 = vrot.lane.b32.xlu0 %v1195, 126
        %v1284 = vpop.permute.xlu0 %1283
        %1285 = vrot.lane.b32.xlu0 %v1196, 126
        %v1286 = vpop.permute.xlu0 %1285
        %1287 = vrot.lane.b32.xlu0 %v1197, 126
        %v1288 = vpop.permute.xlu0 %1287
        %1289 = vrot.lane.b32.xlu0 %v1198, 126
        %v1290 = vpop.permute.xlu0 %1289
        %1291 = vrot.lane.b32.xlu0 %v1199, 126
        %v1292 = vpop.permute.xlu0 %1291
        %1293 = vrot.lane.b32.xlu0 %v1200, 126
        %v1294 = vpop.permute.xlu0 %1293
        %1295 = vrot.lane.b32.xlu0 %v1201, 126
        %v1296 = vpop.permute.xlu0 %1295
        %1297 = vrot.lane.b32.xlu0 %v1202, 126
        %v1298 = vpop.permute.xlu0 %1297
        %v1331 = vsel %vm747, %v1236, 0.0
        %1332 = vadd.xlane.f32.xlu0 %v1331
        %v1333 = vpop.xlane.xlu0 %1332
        %v1334 = vsel %vm747, %v1238, 0.0
        %1335 = vadd.xlane.f32.xlu0 %v1334
        %v1336 = vpop.xlane.xlu0 %1335
        %v1337 = vsel %vm747, %v1240, 0.0
        %1338 = vadd.xlane.f32.xlu0 %v1337
        %v1339 = vpop.xlane.xlu0 %1338
        %v1340 = vsel %vm747, %v1242, 0.0
        %1341 = vadd.xlane.f32.xlu0 %v1340
        %v1342 = vpop.xlane.xlu0 %1341
        %v1343 = vsel %vm747, %v1244, 0.0
        %1344 = vadd.xlane.f32.xlu0 %v1343
        %v1345 = vpop.xlane.xlu0 %1344
        %v1346 = vsel %vm747, %v1246, 0.0
        %1347 = vadd.xlane.f32.xlu0 %v1346
        %v1348 = vpop.xlane.xlu0 %1347
        %v1349 = vsel %vm747, %v1248, 0.0
        %1350 = vadd.xlane.f32.xlu0 %v1349
        %v1351 = vpop.xlane.xlu0 %1350
        %v1352 = vsel %vm747, %v1250, 0.0
        %1353 = vadd.xlane.f32.xlu0 %v1352
        %v1354 = vpop.xlane.xlu0 %1353
        %v1355 = vsel %vm747, %v1252, 0.0
        %1356 = vadd.xlane.f32.xlu0 %v1355
        %v1357 = vpop.xlane.xlu0 %1356
        %v1358 = vsel %vm747, %v1254, 0.0
        %1359 = vadd.xlane.f32.xlu0 %v1358
        %v1360 = vpop.xlane.xlu0 %1359
        %v1361 = vsel %vm747, %v1256, 0.0
        %1362 = vadd.xlane.f32.xlu0 %v1361
        %v1363 = vpop.xlane.xlu0 %1362
        %v1364 = vsel %vm747, %v1258, 0.0
        %1365 = vadd.xlane.f32.xlu0 %v1364
        %v1366 = vpop.xlane.xlu0 %1365
        %v1367 = vsel %vm747, %v1260, 0.0
        %1368 = vadd.xlane.f32.xlu0 %v1367
        %v1369 = vpop.xlane.xlu0 %1368
        %v1370 = vsel %vm747, %v1262, 0.0
        %1371 = vadd.xlane.f32.xlu0 %v1370
        %v1372 = vpop.xlane.xlu0 %1371
        %v1373 = vsel %vm747, %v1264, 0.0
        %1374 = vadd.xlane.f32.xlu0 %v1373
        %v1375 = vpop.xlane.xlu0 %1374
        %v1376 = vsel %vm747, %v1266, 0.0
        %1377 = vadd.xlane.f32.xlu0 %v1376
        %v1378 = vpop.xlane.xlu0 %1377
        %v1379 = vsel %vm747, %v1268, 0.0
        %1380 = vadd.xlane.f32.xlu0 %v1379
        %v1381 = vpop.xlane.xlu0 %1380
        %v1382 = vsel %vm747, %v1270, 0.0
        %1383 = vadd.xlane.f32.xlu0 %v1382
        %v1384 = vpop.xlane.xlu0 %1383
        %v1385 = vsel %vm747, %v1272, 0.0
        %1386 = vadd.xlane.f32.xlu0 %v1385
        %v1387 = vpop.xlane.xlu0 %1386
        %v1388 = vsel %vm747, %v1274, 0.0
        %1389 = vadd.xlane.f32.xlu0 %v1388
        %v1390 = vpop.xlane.xlu0 %1389
        %v1391 = vsel %vm747, %v1276, 0.0
        %1392 = vadd.xlane.f32.xlu0 %v1391
        %v1393 = vpop.xlane.xlu0 %1392
        %v1394 = vsel %vm747, %v1278, 0.0
        %1395 = vadd.xlane.f32.xlu0 %v1394
        %v1396 = vpop.xlane.xlu0 %1395
        %v1397 = vsel %vm747, %v1280, 0.0
        %1398 = vadd.xlane.f32.xlu0 %v1397
        %v1399 = vpop.xlane.xlu0 %1398
        %v1400 = vsel %vm747, %v1282, 0.0
        %1401 = vadd.xlane.f32.xlu0 %v1400
        %v1402 = vpop.xlane.xlu0 %1401
        %v1403 = vsel %vm747, %v1284, 0.0
        %1404 = vadd.xlane.f32.xlu0 %v1403
        %v1405 = vpop.xlane.xlu0 %1404
        %v1406 = vsel %vm747, %v1286, 0.0
        %1407 = vadd.xlane.f32.xlu0 %v1406
        %v1408 = vpop.xlane.xlu0 %1407
        %v1409 = vsel %vm747, %v1288, 0.0
        %1410 = vadd.xlane.f32.xlu0 %v1409
        %v1411 = vpop.xlane.xlu0 %1410
        %v1412 = vsel %vm747, %v1290, 0.0
        %1413 = vadd.xlane.f32.xlu0 %v1412
        %v1414 = vpop.xlane.xlu0 %1413
        %v1415 = vsel %vm747, %v1292, 0.0
        %1416 = vadd.xlane.f32.xlu0 %v1415
        %v1417 = vpop.xlane.xlu0 %1416
        %v1418 = vsel %vm747, %v1294, 0.0
        %1419 = vadd.xlane.f32.xlu0 %v1418
        %v1420 = vpop.xlane.xlu0 %1419
        %v1421 = vsel %vm747, %v1296, 0.0
        %1422 = vadd.xlane.f32.xlu0 %v1421
        %v1423 = vpop.xlane.xlu0 %1422
        %v1424 = vsel %vm747, %v1298, 0.0
        %1425 = vadd.xlane.f32.xlu0 %v1424
        %v1426 = vpop.xlane.xlu0 %1425
        %v1427 = vmul.f32 %v1333, %v850
        %v1428 = vmul.f32 %v1336, %v850
        %v1429 = vmul.f32 %v1339, %v850
        %v1430 = vmul.f32 %v1342, %v850
        %v1431 = vmul.f32 %v1345, %v850
        %v1432 = vmul.f32 %v1348, %v850
        %v1433 = vmul.f32 %v1351, %v850
        %v1434 = vmul.f32 %v1354, %v850
        %v1435 = vmul.f32 %v1357, %v850
        %v1436 = vmul.f32 %v1360, %v850
        %v1437 = vmul.f32 %v1363, %v850
        %v1438 = vmul.f32 %v1366, %v850
        %v1439 = vmul.f32 %v1369, %v850
        %v1440 = vmul.f32 %v1372, %v850
        %v1441 = vmul.f32 %v1375, %v850
        %v1442 = vmul.f32 %v1378, %v850
        %v1443 = vmul.f32 %v1381, %v850
        %v1444 = vmul.f32 %v1384, %v850
        %v1445 = vmul.f32 %v1387, %v850
        %v1446 = vmul.f32 %v1390, %v850
        %v1447 = vmul.f32 %v1393, %v850
        %v1448 = vmul.f32 %v1396, %v850
        %v1449 = vmul.f32 %v1399, %v850
        %v1450 = vmul.f32 %v1402, %v850
        %v1451 = vmul.f32 %v1405, %v850
        %v1452 = vmul.f32 %v1408, %v850
        %v1453 = vmul.f32 %v1411, %v850
        %v1454 = vmul.f32 %v1414, %v850
        %v1455 = vmul.f32 %v1417, %v850
        %v1456 = vmul.f32 %v1420, %v850
        %v1457 = vmul.f32 %v1423, %v850
        %v1458 = vmul.f32 %v1426, %v850
        %v1459 = vld [vmem:[%s3] sm:$0x1]
        %v1460 = vadd.f32 %v1427, 1e-06
        %v1461 = vadd.f32 %v1428, 1e-06
        %v1462 = vadd.f32 %v1429, 1e-06
        %v1463 = vadd.f32 %v1430, 1e-06
        %v1464 = vadd.f32 %v1431, 1e-06
        %v1465 = vadd.f32 %v1432, 1e-06
        %v1466 = vadd.f32 %v1433, 1e-06
        %v1467 = vadd.f32 %v1434, 1e-06
        %v1468 = vadd.f32 %v1435, 1e-06
        %v1469 = vadd.f32 %v1436, 1e-06
        %v1470 = vadd.f32 %v1437, 1e-06
        %v1471 = vadd.f32 %v1438, 1e-06
        %v1472 = vadd.f32 %v1439, 1e-06
        %v1473 = vadd.f32 %v1440, 1e-06
        %v1474 = vadd.f32 %v1441, 1e-06
        %v1475 = vadd.f32 %v1442, 1e-06
        %v1476 = vadd.f32 %v1443, 1e-06
        %v1477 = vadd.f32 %v1444, 1e-06
        %v1478 = vadd.f32 %v1445, 1e-06
        %v1479 = vadd.f32 %v1446, 1e-06
        %v1480 = vadd.f32 %v1447, 1e-06
        %v1481 = vadd.f32 %v1448, 1e-06
        %v1482 = vadd.f32 %v1449, 1e-06
        %v1483 = vadd.f32 %v1450, 1e-06
        %v1484 = vadd.f32 %v1451, 1e-06
        %v1485 = vadd.f32 %v1452, 1e-06
        %v1486 = vadd.f32 %v1453, 1e-06
        %v1487 = vadd.f32 %v1454, 1e-06
        %v1488 = vadd.f32 %v1455, 1e-06
        %v1489 = vadd.f32 %v1456, 1e-06
        %v1490 = vadd.f32 %v1457, 1e-06
        %v1491 = vadd.f32 %v1458, 1e-06
        %v1492 = vrsqrt.pop %v1460
        %v1493 = vmul.f32 %v1492, %v1460
        %v1494 = vmul.f32 %v1493, %v1492
        %v1495 = vmul.f32 0.5, %v1494
        %v1496 = vsub.f32 1.5, %v1495
        %v1497 = vmul.f32 %v1492, %v1496
        %vm1498 = vweird.f32 %v1460
        %vm1499 = vweird.f32 %v1492
        %vm1500 = vmor %vm1498, %vm1499
        %v1501 = vsel %vm1500, %v1492, %v1497
        %v1502 = vrsqrt.pop %v1461
        %v1503 = vmul.f32 %v1502, %v1461
        %v1504 = vmul.f32 %v1503, %v1502
        %v1505 = vmul.f32 0.5, %v1504
        %v1506 = vsub.f32 1.5, %v1505
        %v1507 = vmul.f32 %v1502, %v1506
        %vm1508 = vweird.f32 %v1461
        %vm1509 = vweird.f32 %v1502
        %vm1510 = vmor %vm1508, %vm1509
        %v1511 = vsel %vm1510, %v1502, %v1507
        %v1512 = vrsqrt.pop %v1462
        %v1513 = vmul.f32 %v1512, %v1462
        %v1514 = vmul.f32 %v1513, %v1512
        %v1515 = vmul.f32 0.5, %v1514
        %v1516 = vsub.f32 1.5, %v1515
        %v1517 = vmul.f32 %v1512, %v1516
        %vm1518 = vweird.f32 %v1462
        %vm1519 = vweird.f32 %v1512
        %vm1520 = vmor %vm1518, %vm1519
        %v1521 = vsel %vm1520, %v1512, %v1517
        %v1522 = vrsqrt.pop %v1463
        %v1523 = vmul.f32 %v1522, %v1463
        %v1524 = vmul.f32 %v1523, %v1522
        %v1525 = vmul.f32 0.5, %v1524
        %v1526 = vsub.f32 1.5, %v1525
        %v1527 = vmul.f32 %v1522, %v1526
        %vm1528 = vweird.f32 %v1463
        %vm1529 = vweird.f32 %v1522
        %vm1530 = vmor %vm1528, %vm1529
        %v1531 = vsel %vm1530, %v1522, %v1527
        %v1532 = vrsqrt.pop %v1464
        %v1533 = vmul.f32 %v1532, %v1464
        %v1534 = vmul.f32 %v1533, %v1532
        %v1535 = vmul.f32 0.5, %v1534
        %v1536 = vsub.f32 1.5, %v1535
        %v1537 = vmul.f32 %v1532, %v1536
        %vm1538 = vweird.f32 %v1464
        %vm1539 = vweird.f32 %v1532
        %vm1540 = vmor %vm1538, %vm1539
        %v1541 = vsel %vm1540, %v1532, %v1537
        %v1542 = vrsqrt.pop %v1465
        %v1543 = vmul.f32 %v1542, %v1465
        %v1544 = vmul.f32 %v1543, %v1542
        %v1545 = vmul.f32 0.5, %v1544
        %v1546 = vsub.f32 1.5, %v1545
        %v1547 = vmul.f32 %v1542, %v1546
        %vm1548 = vweird.f32 %v1465
        %vm1549 = vweird.f32 %v1542
        %vm1550 = vmor %vm1548, %vm1549
        %v1551 = vsel %vm1550, %v1542, %v1547
        %v1552 = vrsqrt.pop %v1466
        %v1553 = vmul.f32 %v1552, %v1466
        %v1554 = vmul.f32 %v1553, %v1552
        %v1555 = vmul.f32 0.5, %v1554
        %v1556 = vsub.f32 1.5, %v1555
        %v1557 = vmul.f32 %v1552, %v1556
        %vm1558 = vweird.f32 %v1466
        %vm1559 = vweird.f32 %v1552
        %vm1560 = vmor %vm1558, %vm1559
        %v1561 = vsel %vm1560, %v1552, %v1557
        %v1562 = vrsqrt.pop %v1467
        %v1563 = vmul.f32 %v1562, %v1467
        %v1564 = vmul.f32 %v1563, %v1562
        %v1565 = vmul.f32 0.5, %v1564
        %v1566 = vsub.f32 1.5, %v1565
        %v1567 = vmul.f32 %v1562, %v1566
        %vm1568 = vweird.f32 %v1467
        %vm1569 = vweird.f32 %v1562
        %vm1570 = vmor %vm1568, %vm1569
        %v1571 = vsel %vm1570, %v1562, %v1567
        %v1572 = vrsqrt.pop %v1468
        %v1573 = vmul.f32 %v1572, %v1468
        %v1574 = vmul.f32 %v1573, %v1572
        %v1575 = vmul.f32 0.5, %v1574
        %v1576 = vsub.f32 1.5, %v1575
        %v1577 = vmul.f32 %v1572, %v1576
        %vm1578 = vweird.f32 %v1468
        %vm1579 = vweird.f32 %v1572
        %vm1580 = vmor %vm1578, %vm1579
        %v1581 = vsel %vm1580, %v1572, %v1577
        %v1582 = vrsqrt.pop %v1469
        %v1583 = vmul.f32 %v1582, %v1469
        %v1584 = vmul.f32 %v1583, %v1582
        %v1585 = vmul.f32 0.5, %v1584
        %v1586 = vsub.f32 1.5, %v1585
        %v1587 = vmul.f32 %v1582, %v1586
        %vm1588 = vweird.f32 %v1469
        %vm1589 = vweird.f32 %v1582
        %vm1590 = vmor %vm1588, %vm1589
        %v1591 = vsel %vm1590, %v1582, %v1587
        %v1592 = vrsqrt.pop %v1470
        %v1593 = vmul.f32 %v1592, %v1470
        %v1594 = vmul.f32 %v1593, %v1592
        %v1595 = vmul.f32 0.5, %v1594
        %v1596 = vsub.f32 1.5, %v1595
        %v1597 = vmul.f32 %v1592, %v1596
        %vm1598 = vweird.f32 %v1470
        %vm1599 = vweird.f32 %v1592
        %vm1600 = vmor %vm1598, %vm1599
        %v1601 = vsel %vm1600, %v1592, %v1597
        %v1602 = vrsqrt.pop %v1471
        %v1603 = vmul.f32 %v1602, %v1471
        %v1604 = vmul.f32 %v1603, %v1602
        %v1605 = vmul.f32 0.5, %v1604
        %v1606 = vsub.f32 1.5, %v1605
        %v1607 = vmul.f32 %v1602, %v1606
        %vm1608 = vweird.f32 %v1471
        %vm1609 = vweird.f32 %v1602
        %vm1610 = vmor %vm1608, %vm1609
        %v1611 = vsel %vm1610, %v1602, %v1607
        %v1612 = vrsqrt.pop %v1472
        %v1613 = vmul.f32 %v1612, %v1472
        %v1614 = vmul.f32 %v1613, %v1612
        %v1615 = vmul.f32 0.5, %v1614
        %v1616 = vsub.f32 1.5, %v1615
        %v1617 = vmul.f32 %v1612, %v1616
        %vm1618 = vweird.f32 %v1472
        %vm1619 = vweird.f32 %v1612
        %vm1620 = vmor %vm1618, %vm1619
        %v1621 = vsel %vm1620, %v1612, %v1617
        %v1622 = vrsqrt.pop %v1473
        %v1623 = vmul.f32 %v1622, %v1473
        %v1624 = vmul.f32 %v1623, %v1622
        %v1625 = vmul.f32 0.5, %v1624
        %v1626 = vsub.f32 1.5, %v1625
        %v1627 = vmul.f32 %v1622, %v1626
        %vm1628 = vweird.f32 %v1473
        %vm1629 = vweird.f32 %v1622
        %vm1630 = vmor %vm1628, %vm1629
        %v1631 = vsel %vm1630, %v1622, %v1627
        %v1632 = vrsqrt.pop %v1474
        %v1633 = vmul.f32 %v1632, %v1474
        %v1634 = vmul.f32 %v1633, %v1632
        %v1635 = vmul.f32 0.5, %v1634
        %v1636 = vsub.f32 1.5, %v1635
        %v1637 = vmul.f32 %v1632, %v1636
        %vm1638 = vweird.f32 %v1474
        %vm1639 = vweird.f32 %v1632
        %vm1640 = vmor %vm1638, %vm1639
        %v1641 = vsel %vm1640, %v1632, %v1637
        %v1642 = vrsqrt.pop %v1475
        %v1643 = vmul.f32 %v1642, %v1475
        %v1644 = vmul.f32 %v1643, %v1642
        %v1645 = vmul.f32 0.5, %v1644
        %v1646 = vsub.f32 1.5, %v1645
        %v1647 = vmul.f32 %v1642, %v1646
        %vm1648 = vweird.f32 %v1475
        %vm1649 = vweird.f32 %v1642
        %vm1650 = vmor %vm1648, %vm1649
        %v1651 = vsel %vm1650, %v1642, %v1647
        %v1652 = vrsqrt.pop %v1476
        %v1653 = vmul.f32 %v1652, %v1476
        %v1654 = vmul.f32 %v1653, %v1652
        %v1655 = vmul.f32 0.5, %v1654
        %v1656 = vsub.f32 1.5, %v1655
        %v1657 = vmul.f32 %v1652, %v1656
        %vm1658 = vweird.f32 %v1476
        %vm1659 = vweird.f32 %v1652
        %vm1660 = vmor %vm1658, %vm1659
        %v1661 = vsel %vm1660, %v1652, %v1657
        %v1662 = vrsqrt.pop %v1477
        %v1663 = vmul.f32 %v1662, %v1477
        %v1664 = vmul.f32 %v1663, %v1662
        %v1665 = vmul.f32 0.5, %v1664
        %v1666 = vsub.f32 1.5, %v1665
        %v1667 = vmul.f32 %v1662, %v1666
        %vm1668 = vweird.f32 %v1477
        %vm1669 = vweird.f32 %v1662
        %vm1670 = vmor %vm1668, %vm1669
        %v1671 = vsel %vm1670, %v1662, %v1667
        %v1672 = vrsqrt.pop %v1478
        %v1673 = vmul.f32 %v1672, %v1478
        %v1674 = vmul.f32 %v1673, %v1672
        %v1675 = vmul.f32 0.5, %v1674
        %v1676 = vsub.f32 1.5, %v1675
        %v1677 = vmul.f32 %v1672, %v1676
        %vm1678 = vweird.f32 %v1478
        %vm1679 = vweird.f32 %v1672
        %vm1680 = vmor %vm1678, %vm1679
        %v1681 = vsel %vm1680, %v1672, %v1677
        %v1682 = vrsqrt.pop %v1479
        %v1683 = vmul.f32 %v1682, %v1479
        %v1684 = vmul.f32 %v1683, %v1682
        %v1685 = vmul.f32 0.5, %v1684
        %v1686 = vsub.f32 1.5, %v1685
        %v1687 = vmul.f32 %v1682, %v1686
        %vm1688 = vweird.f32 %v1479
        %vm1689 = vweird.f32 %v1682
        %vm1690 = vmor %vm1688, %vm1689
        %v1691 = vsel %vm1690, %v1682, %v1687
        %v1692 = vrsqrt.pop %v1480
        %v1693 = vmul.f32 %v1692, %v1480
        %v1694 = vmul.f32 %v1693, %v1692
        %v1695 = vmul.f32 0.5, %v1694
        %v1696 = vsub.f32 1.5, %v1695
        %v1697 = vmul.f32 %v1692, %v1696
        %vm1698 = vweird.f32 %v1480
        %vm1699 = vweird.f32 %v1692
        %vm1700 = vmor %vm1698, %vm1699
        %v1701 = vsel %vm1700, %v1692, %v1697
        %v1702 = vrsqrt.pop %v1481
        %v1703 = vmul.f32 %v1702, %v1481
        %v1704 = vmul.f32 %v1703, %v1702
        %v1705 = vmul.f32 0.5, %v1704
        %v1706 = vsub.f32 1.5, %v1705
        %v1707 = vmul.f32 %v1702, %v1706
        %vm1708 = vweird.f32 %v1481
        %vm1709 = vweird.f32 %v1702
        %vm1710 = vmor %vm1708, %vm1709
        %v1711 = vsel %vm1710, %v1702, %v1707
        %v1712 = vrsqrt.pop %v1482
        %v1713 = vmul.f32 %v1712, %v1482
        %v1714 = vmul.f32 %v1713, %v1712
        %v1715 = vmul.f32 0.5, %v1714
        %v1716 = vsub.f32 1.5, %v1715
        %v1717 = vmul.f32 %v1712, %v1716
        %vm1718 = vweird.f32 %v1482
        %vm1719 = vweird.f32 %v1712
        %vm1720 = vmor %vm1718, %vm1719
        %v1721 = vsel %vm1720, %v1712, %v1717
        %v1722 = vrsqrt.pop %v1483
        %v1723 = vmul.f32 %v1722, %v1483
        %v1724 = vmul.f32 %v1723, %v1722
        %v1725 = vmul.f32 0.5, %v1724
        %v1726 = vsub.f32 1.5, %v1725
        %v1727 = vmul.f32 %v1722, %v1726
        %vm1728 = vweird.f32 %v1483
        %vm1729 = vweird.f32 %v1722
        %vm1730 = vmor %vm1728, %vm1729
        %v1731 = vsel %vm1730, %v1722, %v1727
        %v1732 = vrsqrt.pop %v1484
        %v1733 = vmul.f32 %v1732, %v1484
        %v1734 = vmul.f32 %v1733, %v1732
        %v1735 = vmul.f32 0.5, %v1734
        %v1736 = vsub.f32 1.5, %v1735
        %v1737 = vmul.f32 %v1732, %v1736
        %vm1738 = vweird.f32 %v1484
        %vm1739 = vweird.f32 %v1732
        %vm1740 = vmor %vm1738, %vm1739
        %v1741 = vsel %vm1740, %v1732, %v1737
        %v1742 = vrsqrt.pop %v1485
        %v1743 = vmul.f32 %v1742, %v1485
        %v1744 = vmul.f32 %v1743, %v1742
        %v1745 = vmul.f32 0.5, %v1744
        %v1746 = vsub.f32 1.5, %v1745
        %v1747 = vmul.f32 %v1742, %v1746
        %vm1748 = vweird.f32 %v1485
        %vm1749 = vweird.f32 %v1742
        %vm1750 = vmor %vm1748, %vm1749
        %v1751 = vsel %vm1750, %v1742, %v1747
        %v1752 = vrsqrt.pop %v1486
        %v1753 = vmul.f32 %v1752, %v1486
        %v1754 = vmul.f32 %v1753, %v1752
        %v1755 = vmul.f32 0.5, %v1754
        %v1756 = vsub.f32 1.5, %v1755
        %v1757 = vmul.f32 %v1752, %v1756
        %vm1758 = vweird.f32 %v1486
        %vm1759 = vweird.f32 %v1752
        %vm1760 = vmor %vm1758, %vm1759
        %v1761 = vsel %vm1760, %v1752, %v1757
        %v1762 = vrsqrt.pop %v1487
        %v1763 = vmul.f32 %v1762, %v1487
        %v1764 = vmul.f32 %v1763, %v1762
        %v1765 = vmul.f32 0.5, %v1764
        %v1766 = vsub.f32 1.5, %v1765
        %v1767 = vmul.f32 %v1762, %v1766
        %vm1768 = vweird.f32 %v1487
        %vm1769 = vweird.f32 %v1762
        %vm1770 = vmor %vm1768, %vm1769
        %v1771 = vsel %vm1770, %v1762, %v1767
        %v1772 = vrsqrt.pop %v1488
        %v1773 = vmul.f32 %v1772, %v1488
        %v1774 = vmul.f32 %v1773, %v1772
        %v1775 = vmul.f32 0.5, %v1774
        %v1776 = vsub.f32 1.5, %v1775
        %v1777 = vmul.f32 %v1772, %v1776
        %vm1778 = vweird.f32 %v1488
        %vm1779 = vweird.f32 %v1772
        %vm1780 = vmor %vm1778, %vm1779
        %v1781 = vsel %vm1780, %v1772, %v1777
        %v1782 = vrsqrt.pop %v1489
        %v1783 = vmul.f32 %v1782, %v1489
        %v1784 = vmul.f32 %v1783, %v1782
        %v1785 = vmul.f32 0.5, %v1784
        %v1786 = vsub.f32 1.5, %v1785
        %v1787 = vmul.f32 %v1782, %v1786
        %vm1788 = vweird.f32 %v1489
        %vm1789 = vweird.f32 %v1782
        %vm1790 = vmor %vm1788, %vm1789
        %v1791 = vsel %vm1790, %v1782, %v1787
        %v1792 = vrsqrt.pop %v1490
        %v1793 = vmul.f32 %v1792, %v1490
        %v1794 = vmul.f32 %v1793, %v1792
        %v1795 = vmul.f32 0.5, %v1794
        %v1796 = vsub.f32 1.5, %v1795
        %v1797 = vmul.f32 %v1792, %v1796
        %vm1798 = vweird.f32 %v1490
        %vm1799 = vweird.f32 %v1792
        %vm1800 = vmor %vm1798, %vm1799
        %v1801 = vsel %vm1800, %v1792, %v1797
        %v1802 = vrsqrt.pop %v1491
        %v1803 = vmul.f32 %v1802, %v1491
        %v1804 = vmul.f32 %v1803, %v1802
        %v1805 = vmul.f32 0.5, %v1804
        %v1806 = vsub.f32 1.5, %v1805
        %v1807 = vmul.f32 %v1802, %v1806
        %vm1808 = vweird.f32 %v1491
        %vm1809 = vweird.f32 %v1802
        %vm1810 = vmor %vm1808, %vm1809
        %v1811 = vsel %vm1810, %v1802, %v1807
        %v1812 = vmul.f32 %v1139, %v1501
        %v1813 = vmul.f32 %v1140, %v1511
        %v1814 = vmul.f32 %v1141, %v1521
        %v1815 = vmul.f32 %v1142, %v1531
        %v1816 = vmul.f32 %v1143, %v1541
        %v1817 = vmul.f32 %v1144, %v1551
        %v1818 = vmul.f32 %v1145, %v1561
        %v1819 = vmul.f32 %v1146, %v1571
        %v1820 = vmul.f32 %v1147, %v1581
        %v1821 = vmul.f32 %v1148, %v1591
        %v1822 = vmul.f32 %v1149, %v1601
        %v1823 = vmul.f32 %v1150, %v1611
        %v1824 = vmul.f32 %v1151, %v1621
        %v1825 = vmul.f32 %v1152, %v1631
        %v1826 = vmul.f32 %v1153, %v1641
        %v1827 = vmul.f32 %v1154, %v1651
        %v1828 = vmul.f32 %v1155, %v1661
        %v1829 = vmul.f32 %v1156, %v1671
        %v1830 = vmul.f32 %v1157, %v1681
        %v1831 = vmul.f32 %v1158, %v1691
        %v1832 = vmul.f32 %v1159, %v1701
        %v1833 = vmul.f32 %v1160, %v1711
        %v1834 = vmul.f32 %v1161, %v1721
        %v1835 = vmul.f32 %v1162, %v1731
        %v1836 = vmul.f32 %v1163, %v1741
        %v1837 = vmul.f32 %v1164, %v1751
        %v1838 = vmul.f32 %v1165, %v1761
        %v1839 = vmul.f32 %v1166, %v1771
        %v1840 = vmul.f32 %v1167, %v1781
        %v1841 = vmul.f32 %v1168, %v1791
        %v1842 = vmul.f32 %v1169, %v1801
        %v1843 = vmul.f32 %v1170, %v1811
        %v1845 = vperm.slane %v1459, 0
        %1879 = vrot.lane.b32.xlu0 %v1812, 126
        %v1880 = vpop.permute.xlu0 %1879
        %1881 = vrot.lane.b32.xlu0 %v1813, 126
        %v1882 = vpop.permute.xlu0 %1881
        %1883 = vrot.lane.b32.xlu0 %v1814, 126
        %v1884 = vpop.permute.xlu0 %1883
        %1885 = vrot.lane.b32.xlu0 %v1815, 126
        %v1886 = vpop.permute.xlu0 %1885
        %1887 = vrot.lane.b32.xlu0 %v1816, 126
        %v1888 = vpop.permute.xlu0 %1887
        %1889 = vrot.lane.b32.xlu0 %v1817, 126
        %v1890 = vpop.permute.xlu0 %1889
        %1891 = vrot.lane.b32.xlu0 %v1818, 126
        %v1892 = vpop.permute.xlu0 %1891
        %1893 = vrot.lane.b32.xlu0 %v1819, 126
        %v1894 = vpop.permute.xlu0 %1893
        %1895 = vrot.lane.b32.xlu0 %v1820, 126
        %v1896 = vpop.permute.xlu0 %1895
        %1897 = vrot.lane.b32.xlu0 %v1821, 126
        %v1898 = vpop.permute.xlu0 %1897
        %1899 = vrot.lane.b32.xlu0 %v1822, 126
        %v1900 = vpop.permute.xlu0 %1899
        %1901 = vrot.lane.b32.xlu0 %v1823, 126
        %v1902 = vpop.permute.xlu0 %1901
        %1903 = vrot.lane.b32.xlu0 %v1824, 126
        %v1904 = vpop.permute.xlu0 %1903
        %1905 = vrot.lane.b32.xlu0 %v1825, 126
        %v1906 = vpop.permute.xlu0 %1905
        %1907 = vrot.lane.b32.xlu0 %v1826, 126
        %v1908 = vpop.permute.xlu0 %1907
        %1909 = vrot.lane.b32.xlu0 %v1827, 126
        %v1910 = vpop.permute.xlu0 %1909
        %1911 = vrot.lane.b32.xlu0 %v1828, 126
        %v1912 = vpop.permute.xlu0 %1911
        %1913 = vrot.lane.b32.xlu0 %v1829, 126
        %v1914 = vpop.permute.xlu0 %1913
        %1915 = vrot.lane.b32.xlu0 %v1830, 126
        %v1916 = vpop.permute.xlu0 %1915
        %1917 = vrot.lane.b32.xlu0 %v1831, 126
        %v1918 = vpop.permute.xlu0 %1917
        %1919 = vrot.lane.b32.xlu0 %v1832, 126
        %v1920 = vpop.permute.xlu0 %1919
        %1921 = vrot.lane.b32.xlu0 %v1833, 126
        %v1922 = vpop.permute.xlu0 %1921
        %1923 = vrot.lane.b32.xlu0 %v1834, 126
        %v1924 = vpop.permute.xlu0 %1923
        %1925 = vrot.lane.b32.xlu0 %v1835, 126
        %v1926 = vpop.permute.xlu0 %1925
        %1927 = vrot.lane.b32.xlu0 %v1836, 126
        %v1928 = vpop.permute.xlu0 %1927
        %1929 = vrot.lane.b32.xlu0 %v1837, 126
        %v1930 = vpop.permute.xlu0 %1929
        %1931 = vrot.lane.b32.xlu0 %v1838, 126
        %v1932 = vpop.permute.xlu0 %1931
        %1933 = vrot.lane.b32.xlu0 %v1839, 126
        %v1934 = vpop.permute.xlu0 %1933
        %1935 = vrot.lane.b32.xlu0 %v1840, 126
        %v1936 = vpop.permute.xlu0 %1935
        %1937 = vrot.lane.b32.xlu0 %v1841, 126
        %v1938 = vpop.permute.xlu0 %1937
        %1939 = vrot.lane.b32.xlu0 %v1842, 126
        %v1940 = vpop.permute.xlu0 %1939
        %1941 = vrot.lane.b32.xlu0 %v1843, 126
        %v1942 = vpop.permute.xlu0 %1941
        %v1975 = vmul.f32 %v1845, %v1880
        %v1976 = vmul.f32 %v1845, %v1882
        %v1977 = vmul.f32 %v1845, %v1884
        %v1978 = vmul.f32 %v1845, %v1886
        %v1979 = vmul.f32 %v1845, %v1888
        %v1980 = vmul.f32 %v1845, %v1890
        %v1981 = vmul.f32 %v1845, %v1892
        %v1982 = vmul.f32 %v1845, %v1894
        %v1983 = vmul.f32 %v1845, %v1896
        %v1984 = vmul.f32 %v1845, %v1898
        %v1985 = vmul.f32 %v1845, %v1900
        %v1986 = vmul.f32 %v1845, %v1902
        %v1987 = vmul.f32 %v1845, %v1904
        %v1988 = vmul.f32 %v1845, %v1906
        %v1989 = vmul.f32 %v1845, %v1908
        %v1990 = vmul.f32 %v1845, %v1910
        %v1991 = vmul.f32 %v1845, %v1912
        %v1992 = vmul.f32 %v1845, %v1914
        %v1993 = vmul.f32 %v1845, %v1916
        %v1994 = vmul.f32 %v1845, %v1918
        %v1995 = vmul.f32 %v1845, %v1920
        %v1996 = vmul.f32 %v1845, %v1922
        %v1997 = vmul.f32 %v1845, %v1924
        %v1998 = vmul.f32 %v1845, %v1926
        %v1999 = vmul.f32 %v1845, %v1928
        %v2000 = vmul.f32 %v1845, %v1930
        %v2001 = vmul.f32 %v1845, %v1932
        %v2002 = vmul.f32 %v1845, %v1934
        %v2003 = vmul.f32 %v1845, %v1936
        %v2004 = vmul.f32 %v1845, %v1938
        %v2005 = vmul.f32 %v1845, %v1940
        %v2006 = vmul.f32 %v1845, %v1942
        %v2007 = vld [vmem:[%s4] sm:$0x1]
        %v2009 = vperm.slane %v2007, 0
        %v2011 = vadd.f32 %v1975, %v2009
        %v2012 = vadd.f32 %v1976, %v2009
        %v2013 = vadd.f32 %v1977, %v2009
        %v2014 = vadd.f32 %v1978, %v2009
        %v2015 = vadd.f32 %v1979, %v2009
        %v2016 = vadd.f32 %v1980, %v2009
        %v2017 = vadd.f32 %v1981, %v2009
        %v2018 = vadd.f32 %v1982, %v2009
        %v2019 = vadd.f32 %v1983, %v2009
        %v2020 = vadd.f32 %v1984, %v2009
        %v2021 = vadd.f32 %v1985, %v2009
        %v2022 = vadd.f32 %v1986, %v2009
        %v2023 = vadd.f32 %v1987, %v2009
        %v2024 = vadd.f32 %v1988, %v2009
        %v2025 = vadd.f32 %v1989, %v2009
        %v2026 = vadd.f32 %v1990, %v2009
        %v2027 = vadd.f32 %v1991, %v2009
        %v2028 = vadd.f32 %v1992, %v2009
        %v2029 = vadd.f32 %v1993, %v2009
        %v2030 = vadd.f32 %v1994, %v2009
        %v2031 = vadd.f32 %v1995, %v2009
        %v2032 = vadd.f32 %v1996, %v2009
        %v2033 = vadd.f32 %v1997, %v2009
        %v2034 = vadd.f32 %v1998, %v2009
        %v2035 = vadd.f32 %v1999, %v2009
        %v2036 = vadd.f32 %v2000, %v2009
        %v2037 = vadd.f32 %v2001, %v2009
        %v2038 = vadd.f32 %v2002, %v2009
        %v2039 = vadd.f32 %v2003, %v2009
        %v2040 = vadd.f32 %v2004, %v2009
        %v2041 = vadd.f32 %v2005, %v2009
        %v2042 = vadd.f32 %v2006, %v2009
        %v2043 = vmul.f32 %v2011, 0.1
        %v2044 = vmul.f32 %v2012, 0.1
        %v2045 = vmul.f32 %v2013, 0.1
        %v2046 = vmul.f32 %v2014, 0.1
        %v2047 = vmul.f32 %v2015, 0.1
        %v2048 = vmul.f32 %v2016, 0.1
        %v2049 = vmul.f32 %v2017, 0.1
        %v2050 = vmul.f32 %v2018, 0.1
        %v2051 = vmul.f32 %v2019, 0.1
        %v2052 = vmul.f32 %v2020, 0.1
        %v2053 = vmul.f32 %v2021, 0.1
        %v2054 = vmul.f32 %v2022, 0.1
        %v2055 = vmul.f32 %v2023, 0.1
        %v2056 = vmul.f32 %v2024, 0.1
        %v2057 = vmul.f32 %v2025, 0.1
        %v2058 = vmul.f32 %v2026, 0.1
        %v2059 = vmul.f32 %v2027, 0.1
        %v2060 = vmul.f32 %v2028, 0.1
        %v2061 = vmul.f32 %v2029, 0.1
        %v2062 = vmul.f32 %v2030, 0.1
        %v2063 = vmul.f32 %v2031, 0.1
        %v2064 = vmul.f32 %v2032, 0.1
        %v2065 = vmul.f32 %v2033, 0.1
        %v2066 = vmul.f32 %v2034, 0.1
        %v2067 = vmul.f32 %v2035, 0.1
        %v2068 = vmul.f32 %v2036, 0.1
        %v2069 = vmul.f32 %v2037, 0.1
        %v2070 = vmul.f32 %v2038, 0.1
        %v2071 = vmul.f32 %v2039, 0.1
        %v2072 = vmul.f32 %v2040, 0.1
        %v2073 = vmul.f32 %v2041, 0.1
        %v2074 = vmul.f32 %v2042, 0.1
        %v2075 = vmax.f32 %v2011, %v2043
        %v2076 = vmax.f32 %v2012, %v2044
        %v2077 = vmax.f32 %v2013, %v2045
        %v2078 = vmax.f32 %v2014, %v2046
        %v2079 = vmax.f32 %v2015, %v2047
        %v2080 = vmax.f32 %v2016, %v2048
        %v2081 = vmax.f32 %v2017, %v2049
        %v2082 = vmax.f32 %v2018, %v2050
        %v2083 = vmax.f32 %v2019, %v2051
        %v2084 = vmax.f32 %v2020, %v2052
        %v2085 = vmax.f32 %v2021, %v2053
        %v2086 = vmax.f32 %v2022, %v2054
        %v2087 = vmax.f32 %v2023, %v2055
        %v2088 = vmax.f32 %v2024, %v2056
        %v2089 = vmax.f32 %v2025, %v2057
        %v2090 = vmax.f32 %v2026, %v2058
        %v2091 = vmax.f32 %v2027, %v2059
        %v2092 = vmax.f32 %v2028, %v2060
        %v2093 = vmax.f32 %v2029, %v2061
        %v2094 = vmax.f32 %v2030, %v2062
        %v2095 = vmax.f32 %v2031, %v2063
        %v2096 = vmax.f32 %v2032, %v2064
        %v2097 = vmax.f32 %v2033, %v2065
        %v2098 = vmax.f32 %v2034, %v2066
        %v2099 = vmax.f32 %v2035, %v2067
        %v2100 = vmax.f32 %v2036, %v2068
        %v2101 = vmax.f32 %v2037, %v2069
        %v2102 = vmax.f32 %v2038, %v2070
        %v2103 = vmax.f32 %v2039, %v2071
        %v2104 = vmax.f32 %v2040, %v2072
        %v2105 = vmax.f32 %v2041, %v2073
        %v2106 = vmax.f32 %v2042, %v2074
        %v2107 = vsel %vm747, %v2075, 0.0
        %v2108 = vsel %vm747, %v2076, 0.0
        %v2109 = vadd.f32 %v2107, %v2108
        %v2110 = vsel %vm747, %v2077, 0.0
        %v2111 = vadd.f32 %v2109, %v2110
        %v2112 = vsel %vm747, %v2078, 0.0
        %v2113 = vadd.f32 %v2111, %v2112
        %v2114 = vsel %vm747, %v2079, 0.0
        %v2115 = vadd.f32 %v2113, %v2114
        %v2116 = vsel %vm747, %v2080, 0.0
        %v2117 = vadd.f32 %v2115, %v2116
        %v2118 = vsel %vm747, %v2081, 0.0
        %v2119 = vadd.f32 %v2117, %v2118
        %v2120 = vsel %vm747, %v2082, 0.0
        %v2121 = vadd.f32 %v2119, %v2120
        %v2122 = vsel %vm747, %v2083, 0.0
        %v2123 = vadd.f32 %v2121, %v2122
        %v2124 = vsel %vm747, %v2084, 0.0
        %v2125 = vadd.f32 %v2123, %v2124
        %v2126 = vsel %vm747, %v2085, 0.0
        %v2127 = vadd.f32 %v2125, %v2126
        %v2128 = vsel %vm747, %v2086, 0.0
        %v2129 = vadd.f32 %v2127, %v2128
        %v2130 = vsel %vm747, %v2087, 0.0
        %v2131 = vadd.f32 %v2129, %v2130
        %v2132 = vsel %vm747, %v2088, 0.0
        %v2133 = vadd.f32 %v2131, %v2132
        %v2134 = vsel %vm747, %v2089, 0.0
        %v2135 = vadd.f32 %v2133, %v2134
        %v2136 = vsel %vm747, %v2090, 0.0
        %v2137 = vadd.f32 %v2135, %v2136
        %v2138 = vsel %vm747, %v2091, 0.0
        %v2139 = vadd.f32 %v2137, %v2138
        %v2140 = vsel %vm747, %v2092, 0.0
        %v2141 = vadd.f32 %v2139, %v2140
        %v2142 = vsel %vm747, %v2093, 0.0
        %v2143 = vadd.f32 %v2141, %v2142
        %v2144 = vsel %vm747, %v2094, 0.0
        %v2145 = vadd.f32 %v2143, %v2144
        %v2146 = vsel %vm747, %v2095, 0.0
        %v2147 = vadd.f32 %v2145, %v2146
        %v2148 = vsel %vm747, %v2096, 0.0
        %v2149 = vadd.f32 %v2147, %v2148
        %v2150 = vsel %vm747, %v2097, 0.0
        %v2151 = vadd.f32 %v2149, %v2150
        %v2152 = vsel %vm747, %v2098, 0.0
        %v2153 = vadd.f32 %v2151, %v2152
        %v2154 = vsel %vm747, %v2099, 0.0
        %v2155 = vadd.f32 %v2153, %v2154
        %v2156 = vsel %vm747, %v2100, 0.0
        %v2157 = vadd.f32 %v2155, %v2156
        %v2158 = vsel %vm747, %v2101, 0.0
        %v2159 = vadd.f32 %v2157, %v2158
        %v2160 = vsel %vm747, %v2102, 0.0
        %v2161 = vadd.f32 %v2159, %v2160
        %v2162 = vsel %vm747, %v2103, 0.0
        %v2163 = vadd.f32 %v2161, %v2162
        %v2164 = vsel %vm747, %v2104, 0.0
        %v2165 = vadd.f32 %v2163, %v2164
        %v2166 = vsel %vm747, %v2105, 0.0
        %v2167 = vadd.f32 %v2165, %v2166
        %v2168 = vsel %vm747, %v2106, 0.0
        %v2169 = vadd.f32 %v2167, %v2168
        %v2170 = vrot.slane %v2169, 4
        %v2171 = vadd.f32 %v2169, %v2170
        %v2172 = vrot.slane %v2171, 2
        %v2173 = vadd.f32 %v2171, %v2172
        %v2174 = vrot.slane %v2173, 1
        %v2175 = vadd.f32 %v2173, %v2174
        %v2176 = vrcp.pop 256.0
        %v2177 = vmul.f32 256.0, %v2176
        %v2178 = vsub.f32 1.0, %v2177
        %v2179 = vmul.f32 %v2176, %v2178
        %v2180 = vadd.f32 %v2176, %v2179
        %vm2181 = vweird.f32 %v2176
        %v2182 = vsel %vm2181, %v2176, %v2180
        %v2183 = vmul.f32 %v2175, %v2182
        %v2184 = vpack.c.bf16 %v2183, %v2183
        %v2185 = vld [vmem:[%s7] sm:$0x1]
        %v2186 = vld [vmem:[%s8] sm:$0x1]
        %v2188 = vsel %vm747, %v2184, 0
        %vm2190 = vcmask 1040384
        %v2192 = vsel %vm2190, %v2185, 0
        %2194 = vmatpush.bf16.msra.mxu0 0
        %2195 = vmatpush.bf16.msra.mxu0 0
        %2196 = vmatpush.bf16.msra.mxu0 0
        %2197 = vmatpush.bf16.msra.mxu0 0
        %2198 = vmatpush.bf16.msra.mxu0 0
        %2199 = vmatpush.bf16.msra.mxu0 0
        %2200 = vmatpush.bf16.msra.mxu0 0
        %2201 = vmatpush.bf16.msra.mxu0 %v2192
        %2202 = vmatmul.bf16.gmra.mxu0 %v2188
        %v2203 = vpop.f32.mrf.mxu0
        %v2204 = vadd.f32 %v2186, %v2203
        %v2205 = vpop.f32.mrf.mxu0
        %2206 = vdwg.mxu0
        %v2207 = vxor.u32 %v2204, 2147483648
        %v2208 = vmul.f32 %v2207, 1.442695
        %v2209 = vpow.pop %v2208
        %v2210 = vadd.f32 %v2209, 1.0
        %v2211 = vrcp.pop %v2210
        %v2212 = vmul.f32 %v2210, %v2211
        %v2213 = vsub.f32 1.0, %v2212
        %v2214 = vmul.f32 %v2211, %v2213
        %v2215 = vadd.f32 %v2211, %v2214
        %vm2216 = vweird.f32 %v2210
        %vm2217 = vweird.f32 %v2211
        %vm2218 = vmor %vm2216, %vm2217
        %v2219 = vsel %vm2218, %v2211, %v2215
        %v2220 = vand.u32 2147483647, %v2210
        %vm2221 = vcmp.eq.f32.partialorder %v2220, 8.507059e+37
        %v2222 = vand.u32 %v2210, 2147483648
        %v2223 = vor.u32 1.1754944e-38, %v2222
        %v2224 = vsel %vm2221, %v2223, %v2219
        %v2225 = vmul.f32 1.0, %v2224
        %vm2226 = vcmask 57344
        %2227 = vst.msk [vmem:[%s417] sm:$0x1] %vm2226, %v2225
        %v2228 = vpack.c.bf16 %v2076, %v2075
        %v2229 = vpack.c.bf16 %v2078, %v2077
        %v2230 = vpack.c.bf16 %v2080, %v2079
        %v2231 = vpack.c.bf16 %v2082, %v2081
        %v2232 = vpack.c.bf16 %v2084, %v2083
        %v2233 = vpack.c.bf16 %v2086, %v2085
        %v2234 = vpack.c.bf16 %v2088, %v2087
        %v2235 = vpack.c.bf16 %v2090, %v2089
        %v2236 = vpack.c.bf16 %v2092, %v2091
        %v2237 = vpack.c.bf16 %v2094, %v2093
        %v2238 = vpack.c.bf16 %v2096, %v2095
        %v2239 = vpack.c.bf16 %v2098, %v2097
        %v2240 = vpack.c.bf16 %v2100, %v2099
        %v2241 = vpack.c.bf16 %v2102, %v2101
        %v2242 = vpack.c.bf16 %v2104, %v2103
        %v2243 = vpack.c.bf16 %v2106, %v2105
        %v2244 = vld [vmem:[%s5] sm:$0x1]
        %v2246 = vsel %vm747, %v2228, 0
        %v2249 = vsel %vm747, %v2229, 0
        %v2252 = vsel %vm747, %v2230, 0
        %v2255 = vsel %vm747, %v2231, 0
        %v2258 = vsel %vm747, %v2232, 0
        %v2261 = vsel %vm747, %v2233, 0
        %v2264 = vsel %vm747, %v2234, 0
        %v2267 = vsel %vm747, %v2235, 0
        %v2270 = vsel %vm747, %v2236, 0
        %v2273 = vsel %vm747, %v2237, 0
        %v2276 = vsel %vm747, %v2238, 0
        %v2279 = vsel %vm747, %v2239, 0
        %v2282 = vsel %vm747, %v2240, 0
        %v2285 = vsel %vm747, %v2241, 0
        %v2288 = vsel %vm747, %v2242, 0
        %v2291 = vsel %vm747, %v2243, 0
        %v2294 = vsel %vm2190, %v2244, 0
        %2296 = vmatpush.bf16.msra.mxu0 0
        %2297 = vmatpush.bf16.msra.mxu0 0
        %2298 = vmatpush.bf16.msra.mxu0 0
        %2299 = vmatpush.bf16.msra.mxu0 0
        %2300 = vmatpush.bf16.msra.mxu0 0
        %2301 = vmatpush.bf16.msra.mxu0 0
        %2302 = vmatpush.bf16.msra.mxu0 0
        %2303 = vmatpush.bf16.msra.mxu0 %v2294
        %2304 = vmatmul.bf16.gmra.mxu0 %v2246
        %v2305 = vpop.f32.mrf.mxu0
        %v2306 = vadd.f32 0.0, %v2305
        %v2307 = vpop.f32.mrf.mxu0
        %v2308 = vadd.f32 0.0, %v2307
        %2309 = vmatmul.bf16.gmra.mxu0 %v2249
        %v2310 = vpop.f32.mrf.mxu0
        %v2311 = vadd.f32 0.0, %v2310
        %v2312 = vpop.f32.mrf.mxu0
        %v2313 = vadd.f32 0.0, %v2312
        %2314 = vmatmul.bf16.gmra.mxu0 %v2252
        %v2315 = vpop.f32.mrf.mxu0
        %v2316 = vadd.f32 0.0, %v2315
        %v2317 = vpop.f32.mrf.mxu0
        %v2318 = vadd.f32 0.0, %v2317
        %2319 = vmatmul.bf16.gmra.mxu0 %v2255
        %v2320 = vpop.f32.mrf.mxu0
        %v2321 = vadd.f32 0.0, %v2320
        %v2322 = vpop.f32.mrf.mxu0
        %v2323 = vadd.f32 0.0, %v2322
        %2324 = vmatmul.bf16.gmra.mxu0 %v2258
        %v2325 = vpop.f32.mrf.mxu0
        %v2326 = vadd.f32 0.0, %v2325
        %v2327 = vpop.f32.mrf.mxu0
        %v2328 = vadd.f32 0.0, %v2327
        %2329 = vmatmul.bf16.gmra.mxu0 %v2261
        %v2330 = vpop.f32.mrf.mxu0
        %v2331 = vadd.f32 0.0, %v2330
        %v2332 = vpop.f32.mrf.mxu0
        %v2333 = vadd.f32 0.0, %v2332
        %2334 = vmatmul.bf16.gmra.mxu0 %v2264
        %v2335 = vpop.f32.mrf.mxu0
        %v2336 = vadd.f32 0.0, %v2335
        %v2337 = vpop.f32.mrf.mxu0
        %v2338 = vadd.f32 0.0, %v2337
        %2339 = vmatmul.bf16.gmra.mxu0 %v2267
        %v2340 = vpop.f32.mrf.mxu0
        %v2341 = vadd.f32 0.0, %v2340
        %v2342 = vpop.f32.mrf.mxu0
        %v2343 = vadd.f32 0.0, %v2342
        %2344 = vmatmul.bf16.gmra.mxu0 %v2270
        %v2345 = vpop.f32.mrf.mxu0
        %v2346 = vadd.f32 0.0, %v2345
        %v2347 = vpop.f32.mrf.mxu0
        %v2348 = vadd.f32 0.0, %v2347
        %2349 = vmatmul.bf16.gmra.mxu0 %v2273
        %v2350 = vpop.f32.mrf.mxu0
        %v2351 = vadd.f32 0.0, %v2350
        %v2352 = vpop.f32.mrf.mxu0
        %v2353 = vadd.f32 0.0, %v2352
        %2354 = vmatmul.bf16.gmra.mxu0 %v2276
        %v2355 = vpop.f32.mrf.mxu0
        %v2356 = vadd.f32 0.0, %v2355
        %v2357 = vpop.f32.mrf.mxu0
        %v2358 = vadd.f32 0.0, %v2357
        %2359 = vmatmul.bf16.gmra.mxu0 %v2279
        %v2360 = vpop.f32.mrf.mxu0
        %v2361 = vadd.f32 0.0, %v2360
        %v2362 = vpop.f32.mrf.mxu0
        %v2363 = vadd.f32 0.0, %v2362
        %2364 = vmatmul.bf16.gmra.mxu0 %v2282
        %v2365 = vpop.f32.mrf.mxu0
        %v2366 = vadd.f32 0.0, %v2365
        %v2367 = vpop.f32.mrf.mxu0
        %v2368 = vadd.f32 0.0, %v2367
        %2369 = vmatmul.bf16.gmra.mxu0 %v2285
        %v2370 = vpop.f32.mrf.mxu0
        %v2371 = vadd.f32 0.0, %v2370
        %v2372 = vpop.f32.mrf.mxu0
        %v2373 = vadd.f32 0.0, %v2372
        %2374 = vmatmul.bf16.gmra.mxu0 %v2288
        %v2375 = vpop.f32.mrf.mxu0
        %v2376 = vadd.f32 0.0, %v2375
        %v2377 = vpop.f32.mrf.mxu0
        %v2378 = vadd.f32 0.0, %v2377
        %2379 = vmatmul.bf16.gmra.mxu0 %v2291
        %v2380 = vpop.f32.mrf.mxu0
        %v2381 = vadd.f32 0.0, %v2380
        %v2382 = vpop.f32.mrf.mxu0
        %v2383 = vadd.f32 0.0, %v2382
        %2384 = vdwg.mxu0
        %vm2385 = vcmask 65536
        %2386 = vst.msk [vmem:[#allocation2] sm:$0x1] %vm2385, 0.0
        %2387 = vst.msk [vmem:[#allocation2 + $0x18] sm:$0x1] %vm2385, 0.0
        %2388 = vst.msk [vmem:[#allocation2 + $0x30] sm:$0x1] %vm2385, 0.0
        %2389 = vst.msk [vmem:[#allocation2 + $0x48] sm:$0x1] %vm2385, 0.0
        %2390 = vst.msk [vmem:[#allocation2 + $0x60] sm:$0x1] %vm2385, 0.0
        %2391 = vst.msk [vmem:[#allocation2 + $0x78] sm:$0x1] %vm2385, 0.0
        %2392 = vst.msk [vmem:[#allocation2 + $0x90] sm:$0x1] %vm2385, 0.0
        %2393 = vst.msk [vmem:[#allocation2 + $0xa8] sm:$0x1] %vm2385, 0.0
        %2394 = vst.msk [vmem:[#allocation2 + $0xc0] sm:$0x1] %vm2385, 0.0
        %2395 = vst.msk [vmem:[#allocation2 + $0xd8] sm:$0x1] %vm2385, 0.0
        %2396 = vst.msk [vmem:[#allocation2 + $0xf0] sm:$0x1] %vm2385, 0.0
        %2397 = vst.msk [vmem:[#allocation2 + $0x108] sm:$0x1] %vm2385, 0.0
        %2398 = vst.msk [vmem:[#allocation2 + $0x120] sm:$0x1] %vm2385, 0.0
        %2399 = vst.msk [vmem:[#allocation2 + $0x138] sm:$0x1] %vm2385, 0.0
        %2400 = vst.msk [vmem:[#allocation2 + $0x150] sm:$0x1] %vm2385, 0.0
        %2401 = vst.msk [vmem:[#allocation2 + $0x168] sm:$0x1] %vm2385, 0.0
        %2402 = vst.msk [vmem:[#allocation2 + $0x180] sm:$0x1] %vm2385, 0.0
        %2403 = vst.msk [vmem:[#allocation2 + $0x198] sm:$0x1] %vm2385, 0.0
        %2404 = vst.msk [vmem:[#allocation2 + $0x11] sm:$0x1] %vm2385, 0.0
        %2405 = vst.msk [vmem:[#allocation2 + $0x29] sm:$0x1] %vm2385, 0.0
        %2406 = vst.msk [vmem:[#allocation2 + $0x41] sm:$0x1] %vm2385, 0.0
        %2407 = vst.msk [vmem:[#allocation2 + $0x59] sm:$0x1] %vm2385, 0.0
        %2408 = vst.msk [vmem:[#allocation2 + $0x71] sm:$0x1] %vm2385, 0.0
        %2409 = vst.msk [vmem:[#allocation2 + $0x89] sm:$0x1] %vm2385, 0.0
        %2410 = vst.msk [vmem:[#allocation2 + $0xa1] sm:$0x1] %vm2385, 0.0
        %2411 = vst.msk [vmem:[#allocation2 + $0xb9] sm:$0x1] %vm2385, 0.0
        %2412 = vst.msk [vmem:[#allocation2 + $0xd1] sm:$0x1] %vm2385, 0.0
        %2413 = vst.msk [vmem:[#allocation2 + $0xe9] sm:$0x1] %vm2385, 0.0
        %2414 = vst.msk [vmem:[#allocation2 + $0x101] sm:$0x1] %vm2385, 0.0
        %2415 = vst.msk [vmem:[#allocation2 + $0x119] sm:$0x1] %vm2385, 0.0
        %2416 = vst.msk [vmem:[#allocation2 + $0x131] sm:$0x1] %vm2385, 0.0
        %2417 = vst.msk [vmem:[#allocation2 + $0x149] sm:$0x1] %vm2385, 0.0
        %2418 = vst.msk [vmem:[#allocation2 + $0x161] sm:$0x1] %vm2385, 0.0
        %2419 = vst.msk [vmem:[#allocation2 + $0x179] sm:$0x1] %vm2385, 0.0
        %2420 = vst.msk [vmem:[#allocation2 + $0x191] sm:$0x1] %vm2385, 0.0
        %2421 = vst.msk [vmem:[#allocation2 + $0x1a9] sm:$0x1] %vm2385, 0.0
        %vm2422 = vcmask 72704
        %2423 = vst.msk [vmem:[#allocation2] sm:$0xff] %vm2422, 0.0
        %2424 = vst.msk [vmem:[#allocation2 + $0x8] sm:$0xff] %vm2422, 0.0
        %vm2425 = vcmask 66560
        %2426 = vst.msk [vmem:[#allocation2 + $0x10] sm:$0x3] %vm2425, 0.0
        %s2427 = scalar_lea.vmem [#allocation2], 408
        %2428 = vst.msk [vmem:[%s2427] sm:$0xff] %vm2422, 0.0
        %2429 = vst.msk [vmem:[%s2427 + $0x8] sm:$0xff] %vm2422, 0.0
        %2430 = vst.msk [vmem:[%s2427 + $0x10] sm:$0x3] %vm2425, 0.0
        %s2431 = scalar_lea.vmem [#allocation2], 24
        %2432 = vst.msk [vmem:[%s2431 + $0x1] sm:$0xff] %vm2422, %v2306
        %2433 = vst.msk [vmem:[%s2431 + $0x9] sm:$0xff] %vm2422, %v2308
        %2434 = vst.msk [vmem:[%s2431 + $0x19] sm:$0xff] %vm2422, %v2311
        %2435 = vst.msk [vmem:[%s2431 + $0x21] sm:$0xff] %vm2422, %v2313
        %2436 = vst.msk [vmem:[%s2431 + $0x31] sm:$0xff] %vm2422, %v2316
        %2437 = vst.msk [vmem:[%s2431 + $0x39] sm:$0xff] %vm2422, %v2318
        %2438 = vst.msk [vmem:[%s2431 + $0x49] sm:$0xff] %vm2422, %v2321
        %2439 = vst.msk [vmem:[%s2431 + $0x51] sm:$0xff] %vm2422, %v2323
        %2440 = vst.msk [vmem:[%s2431 + $0x61] sm:$0xff] %vm2422, %v2326
        %2441 = vst.msk [vmem:[%s2431 + $0x69] sm:$0xff] %vm2422, %v2328
        %2442 = vst.msk [vmem:[%s2431 + $0x79] sm:$0xff] %vm2422, %v2331
        %2443 = vst.msk [vmem:[%s2431 + $0x81] sm:$0xff] %vm2422, %v2333
        %2444 = vst.msk [vmem:[%s2431 + $0x91] sm:$0xff] %vm2422, %v2336
        %2445 = vst.msk [vmem:[%s2431 + $0x99] sm:$0xff] %vm2422, %v2338
        %2446 = vst.msk [vmem:[%s2431 + $0xa9] sm:$0xff] %vm2422, %v2341
        %2447 = vst.msk [vmem:[%s2431 + $0xb1] sm:$0xff] %vm2422, %v2343
        %2448 = vst.msk [vmem:[%s2431 + $0xc1] sm:$0xff] %vm2422, %v2346
        %2449 = vst.msk [vmem:[%s2431 + $0xc9] sm:$0xff] %vm2422, %v2348
        %2450 = vst.msk [vmem:[%s2431 + $0xd9] sm:$0xff] %vm2422, %v2351
        %2451 = vst.msk [vmem:[%s2431 + $0xe1] sm:$0xff] %vm2422, %v2353
        %2452 = vst.msk [vmem:[%s2431 + $0xf1] sm:$0xff] %vm2422, %v2356
        %2453 = vst.msk [vmem:[%s2431 + $0xf9] sm:$0xff] %vm2422, %v2358
        %2454 = vst.msk [vmem:[%s2431 + $0x109] sm:$0xff] %vm2422, %v2361
        %2455 = vst.msk [vmem:[%s2431 + $0x111] sm:$0xff] %vm2422, %v2363
        %2456 = vst.msk [vmem:[%s2431 + $0x121] sm:$0xff] %vm2422, %v2366
        %2457 = vst.msk [vmem:[%s2431 + $0x129] sm:$0xff] %vm2422, %v2368
        %2458 = vst.msk [vmem:[%s2431 + $0x139] sm:$0xff] %vm2422, %v2371
        %2459 = vst.msk [vmem:[%s2431 + $0x141] sm:$0xff] %vm2422, %v2373
        %2460 = vst.msk [vmem:[%s2431 + $0x151] sm:$0xff] %vm2422, %v2376
        %2461 = vst.msk [vmem:[%s2431 + $0x159] sm:$0xff] %vm2422, %v2378
        %2462 = vst.msk [vmem:[%s2431 + $0x169] sm:$0xff] %vm2422, %v2381
        %2463 = vst.msk [vmem:[%s2431 + $0x171] sm:$0xff] %vm2422, %v2383
        %v2464 = vld [vmem:[#allocation2] sm:$0xff]
        %v2465 = vld [vmem:[#allocation2 + $0x8] sm:$0xff]
        %v2466 = vld [vmem:[#allocation2 + $0x10] sm:$0x3]
        %v2467 = vld [vmem:[#allocation2 + $0x18] sm:$0xff]
        %v2468 = vld [vmem:[#allocation2 + $0x20] sm:$0xff]
        %v2469 = vld [vmem:[#allocation2 + $0x28] sm:$0x3]
        %v2470 = vld [vmem:[#allocation2 + $0x30] sm:$0xff]
        %v2471 = vld [vmem:[#allocation2 + $0x38] sm:$0xff]
        %v2472 = vld [vmem:[#allocation2 + $0x40] sm:$0x3]
        %v2473 = vld [vmem:[#allocation2 + $0x48] sm:$0xff]
        %v2474 = vld [vmem:[#allocation2 + $0x50] sm:$0xff]
        %v2475 = vld [vmem:[#allocation2 + $0x58] sm:$0x3]
        %v2476 = vld [vmem:[#allocation2 + $0x60] sm:$0xff]
        %v2477 = vld [vmem:[#allocation2 + $0x68] sm:$0xff]
        %v2478 = vld [vmem:[#allocation2 + $0x70] sm:$0x3]
        %v2479 = vld [vmem:[#allocation2 + $0x78] sm:$0xff]
        %v2480 = vld [vmem:[#allocation2 + $0x80] sm:$0xff]
        %v2481 = vld [vmem:[#allocation2 + $0x88] sm:$0x3]
        %v2482 = vld [vmem:[#allocation2 + $0x90] sm:$0xff]
        %v2483 = vld [vmem:[#allocation2 + $0x98] sm:$0xff]
        %v2484 = vld [vmem:[#allocation2 + $0xa0] sm:$0x3]
        %v2485 = vld [vmem:[#allocation2 + $0xa8] sm:$0xff]
        %v2486 = vld [vmem:[#allocation2 + $0xb0] sm:$0xff]
        %v2487 = vld [vmem:[#allocation2 + $0xb8] sm:$0x3]
        %v2488 = vld [vmem:[#allocation2 + $0xc0] sm:$0xff]
        %v2489 = vld [vmem:[#allocation2 + $0xc8] sm:$0xff]
        %v2490 = vld [vmem:[#allocation2 + $0xd0] sm:$0x3]
        %v2491 = vld [vmem:[#allocation2 + $0xd8] sm:$0xff]
        %v2492 = vld [vmem:[#allocation2 + $0xe0] sm:$0xff]
        %v2493 = vld [vmem:[#allocation2 + $0xe8] sm:$0x3]
        %v2494 = vld [vmem:[#allocation2 + $0xf0] sm:$0xff]
        %v2495 = vld [vmem:[#allocation2 + $0xf8] sm:$0xff]
        %v2496 = vld [vmem:[#allocation2 + $0x100] sm:$0x3]
        %v2497 = vld [vmem:[#allocation2 + $0x108] sm:$0xff]
        %v2498 = vld [vmem:[#allocation2 + $0x110] sm:$0xff]
        %v2499 = vld [vmem:[#allocation2 + $0x118] sm:$0x3]
        %v2500 = vld [vmem:[#allocation2 + $0x120] sm:$0xff]
        %v2501 = vld [vmem:[#allocation2 + $0x128] sm:$0xff]
        %v2502 = vld [vmem:[#allocation2 + $0x130] sm:$0x3]
        %v2503 = vld [vmem:[#allocation2 + $0x138] sm:$0xff]
        %v2504 = vld [vmem:[#allocation2 + $0x140] sm:$0xff]
        %v2505 = vld [vmem:[#allocation2 + $0x148] sm:$0x3]
        %v2506 = vld [vmem:[#allocation2 + $0x150] sm:$0xff]
        %v2507 = vld [vmem:[#allocation2 + $0x158] sm:$0xff]
        %v2508 = vld [vmem:[#allocation2 + $0x160] sm:$0x3]
        %v2509 = vld [vmem:[#allocation2 + $0x168] sm:$0xff]
        %v2510 = vld [vmem:[#allocation2 + $0x170] sm:$0xff]
        %v2511 = vld [vmem:[#allocation2 + $0x178] sm:$0x3]
        %v2512 = vld [vmem:[#allocation2 + $0x180] sm:$0xff]
        %v2513 = vld [vmem:[#allocation2 + $0x188] sm:$0xff]
        %v2514 = vld [vmem:[#allocation2 + $0x190] sm:$0x3]
        %v2515 = vld [vmem:[#allocation2 + $0x198] sm:$0xff]
        %v2516 = vld [vmem:[#allocation2 + $0x1a0] sm:$0xff]
        %v2517 = vld [vmem:[#allocation2 + $0x1a8] sm:$0x3]
        %v2518 = vlaneseq
        %v2519 = vand.u32 %v2518, 127
        %vm2520 = vcmp.eq.s32.totalorder %v2519, 0
        %v2521 = vsel %vm2520, 1, 0
        %vm2522 = vcmp.eq.s32.totalorder %v2521, 1
        %v2523 = vsel %vm2522, %v2464, 0.0
        %v2524 = vsel %vm2522, %v2465, 0.0
        %v2525 = vsel %vm2522, %v2467, 0.0
        %v2526 = vsel %vm2522, %v2468, 0.0
        %v2527 = vsel %vm2522, %v2470, 0.0
        %v2528 = vsel %vm2522, %v2471, 0.0
        %v2529 = vsel %vm2522, %v2473, 0.0
        %v2530 = vsel %vm2522, %v2474, 0.0
        %v2531 = vsel %vm2522, %v2476, 0.0
        %v2532 = vsel %vm2522, %v2477, 0.0
        %v2533 = vsel %vm2522, %v2479, 0.0
        %v2534 = vsel %vm2522, %v2480, 0.0
        %v2535 = vsel %vm2522, %v2482, 0.0
        %v2536 = vsel %vm2522, %v2483, 0.0
        %v2537 = vsel %vm2522, %v2485, 0.0
        %v2538 = vsel %vm2522, %v2486, 0.0
        %v2539 = vsel %vm2522, %v2488, 0.0
        %v2540 = vsel %vm2522, %v2489, 0.0
        %v2541 = vsel %vm2522, %v2491, 0.0
        %v2542 = vsel %vm2522, %v2492, 0.0
        %v2543 = vsel %vm2522, %v2494, 0.0
        %v2544 = vsel %vm2522, %v2495, 0.0
        %v2545 = vsel %vm2522, %v2497, 0.0
        %v2546 = vsel %vm2522, %v2498, 0.0
        %v2547 = vsel %vm2522, %v2500, 0.0
        %v2548 = vsel %vm2522, %v2501, 0.0
        %v2549 = vsel %vm2522, %v2503, 0.0
        %v2550 = vsel %vm2522, %v2504, 0.0
        %v2551 = vsel %vm2522, %v2506, 0.0
        %v2552 = vsel %vm2522, %v2507, 0.0
        %v2553 = vsel %vm2522, %v2509, 0.0
        %v2554 = vsel %vm2522, %v2510, 0.0
        %v2555 = vadd.f32 %v2523, 0.0
        %v2556 = vadd.f32 %v2524, 0.0
        %v2557 = vadd.f32 %v2525, 0.0
        %v2558 = vadd.f32 %v2526, 0.0
        %v2559 = vadd.f32 %v2527, 0.0
        %v2560 = vadd.f32 %v2528, 0.0
        %v2561 = vadd.f32 %v2529, 0.0
        %v2562 = vadd.f32 %v2530, 0.0
        %v2563 = vadd.f32 %v2531, 0.0
        %v2564 = vadd.f32 %v2532, 0.0
        %v2565 = vadd.f32 %v2533, 0.0
        %v2566 = vadd.f32 %v2534, 0.0
        %v2567 = vadd.f32 %v2535, 0.0
        %v2568 = vadd.f32 %v2536, 0.0
        %v2569 = vadd.f32 %v2537, 0.0
        %v2570 = vadd.f32 %v2538, 0.0
        %v2571 = vadd.f32 %v2539, 0.0
        %v2572 = vadd.f32 %v2540, 0.0
        %v2573 = vadd.f32 %v2541, 0.0
        %v2574 = vadd.f32 %v2542, 0.0
        %v2575 = vadd.f32 %v2543, 0.0
        %v2576 = vadd.f32 %v2544, 0.0
        %v2577 = vadd.f32 %v2545, 0.0
        %v2578 = vadd.f32 %v2546, 0.0
        %v2579 = vadd.f32 %v2547, 0.0
        %v2580 = vadd.f32 %v2548, 0.0
        %v2581 = vadd.f32 %v2549, 0.0
        %v2582 = vadd.f32 %v2550, 0.0
        %v2583 = vadd.f32 %v2551, 0.0
        %v2584 = vadd.f32 %v2552, 0.0
        %v2585 = vadd.f32 %v2553, 0.0
        %v2586 = vadd.f32 %v2554, 0.0
        %vm2587 = vcmp.eq.s32.totalorder %v2519, 1
        %v2588 = vsel %vm2587, 1, 0
        %vm2589 = vcmp.eq.s32.totalorder %v2588, 1
        %v2590 = vsel %vm2589, %v2464, 0.0
        %v2591 = vsel %vm2589, %v2465, 0.0
        %v2592 = vsel %vm2589, %v2466, 0.0
        %v2593 = vsel %vm2589, %v2467, 0.0
        %v2594 = vsel %vm2589, %v2468, 0.0
        %v2595 = vsel %vm2589, %v2469, 0.0
        %v2596 = vsel %vm2589, %v2470, 0.0
        %v2597 = vsel %vm2589, %v2471, 0.0
        %v2598 = vsel %vm2589, %v2472, 0.0
        %v2599 = vsel %vm2589, %v2473, 0.0
        %v2600 = vsel %vm2589, %v2474, 0.0
        %v2601 = vsel %vm2589, %v2475, 0.0
        %v2602 = vsel %vm2589, %v2476, 0.0
        %v2603 = vsel %vm2589, %v2477, 0.0
        %v2604 = vsel %vm2589, %v2478, 0.0
        %v2605 = vsel %vm2589, %v2479, 0.0
        %v2606 = vsel %vm2589, %v2480, 0.0
        %v2607 = vsel %vm2589, %v2481, 0.0
        %v2608 = vsel %vm2589, %v2482, 0.0
        %v2609 = vsel %vm2589, %v2483, 0.0
        %v2610 = vsel %vm2589, %v2484, 0.0
        %v2611 = vsel %vm2589, %v2485, 0.0
        %v2612 = vsel %vm2589, %v2486, 0.0
        %v2613 = vsel %vm2589, %v2487, 0.0
        %v2614 = vsel %vm2589, %v2488, 0.0
        %v2615 = vsel %vm2589, %v2489, 0.0
        %v2616 = vsel %vm2589, %v2490, 0.0
        %v2617 = vsel %vm2589, %v2491, 0.0
        %v2618 = vsel %vm2589, %v2492, 0.0
        %v2619 = vsel %vm2589, %v2493, 0.0
        %v2620 = vsel %vm2589, %v2494, 0.0
        %v2621 = vsel %vm2589, %v2495, 0.0
        %v2622 = vsel %vm2589, %v2496, 0.0
        %v2623 = vsel %vm2589, %v2497, 0.0
        %v2624 = vsel %vm2589, %v2498, 0.0
        %v2625 = vsel %vm2589, %v2499, 0.0
        %v2626 = vsel %vm2589, %v2500, 0.0
        %v2627 = vsel %vm2589, %v2501, 0.0
        %v2628 = vsel %vm2589, %v2502, 0.0
        %v2629 = vsel %vm2589, %v2503, 0.0
        %v2630 = vsel %vm2589, %v2504, 0.0
        %v2631 = vsel %vm2589, %v2505, 0.0
        %v2632 = vsel %vm2589, %v2506, 0.0
        %v2633 = vsel %vm2589, %v2507, 0.0
        %v2634 = vsel %vm2589, %v2508, 0.0
        %v2635 = vsel %vm2589, %v2509, 0.0
        %v2636 = vsel %vm2589, %v2510, 0.0
        %v2637 = vsel %vm2589, %v2511, 0.0
        %vm2686 = vcmask 1046528
        %v2687 = vrot.slane %v2590, 1
        %v2688 = vrot.slane %v2591, 1
        %v2689 = vsel %vm2686, %v2687, %v2688
        %v2690 = vrot.slane %v2592, 1
        %v2691 = vsel %vm2686, %v2688, %v2690
        %v2692 = vrot.slane %v2593, 1
        %v2693 = vrot.slane %v2594, 1
        %v2694 = vsel %vm2686, %v2692, %v2693
        %v2695 = vrot.slane %v2595, 1
        %v2696 = vsel %vm2686, %v2693, %v2695
        %v2697 = vrot.slane %v2596, 1
        %v2698 = vrot.slane %v2597, 1
        %v2699 = vsel %vm2686, %v2697, %v2698
        %v2700 = vrot.slane %v2598, 1
        %v2701 = vsel %vm2686, %v2698, %v2700
        %v2702 = vrot.slane %v2599, 1
        %v2703 = vrot.slane %v2600, 1
        %v2704 = vsel %vm2686, %v2702, %v2703
        %v2705 = vrot.slane %v2601, 1
        %v2706 = vsel %vm2686, %v2703, %v2705
        %v2707 = vrot.slane %v2602, 1
        %v2708 = vrot.slane %v2603, 1
        %v2709 = vsel %vm2686, %v2707, %v2708
        %v2710 = vrot.slane %v2604, 1
        %v2711 = vsel %vm2686, %v2708, %v2710
        %v2712 = vrot.slane %v2605, 1
        %v2713 = vrot.slane %v2606, 1
        %v2714 = vsel %vm2686, %v2712, %v2713
        %v2715 = vrot.slane %v2607, 1
        %v2716 = vsel %vm2686, %v2713, %v2715
        %v2717 = vrot.slane %v2608, 1
        %v2718 = vrot.slane %v2609, 1
        %v2719 = vsel %vm2686, %v2717, %v2718
        %v2720 = vrot.slane %v2610, 1
        %v2721 = vsel %vm2686, %v2718, %v2720
        %v2722 = vrot.slane %v2611, 1
        %v2723 = vrot.slane %v2612, 1
        %v2724 = vsel %vm2686, %v2722, %v2723
        %v2725 = vrot.slane %v2613, 1
        %v2726 = vsel %vm2686, %v2723, %v2725
        %v2727 = vrot.slane %v2614, 1
        %v2728 = vrot.slane %v2615, 1
        %v2729 = vsel %vm2686, %v2727, %v2728
        %v2730 = vrot.slane %v2616, 1
        %v2731 = vsel %vm2686, %v2728, %v2730
        %v2732 = vrot.slane %v2617, 1
        %v2733 = vrot.slane %v2618, 1
        %v2734 = vsel %vm2686, %v2732, %v2733
        %v2735 = vrot.slane %v2619, 1
        %v2736 = vsel %vm2686, %v2733, %v2735
        %v2737 = vrot.slane %v2620, 1
        %v2738 = vrot.slane %v2621, 1
        %v2739 = vsel %vm2686, %v2737, %v2738
        %v2740 = vrot.slane %v2622, 1
        %v2741 = vsel %vm2686, %v2738, %v2740
        %v2742 = vrot.slane %v2623, 1
        %v2743 = vrot.slane %v2624, 1
        %v2744 = vsel %vm2686, %v2742, %v2743
        %v2745 = vrot.slane %v2625, 1
        %v2746 = vsel %vm2686, %v2743, %v2745
        %v2747 = vrot.slane %v2626, 1
        %v2748 = vrot.slane %v2627, 1
        %v2749 = vsel %vm2686, %v2747, %v2748
        %v2750 = vrot.slane %v2628, 1
        %v2751 = vsel %vm2686, %v2748, %v2750
        %v2752 = vrot.slane %v2629, 1
        %v2753 = vrot.slane %v2630, 1
        %v2754 = vsel %vm2686, %v2752, %v2753
        %v2755 = vrot.slane %v2631, 1
        %v2756 = vsel %vm2686, %v2753, %v2755
        %v2757 = vrot.slane %v2632, 1
        %v2758 = vrot.slane %v2633, 1
        %v2759 = vsel %vm2686, %v2757, %v2758
        %v2760 = vrot.slane %v2634, 1
        %v2761 = vsel %vm2686, %v2758, %v2760
        %v2762 = vrot.slane %v2635, 1
        %v2763 = vrot.slane %v2636, 1
        %v2764 = vsel %vm2686, %v2762, %v2763
        %v2765 = vrot.slane %v2637, 1
        %v2766 = vsel %vm2686, %v2763, %v2765
        %v2799 = vadd.f32 %v2555, %v2689
        %v2800 = vadd.f32 %v2556, %v2691
        %v2801 = vadd.f32 %v2557, %v2694
        %v2802 = vadd.f32 %v2558, %v2696
        %v2803 = vadd.f32 %v2559, %v2699
        %v2804 = vadd.f32 %v2560, %v2701
        %v2805 = vadd.f32 %v2561, %v2704
        %v2806 = vadd.f32 %v2562, %v2706
        %v2807 = vadd.f32 %v2563, %v2709
        %v2808 = vadd.f32 %v2564, %v2711
        %v2809 = vadd.f32 %v2565, %v2714
        %v2810 = vadd.f32 %v2566, %v2716
        %v2811 = vadd.f32 %v2567, %v2719
        %v2812 = vadd.f32 %v2568, %v2721
        %v2813 = vadd.f32 %v2569, %v2724
        %v2814 = vadd.f32 %v2570, %v2726
        %v2815 = vadd.f32 %v2571, %v2729
        %v2816 = vadd.f32 %v2572, %v2731
        %v2817 = vadd.f32 %v2573, %v2734
        %v2818 = vadd.f32 %v2574, %v2736
        %v2819 = vadd.f32 %v2575, %v2739
        %v2820 = vadd.f32 %v2576, %v2741
        %v2821 = vadd.f32 %v2577, %v2744
        %v2822 = vadd.f32 %v2578, %v2746
        %v2823 = vadd.f32 %v2579, %v2749
        %v2824 = vadd.f32 %v2580, %v2751
        %v2825 = vadd.f32 %v2581, %v2754
        %v2826 = vadd.f32 %v2582, %v2756
        %v2827 = vadd.f32 %v2583, %v2759
        %v2828 = vadd.f32 %v2584, %v2761
        %v2829 = vadd.f32 %v2585, %v2764
        %v2830 = vadd.f32 %v2586, %v2766
        %vm2831 = vcmp.eq.s32.totalorder %v2519, 2
        %v2832 = vsel %vm2831, 1, 0
        %vm2833 = vcmp.eq.s32.totalorder %v2832, 1
        %v2834 = vsel %vm2833, %v2464, 0.0
        %v2835 = vsel %vm2833, %v2465, 0.0
        %v2836 = vsel %vm2833, %v2466, 0.0
        %v2837 = vsel %vm2833, %v2467, 0.0
        %v2838 = vsel %vm2833, %v2468, 0.0
        %v2839 = vsel %vm2833, %v2469, 0.0
        %v2840 = vsel %vm2833, %v2470, 0.0
        %v2841 = vsel %vm2833, %v2471, 0.0
        %v2842 = vsel %vm2833, %v2472, 0.0
        %v2843 = vsel %vm2833, %v2473, 0.0
        %v2844 = vsel %vm2833, %v2474, 0.0
        %v2845 = vsel %vm2833, %v2475, 0.0
        %v2846 = vsel %vm2833, %v2476, 0.0
        %v2847 = vsel %vm2833, %v2477, 0.0
        %v2848 = vsel %vm2833, %v2478, 0.0
        %v2849 = vsel %vm2833, %v2479, 0.0
        %v2850 = vsel %vm2833, %v2480, 0.0
        %v2851 = vsel %vm2833, %v2481, 0.0
        %v2852 = vsel %vm2833, %v2482, 0.0
        %v2853 = vsel %vm2833, %v2483, 0.0
        %v2854 = vsel %vm2833, %v2484, 0.0
        %v2855 = vsel %vm2833, %v2485, 0.0
        %v2856 = vsel %vm2833, %v2486, 0.0
        %v2857 = vsel %vm2833, %v2487, 0.0
        %v2858 = vsel %vm2833, %v2488, 0.0
        %v2859 = vsel %vm2833, %v2489, 0.0
        %v2860 = vsel %vm2833, %v2490, 0.0
        %v2861 = vsel %vm2833, %v2491, 0.0
        %v2862 = vsel %vm2833, %v2492, 0.0
        %v2863 = vsel %vm2833, %v2493, 0.0
        %v2864 = vsel %vm2833, %v2494, 0.0
        %v2865 = vsel %vm2833, %v2495, 0.0
        %v2866 = vsel %vm2833, %v2496, 0.0
        %v2867 = vsel %vm2833, %v2497, 0.0
        %v2868 = vsel %vm2833, %v2498, 0.0
        %v2869 = vsel %vm2833, %v2499, 0.0
        %v2870 = vsel %vm2833, %v2500, 0.0
        %v2871 = vsel %vm2833, %v2501, 0.0
        %v2872 = vsel %vm2833, %v2502, 0.0
        %v2873 = vsel %vm2833, %v2503, 0.0
        %v2874 = vsel %vm2833, %v2504, 0.0
        %v2875 = vsel %vm2833, %v2505, 0.0
        %v2876 = vsel %vm2833, %v2506, 0.0
        %v2877 = vsel %vm2833, %v2507, 0.0
        %v2878 = vsel %vm2833, %v2508, 0.0
        %v2879 = vsel %vm2833, %v2509, 0.0
        %v2880 = vsel %vm2833, %v2510, 0.0
        %v2881 = vsel %vm2833, %v2511, 0.0
        %vm2930 = vcmask 1045504
        %v2931 = vrot.slane %v2834, 2
        %v2932 = vrot.slane %v2835, 2
        %v2933 = vsel %vm2930, %v2931, %v2932
        %v2934 = vrot.slane %v2836, 2
        %v2935 = vsel %vm2930, %v2932, %v2934
        %v2936 = vrot.slane %v2837, 2
        %v2937 = vrot.slane %v2838, 2
        %v2938 = vsel %vm2930, %v2936, %v2937
        %v2939 = vrot.slane %v2839, 2
        %v2940 = vsel %vm2930, %v2937, %v2939
        %v2941 = vrot.slane %v2840, 2
        %v2942 = vrot.slane %v2841, 2
        %v2943 = vsel %vm2930, %v2941, %v2942
        %v2944 = vrot.slane %v2842, 2
        %v2945 = vsel %vm2930, %v2942, %v2944
        %v2946 = vrot.slane %v2843, 2
        %v2947 = vrot.slane %v2844, 2
        %v2948 = vsel %vm2930, %v2946, %v2947
        %v2949 = vrot.slane %v2845, 2
        %v2950 = vsel %vm2930, %v2947, %v2949
        %v2951 = vrot.slane %v2846, 2
        %v2952 = vrot.slane %v2847, 2
        %v2953 = vsel %vm2930, %v2951, %v2952
        %v2954 = vrot.slane %v2848, 2
        %v2955 = vsel %vm2930, %v2952, %v2954
        %v2956 = vrot.slane %v2849, 2
        %v2957 = vrot.slane %v2850, 2
        %v2958 = vsel %vm2930, %v2956, %v2957
        %v2959 = vrot.slane %v2851, 2
        %v2960 = vsel %vm2930, %v2957, %v2959
        %v2961 = vrot.slane %v2852, 2
        %v2962 = vrot.slane %v2853, 2
        %v2963 = vsel %vm2930, %v2961, %v2962
        %v2964 = vrot.slane %v2854, 2
        %v2965 = vsel %vm2930, %v2962, %v2964
        %v2966 = vrot.slane %v2855, 2
        %v2967 = vrot.slane %v2856, 2
        %v2968 = vsel %vm2930, %v2966, %v2967
        %v2969 = vrot.slane %v2857, 2
        %v2970 = vsel %vm2930, %v2967, %v2969
        %v2971 = vrot.slane %v2858, 2
        %v2972 = vrot.slane %v2859, 2
        %v2973 = vsel %vm2930, %v2971, %v2972
        %v2974 = vrot.slane %v2860, 2
        %v2975 = vsel %vm2930, %v2972, %v2974
        %v2976 = vrot.slane %v2861, 2
        %v2977 = vrot.slane %v2862, 2
        %v2978 = vsel %vm2930, %v2976, %v2977
        %v2979 = vrot.slane %v2863, 2
        %v2980 = vsel %vm2930, %v2977, %v2979
        %v2981 = vrot.slane %v2864, 2
        %v2982 = vrot.slane %v2865, 2
        %v2983 = vsel %vm2930, %v2981, %v2982
        %v2984 = vrot.slane %v2866, 2
        %v2985 = vsel %vm2930, %v2982, %v2984
        %v2986 = vrot.slane %v2867, 2
        %v2987 = vrot.slane %v2868, 2
        %v2988 = vsel %vm2930, %v2986, %v2987
        %v2989 = vrot.slane %v2869, 2
        %v2990 = vsel %vm2930, %v2987, %v2989
        %v2991 = vrot.slane %v2870, 2
        %v2992 = vrot.slane %v2871, 2
        %v2993 = vsel %vm2930, %v2991, %v2992
        %v2994 = vrot.slane %v2872, 2
        %v2995 = vsel %vm2930, %v2992, %v2994
        %v2996 = vrot.slane %v2873, 2
        %v2997 = vrot.slane %v2874, 2
        %v2998 = vsel %vm2930, %v2996, %v2997
        %v2999 = vrot.slane %v2875, 2
        %v3000 = vsel %vm2930, %v2997, %v2999
        %v3001 = vrot.slane %v2876, 2
        %v3002 = vrot.slane %v2877, 2
        %v3003 = vsel %vm2930, %v3001, %v3002
        %v3004 = vrot.slane %v2878, 2
        %v3005 = vsel %vm2930, %v3002, %v3004
        %v3006 = vrot.slane %v2879, 2
        %v3007 = vrot.slane %v2880, 2
        %v3008 = vsel %vm2930, %v3006, %v3007
        %v3009 = vrot.slane %v2881, 2
        %v3010 = vsel %vm2930, %v3007, %v3009
        %v3043 = vadd.f32 %v2799, %v2933
        %v3044 = vadd.f32 %v2800, %v2935
        %v3045 = vadd.f32 %v2801, %v2938
        %v3046 = vadd.f32 %v2802, %v2940
        %v3047 = vadd.f32 %v2803, %v2943
        %v3048 = vadd.f32 %v2804, %v2945
        %v3049 = vadd.f32 %v2805, %v2948
        %v3050 = vadd.f32 %v2806, %v2950
        %v3051 = vadd.f32 %v2807, %v2953
        %v3052 = vadd.f32 %v2808, %v2955
        %v3053 = vadd.f32 %v2809, %v2958
        %v3054 = vadd.f32 %v2810, %v2960
        %v3055 = vadd.f32 %v2811, %v2963
        %v3056 = vadd.f32 %v2812, %v2965
        %v3057 = vadd.f32 %v2813, %v2968
        %v3058 = vadd.f32 %v2814, %v2970
        %v3059 = vadd.f32 %v2815, %v2973
        %v3060 = vadd.f32 %v2816, %v2975
        %v3061 = vadd.f32 %v2817, %v2978
        %v3062 = vadd.f32 %v2818, %v2980
        %v3063 = vadd.f32 %v2819, %v2983
        %v3064 = vadd.f32 %v2820, %v2985
        %v3065 = vadd.f32 %v2821, %v2988
        %v3066 = vadd.f32 %v2822, %v2990
        %v3067 = vadd.f32 %v2823, %v2993
        %v3068 = vadd.f32 %v2824, %v2995
        %v3069 = vadd.f32 %v2825, %v2998
        %v3070 = vadd.f32 %v2826, %v3000
        %v3071 = vadd.f32 %v2827, %v3003
        %v3072 = vadd.f32 %v2828, %v3005
        %v3073 = vadd.f32 %v2829, %v3008
        %v3074 = vadd.f32 %v2830, %v3010
        %vm3075 = vcmp.eq.s32.totalorder %v2519, 3
        %v3076 = vsel %vm3075, 1, 0
        %vm3077 = vcmp.eq.s32.totalorder %v3076, 1
        %v3078 = vsel %vm3077, %v2467, 0.0
        %v3079 = vsel %vm3077, %v2468, 0.0
        %v3080 = vsel %vm3077, %v2470, 0.0
        %v3081 = vsel %vm3077, %v2471, 0.0
        %v3082 = vsel %vm3077, %v2473, 0.0
        %v3083 = vsel %vm3077, %v2474, 0.0
        %v3084 = vsel %vm3077, %v2476, 0.0
        %v3085 = vsel %vm3077, %v2477, 0.0
        %v3086 = vsel %vm3077, %v2479, 0.0
        %v3087 = vsel %vm3077, %v2480, 0.0
        %v3088 = vsel %vm3077, %v2482, 0.0
        %v3089 = vsel %vm3077, %v2483, 0.0
        %v3090 = vsel %vm3077, %v2485, 0.0
        %v3091 = vsel %vm3077, %v2486, 0.0
        %v3092 = vsel %vm3077, %v2488, 0.0
        %v3093 = vsel %vm3077, %v2489, 0.0
        %v3094 = vsel %vm3077, %v2491, 0.0
        %v3095 = vsel %vm3077, %v2492, 0.0
        %v3096 = vsel %vm3077, %v2494, 0.0
        %v3097 = vsel %vm3077, %v2495, 0.0
        %v3098 = vsel %vm3077, %v2497, 0.0
        %v3099 = vsel %vm3077, %v2498, 0.0
        %v3100 = vsel %vm3077, %v2500, 0.0
        %v3101 = vsel %vm3077, %v2501, 0.0
        %v3102 = vsel %vm3077, %v2503, 0.0
        %v3103 = vsel %vm3077, %v2504, 0.0
        %v3104 = vsel %vm3077, %v2506, 0.0
        %v3105 = vsel %vm3077, %v2507, 0.0
        %v3106 = vsel %vm3077, %v2509, 0.0
        %v3107 = vsel %vm3077, %v2510, 0.0
        %v3108 = vsel %vm3077, %v2512, 0.0
        %v3109 = vsel %vm3077, %v2513, 0.0
        %v3110 = vadd.f32 %v3043, %v3078
        %v3111 = vadd.f32 %v3044, %v3079
        %v3112 = vadd.f32 %v3045, %v3080
        %v3113 = vadd.f32 %v3046, %v3081
        %v3114 = vadd.f32 %v3047, %v3082
        %v3115 = vadd.f32 %v3048, %v3083
        %v3116 = vadd.f32 %v3049, %v3084
        %v3117 = vadd.f32 %v3050, %v3085
        %v3118 = vadd.f32 %v3051, %v3086
        %v3119 = vadd.f32 %v3052, %v3087
        %v3120 = vadd.f32 %v3053, %v3088
        %v3121 = vadd.f32 %v3054, %v3089
        %v3122 = vadd.f32 %v3055, %v3090
        %v3123 = vadd.f32 %v3056, %v3091
        %v3124 = vadd.f32 %v3057, %v3092
        %v3125 = vadd.f32 %v3058, %v3093
        %v3126 = vadd.f32 %v3059, %v3094
        %v3127 = vadd.f32 %v3060, %v3095
        %v3128 = vadd.f32 %v3061, %v3096
        %v3129 = vadd.f32 %v3062, %v3097
        %v3130 = vadd.f32 %v3063, %v3098
        %v3131 = vadd.f32 %v3064, %v3099
        %v3132 = vadd.f32 %v3065, %v3100
        %v3133 = vadd.f32 %v3066, %v3101
        %v3134 = vadd.f32 %v3067, %v3102
        %v3135 = vadd.f32 %v3068, %v3103
        %v3136 = vadd.f32 %v3069, %v3104
        %v3137 = vadd.f32 %v3070, %v3105
        %v3138 = vadd.f32 %v3071, %v3106
        %v3139 = vadd.f32 %v3072, %v3107
        %v3140 = vadd.f32 %v3073, %v3108
        %v3141 = vadd.f32 %v3074, %v3109
        %vm3142 = vcmp.eq.s32.totalorder %v2519, 4
        %v3143 = vsel %vm3142, 1, 0
        %vm3144 = vcmp.eq.s32.totalorder %v3143, 1
        %v3145 = vsel %vm3144, %v2467, 0.0
        %v3146 = vsel %vm3144, %v2468, 0.0
        %v3147 = vsel %vm3144, %v2469, 0.0
        %v3148 = vsel %vm3144, %v2470, 0.0
        %v3149 = vsel %vm3144, %v2471, 0.0
        %v3150 = vsel %vm3144, %v2472, 0.0
        %v3151 = vsel %vm3144, %v2473, 0.0
        %v3152 = vsel %vm3144, %v2474, 0.0
        %v3153 = vsel %vm3144, %v2475, 0.0
        %v3154 = vsel %vm3144, %v2476, 0.0
        %v3155 = vsel %vm3144, %v2477, 0.0
        %v3156 = vsel %vm3144, %v2478, 0.0
        %v3157 = vsel %vm3144, %v2479, 0.0
        %v3158 = vsel %vm3144, %v2480, 0.0
        %v3159 = vsel %vm3144, %v2481, 0.0
        %v3160 = vsel %vm3144, %v2482, 0.0
        %v3161 = vsel %vm3144, %v2483, 0.0
        %v3162 = vsel %vm3144, %v2484, 0.0
        %v3163 = vsel %vm3144, %v2485, 0.0
        %v3164 = vsel %vm3144, %v2486, 0.0
        %v3165 = vsel %vm3144, %v2487, 0.0
        %v3166 = vsel %vm3144, %v2488, 0.0
        %v3167 = vsel %vm3144, %v2489, 0.0
        %v3168 = vsel %vm3144, %v2490, 0.0
        %v3169 = vsel %vm3144, %v2491, 0.0
        %v3170 = vsel %vm3144, %v2492, 0.0
        %v3171 = vsel %vm3144, %v2493, 0.0
        %v3172 = vsel %vm3144, %v2494, 0.0
        %v3173 = vsel %vm3144, %v2495, 0.0
        %v3174 = vsel %vm3144, %v2496, 0.0
        %v3175 = vsel %vm3144, %v2497, 0.0
        %v3176 = vsel %vm3144, %v2498, 0.0
        %v3177 = vsel %vm3144, %v2499, 0.0
        %v3178 = vsel %vm3144, %v2500, 0.0
        %v3179 = vsel %vm3144, %v2501, 0.0
        %v3180 = vsel %vm3144, %v2502, 0.0
        %v3181 = vsel %vm3144, %v2503, 0.0
        %v3182 = vsel %vm3144, %v2504, 0.0
        %v3183 = vsel %vm3144, %v2505, 0.0
        %v3184 = vsel %vm3144, %v2506, 0.0
        %v3185 = vsel %vm3144, %v2507, 0.0
        %v3186 = vsel %vm3144, %v2508, 0.0
        %v3187 = vsel %vm3144, %v2509, 0.0
        %v3188 = vsel %vm3144, %v2510, 0.0
        %v3189 = vsel %vm3144, %v2511, 0.0
        %v3190 = vsel %vm3144, %v2512, 0.0
        %v3191 = vsel %vm3144, %v2513, 0.0
        %v3192 = vsel %vm3144, %v2514, 0.0
        %v3241 = vrot.slane %v3145, 1
        %v3242 = vrot.slane %v3146, 1
        %v3243 = vsel %vm2686, %v3241, %v3242
        %v3244 = vrot.slane %v3147, 1
        %v3245 = vsel %vm2686, %v3242, %v3244
        %v3246 = vrot.slane %v3148, 1
        %v3247 = vrot.slane %v3149, 1
        %v3248 = vsel %vm2686, %v3246, %v3247
        %v3249 = vrot.slane %v3150, 1
        %v3250 = vsel %vm2686, %v3247, %v3249
        %v3251 = vrot.slane %v3151, 1
        %v3252 = vrot.slane %v3152, 1
        %v3253 = vsel %vm2686, %v3251, %v3252
        %v3254 = vrot.slane %v3153, 1
        %v3255 = vsel %vm2686, %v3252, %v3254
        %v3256 = vrot.slane %v3154, 1
        %v3257 = vrot.slane %v3155, 1
        %v3258 = vsel %vm2686, %v3256, %v3257
        %v3259 = vrot.slane %v3156, 1
        %v3260 = vsel %vm2686, %v3257, %v3259
        %v3261 = vrot.slane %v3157, 1
        %v3262 = vrot.slane %v3158, 1
        %v3263 = vsel %vm2686, %v3261, %v3262
        %v3264 = vrot.slane %v3159, 1
        %v3265 = vsel %vm2686, %v3262, %v3264
        %v3266 = vrot.slane %v3160, 1
        %v3267 = vrot.slane %v3161, 1
        %v3268 = vsel %vm2686, %v3266, %v3267
        %v3269 = vrot.slane %v3162, 1
        %v3270 = vsel %vm2686, %v3267, %v3269
        %v3271 = vrot.slane %v3163, 1
        %v3272 = vrot.slane %v3164, 1
        %v3273 = vsel %vm2686, %v3271, %v3272
        %v3274 = vrot.slane %v3165, 1
        %v3275 = vsel %vm2686, %v3272, %v3274
        %v3276 = vrot.slane %v3166, 1
        %v3277 = vrot.slane %v3167, 1
        %v3278 = vsel %vm2686, %v3276, %v3277
        %v3279 = vrot.slane %v3168, 1
        %v3280 = vsel %vm2686, %v3277, %v3279
        %v3281 = vrot.slane %v3169, 1
        %v3282 = vrot.slane %v3170, 1
        %v3283 = vsel %vm2686, %v3281, %v3282
        %v3284 = vrot.slane %v3171, 1
        %v3285 = vsel %vm2686, %v3282, %v3284
        %v3286 = vrot.slane %v3172, 1
        %v3287 = vrot.slane %v3173, 1
        %v3288 = vsel %vm2686, %v3286, %v3287
        %v3289 = vrot.slane %v3174, 1
        %v3290 = vsel %vm2686, %v3287, %v3289
        %v3291 = vrot.slane %v3175, 1
        %v3292 = vrot.slane %v3176, 1
        %v3293 = vsel %vm2686, %v3291, %v3292
        %v3294 = vrot.slane %v3177, 1
        %v3295 = vsel %vm2686, %v3292, %v3294
        %v3296 = vrot.slane %v3178, 1
        %v3297 = vrot.slane %v3179, 1
        %v3298 = vsel %vm2686, %v3296, %v3297
        %v3299 = vrot.slane %v3180, 1
        %v3300 = vsel %vm2686, %v3297, %v3299
        %v3301 = vrot.slane %v3181, 1
        %v3302 = vrot.slane %v3182, 1
        %v3303 = vsel %vm2686, %v3301, %v3302
        %v3304 = vrot.slane %v3183, 1
        %v3305 = vsel %vm2686, %v3302, %v3304
        %v3306 = vrot.slane %v3184, 1
        %v3307 = vrot.slane %v3185, 1
        %v3308 = vsel %vm2686, %v3306, %v3307
        %v3309 = vrot.slane %v3186, 1
        %v3310 = vsel %vm2686, %v3307, %v3309
        %v3311 = vrot.slane %v3187, 1
        %v3312 = vrot.slane %v3188, 1
        %v3313 = vsel %vm2686, %v3311, %v3312
        %v3314 = vrot.slane %v3189, 1
        %v3315 = vsel %vm2686, %v3312, %v3314
        %v3316 = vrot.slane %v3190, 1
        %v3317 = vrot.slane %v3191, 1
        %v3318 = vsel %vm2686, %v3316, %v3317
        %v3319 = vrot.slane %v3192, 1
        %v3320 = vsel %vm2686, %v3317, %v3319
        %v3353 = vadd.f32 %v3110, %v3243
        %v3354 = vadd.f32 %v3111, %v3245
        %v3355 = vadd.f32 %v3112, %v3248
        %v3356 = vadd.f32 %v3113, %v3250
        %v3357 = vadd.f32 %v3114, %v3253
        %v3358 = vadd.f32 %v3115, %v3255
        %v3359 = vadd.f32 %v3116, %v3258
        %v3360 = vadd.f32 %v3117, %v3260
        %v3361 = vadd.f32 %v3118, %v3263
        %v3362 = vadd.f32 %v3119, %v3265
        %v3363 = vadd.f32 %v3120, %v3268
        %v3364 = vadd.f32 %v3121, %v3270
        %v3365 = vadd.f32 %v3122, %v3273
        %v3366 = vadd.f32 %v3123, %v3275
        %v3367 = vadd.f32 %v3124, %v3278
        %v3368 = vadd.f32 %v3125, %v3280
        %v3369 = vadd.f32 %v3126, %v3283
        %v3370 = vadd.f32 %v3127, %v3285
        %v3371 = vadd.f32 %v3128, %v3288
        %v3372 = vadd.f32 %v3129, %v3290
        %v3373 = vadd.f32 %v3130, %v3293
        %v3374 = vadd.f32 %v3131, %v3295
        %v3375 = vadd.f32 %v3132, %v3298
        %v3376 = vadd.f32 %v3133, %v3300
        %v3377 = vadd.f32 %v3134, %v3303
        %v3378 = vadd.f32 %v3135, %v3305
        %v3379 = vadd.f32 %v3136, %v3308
        %v3380 = vadd.f32 %v3137, %v3310
        %v3381 = vadd.f32 %v3138, %v3313
        %v3382 = vadd.f32 %v3139, %v3315
        %v3383 = vadd.f32 %v3140, %v3318
        %v3384 = vadd.f32 %v3141, %v3320
        %vm3385 = vcmp.eq.s32.totalorder %v2519, 5
        %v3386 = vsel %vm3385, 1, 0
        %vm3387 = vcmp.eq.s32.totalorder %v3386, 1
        %v3388 = vsel %vm3387, %v2467, 0.0
        %v3389 = vsel %vm3387, %v2468, 0.0
        %v3390 = vsel %vm3387, %v2469, 0.0
        %v3391 = vsel %vm3387, %v2470, 0.0
        %v3392 = vsel %vm3387, %v2471, 0.0
        %v3393 = vsel %vm3387, %v2472, 0.0
        %v3394 = vsel %vm3387, %v2473, 0.0
        %v3395 = vsel %vm3387, %v2474, 0.0
        %v3396 = vsel %vm3387, %v2475, 0.0
        %v3397 = vsel %vm3387, %v2476, 0.0
        %v3398 = vsel %vm3387, %v2477, 0.0
        %v3399 = vsel %vm3387, %v2478, 0.0
        %v3400 = vsel %vm3387, %v2479, 0.0
        %v3401 = vsel %vm3387, %v2480, 0.0
        %v3402 = vsel %vm3387, %v2481, 0.0
        %v3403 = vsel %vm3387, %v2482, 0.0
        %v3404 = vsel %vm3387, %v2483, 0.0
        %v3405 = vsel %vm3387, %v2484, 0.0
        %v3406 = vsel %vm3387, %v2485, 0.0
        %v3407 = vsel %vm3387, %v2486, 0.0
        %v3408 = vsel %vm3387, %v2487, 0.0
        %v3409 = vsel %vm3387, %v2488, 0.0
        %v3410 = vsel %vm3387, %v2489, 0.0
        %v3411 = vsel %vm3387, %v2490, 0.0
        %v3412 = vsel %vm3387, %v2491, 0.0
        %v3413 = vsel %vm3387, %v2492, 0.0
        %v3414 = vsel %vm3387, %v2493, 0.0
        %v3415 = vsel %vm3387, %v2494, 0.0
        %v3416 = vsel %vm3387, %v2495, 0.0
        %v3417 = vsel %vm3387, %v2496, 0.0
        %v3418 = vsel %vm3387, %v2497, 0.0
        %v3419 = vsel %vm3387, %v2498, 0.0
        %v3420 = vsel %vm3387, %v2499, 0.0
        %v3421 = vsel %vm3387, %v2500, 0.0
        %v3422 = vsel %vm3387, %v2501, 0.0
        %v3423 = vsel %vm3387, %v2502, 0.0
        %v3424 = vsel %vm3387, %v2503, 0.0
        %v3425 = vsel %vm3387, %v2504, 0.0
        %v3426 = vsel %vm3387, %v2505, 0.0
        %v3427 = vsel %vm3387, %v2506, 0.0
        %v3428 = vsel %vm3387, %v2507, 0.0
        %v3429 = vsel %vm3387, %v2508, 0.0
        %v3430 = vsel %vm3387, %v2509, 0.0
        %v3431 = vsel %vm3387, %v2510, 0.0
        %v3432 = vsel %vm3387, %v2511, 0.0
        %v3433 = vsel %vm3387, %v2512, 0.0
        %v3434 = vsel %vm3387, %v2513, 0.0
        %v3435 = vsel %vm3387, %v2514, 0.0
        %v3484 = vrot.slane %v3388, 2
        %v3485 = vrot.slane %v3389, 2
        %v3486 = vsel %vm2930, %v3484, %v3485
        %v3487 = vrot.slane %v3390, 2
        %v3488 = vsel %vm2930, %v3485, %v3487
        %v3489 = vrot.slane %v3391, 2
        %v3490 = vrot.slane %v3392, 2
        %v3491 = vsel %vm2930, %v3489, %v3490
        %v3492 = vrot.slane %v3393, 2
        %v3493 = vsel %vm2930, %v3490, %v3492
        %v3494 = vrot.slane %v3394, 2
        %v3495 = vrot.slane %v3395, 2
        %v3496 = vsel %vm2930, %v3494, %v3495
        %v3497 = vrot.slane %v3396, 2
        %v3498 = vsel %vm2930, %v3495, %v3497
        %v3499 = vrot.slane %v3397, 2
        %v3500 = vrot.slane %v3398, 2
        %v3501 = vsel %vm2930, %v3499, %v3500
        %v3502 = vrot.slane %v3399, 2
        %v3503 = vsel %vm2930, %v3500, %v3502
        %v3504 = vrot.slane %v3400, 2
        %v3505 = vrot.slane %v3401, 2
        %v3506 = vsel %vm2930, %v3504, %v3505
        %v3507 = vrot.slane %v3402, 2
        %v3508 = vsel %vm2930, %v3505, %v3507
        %v3509 = vrot.slane %v3403, 2
        %v3510 = vrot.slane %v3404, 2
        %v3511 = vsel %vm2930, %v3509, %v3510
        %v3512 = vrot.slane %v3405, 2
        %v3513 = vsel %vm2930, %v3510, %v3512
        %v3514 = vrot.slane %v3406, 2
        %v3515 = vrot.slane %v3407, 2
        %v3516 = vsel %vm2930, %v3514, %v3515
        %v3517 = vrot.slane %v3408, 2
        %v3518 = vsel %vm2930, %v3515, %v3517
        %v3519 = vrot.slane %v3409, 2
        %v3520 = vrot.slane %v3410, 2
        %v3521 = vsel %vm2930, %v3519, %v3520
        %v3522 = vrot.slane %v3411, 2
        %v3523 = vsel %vm2930, %v3520, %v3522
        %v3524 = vrot.slane %v3412, 2
        %v3525 = vrot.slane %v3413, 2
        %v3526 = vsel %vm2930, %v3524, %v3525
        %v3527 = vrot.slane %v3414, 2
        %v3528 = vsel %vm2930, %v3525, %v3527
        %v3529 = vrot.slane %v3415, 2
        %v3530 = vrot.slane %v3416, 2
        %v3531 = vsel %vm2930, %v3529, %v3530
        %v3532 = vrot.slane %v3417, 2
        %v3533 = vsel %vm2930, %v3530, %v3532
        %v3534 = vrot.slane %v3418, 2
        %v3535 = vrot.slane %v3419, 2
        %v3536 = vsel %vm2930, %v3534, %v3535
        %v3537 = vrot.slane %v3420, 2
        %v3538 = vsel %vm2930, %v3535, %v3537
        %v3539 = vrot.slane %v3421, 2
        %v3540 = vrot.slane %v3422, 2
        %v3541 = vsel %vm2930, %v3539, %v3540
        %v3542 = vrot.slane %v3423, 2
        %v3543 = vsel %vm2930, %v3540, %v3542
        %v3544 = vrot.slane %v3424, 2
        %v3545 = vrot.slane %v3425, 2
        %v3546 = vsel %vm2930, %v3544, %v3545
        %v3547 = vrot.slane %v3426, 2
        %v3548 = vsel %vm2930, %v3545, %v3547
        %v3549 = vrot.slane %v3427, 2
        %v3550 = vrot.slane %v3428, 2
        %v3551 = vsel %vm2930, %v3549, %v3550
        %v3552 = vrot.slane %v3429, 2
        %v3553 = vsel %vm2930, %v3550, %v3552
        %v3554 = vrot.slane %v3430, 2
        %v3555 = vrot.slane %v3431, 2
        %v3556 = vsel %vm2930, %v3554, %v3555
        %v3557 = vrot.slane %v3432, 2
        %v3558 = vsel %vm2930, %v3555, %v3557
        %v3559 = vrot.slane %v3433, 2
        %v3560 = vrot.slane %v3434, 2
        %v3561 = vsel %vm2930, %v3559, %v3560
        %v3562 = vrot.slane %v3435, 2
        %v3563 = vsel %vm2930, %v3560, %v3562
        %v3596 = vadd.f32 %v3353, %v3486
        %v3597 = vadd.f32 %v3354, %v3488
        %v3598 = vadd.f32 %v3355, %v3491
        %v3599 = vadd.f32 %v3356, %v3493
        %v3600 = vadd.f32 %v3357, %v3496
        %v3601 = vadd.f32 %v3358, %v3498
        %v3602 = vadd.f32 %v3359, %v3501
        %v3603 = vadd.f32 %v3360, %v3503
        %v3604 = vadd.f32 %v3361, %v3506
        %v3605 = vadd.f32 %v3362, %v3508
        %v3606 = vadd.f32 %v3363, %v3511
        %v3607 = vadd.f32 %v3364, %v3513
        %v3608 = vadd.f32 %v3365, %v3516
        %v3609 = vadd.f32 %v3366, %v3518
        %v3610 = vadd.f32 %v3367, %v3521
        %v3611 = vadd.f32 %v3368, %v3523
        %v3612 = vadd.f32 %v3369, %v3526
        %v3613 = vadd.f32 %v3370, %v3528
        %v3614 = vadd.f32 %v3371, %v3531
        %v3615 = vadd.f32 %v3372, %v3533
        %v3616 = vadd.f32 %v3373, %v3536
        %v3617 = vadd.f32 %v3374, %v3538
        %v3618 = vadd.f32 %v3375, %v3541
        %v3619 = vadd.f32 %v3376, %v3543
        %v3620 = vadd.f32 %v3377, %v3546
        %v3621 = vadd.f32 %v3378, %v3548
        %v3622 = vadd.f32 %v3379, %v3551
        %v3623 = vadd.f32 %v3380, %v3553
        %v3624 = vadd.f32 %v3381, %v3556
        %v3625 = vadd.f32 %v3382, %v3558
        %v3626 = vadd.f32 %v3383, %v3561
        %v3627 = vadd.f32 %v3384, %v3563
        %vm3628 = vcmp.eq.s32.totalorder %v2519, 6
        %v3629 = vsel %vm3628, 1, 0
        %vm3630 = vcmp.eq.s32.totalorder %v3629, 1
        %v3631 = vsel %vm3630, %v2470, 0.0
        %v3632 = vsel %vm3630, %v2471, 0.0
        %v3633 = vsel %vm3630, %v2473, 0.0
        %v3634 = vsel %vm3630, %v2474, 0.0
        %v3635 = vsel %vm3630, %v2476, 0.0
        %v3636 = vsel %vm3630, %v2477, 0.0
        %v3637 = vsel %vm3630, %v2479, 0.0
        %v3638 = vsel %vm3630, %v2480, 0.0
        %v3639 = vsel %vm3630, %v2482, 0.0
        %v3640 = vsel %vm3630, %v2483, 0.0
        %v3641 = vsel %vm3630, %v2485, 0.0
        %v3642 = vsel %vm3630, %v2486, 0.0
        %v3643 = vsel %vm3630, %v2488, 0.0
        %v3644 = vsel %vm3630, %v2489, 0.0
        %v3645 = vsel %vm3630, %v2491, 0.0
        %v3646 = vsel %vm3630, %v2492, 0.0
        %v3647 = vsel %vm3630, %v2494, 0.0
        %v3648 = vsel %vm3630, %v2495, 0.0
        %v3649 = vsel %vm3630, %v2497, 0.0
        %v3650 = vsel %vm3630, %v2498, 0.0
        %v3651 = vsel %vm3630, %v2500, 0.0
        %v3652 = vsel %vm3630, %v2501, 0.0
        %v3653 = vsel %vm3630, %v2503, 0.0
        %v3654 = vsel %vm3630, %v2504, 0.0
        %v3655 = vsel %vm3630, %v2506, 0.0
        %v3656 = vsel %vm3630, %v2507, 0.0
        %v3657 = vsel %vm3630, %v2509, 0.0
        %v3658 = vsel %vm3630, %v2510, 0.0
        %v3659 = vsel %vm3630, %v2512, 0.0
        %v3660 = vsel %vm3630, %v2513, 0.0
        %v3661 = vsel %vm3630, %v2515, 0.0
        %v3662 = vsel %vm3630, %v2516, 0.0
        %v3663 = vadd.f32 %v3596, %v3631
        %v3664 = vadd.f32 %v3597, %v3632
        %v3665 = vadd.f32 %v3598, %v3633
        %v3666 = vadd.f32 %v3599, %v3634
        %v3667 = vadd.f32 %v3600, %v3635
        %v3668 = vadd.f32 %v3601, %v3636
        %v3669 = vadd.f32 %v3602, %v3637
        %v3670 = vadd.f32 %v3603, %v3638
        %v3671 = vadd.f32 %v3604, %v3639
        %v3672 = vadd.f32 %v3605, %v3640
        %v3673 = vadd.f32 %v3606, %v3641
        %v3674 = vadd.f32 %v3607, %v3642
        %v3675 = vadd.f32 %v3608, %v3643
        %v3676 = vadd.f32 %v3609, %v3644
        %v3677 = vadd.f32 %v3610, %v3645
        %v3678 = vadd.f32 %v3611, %v3646
        %v3679 = vadd.f32 %v3612, %v3647
        %v3680 = vadd.f32 %v3613, %v3648
        %v3681 = vadd.f32 %v3614, %v3649
        %v3682 = vadd.f32 %v3615, %v3650
        %v3683 = vadd.f32 %v3616, %v3651
        %v3684 = vadd.f32 %v3617, %v3652
        %v3685 = vadd.f32 %v3618, %v3653
        %v3686 = vadd.f32 %v3619, %v3654
        %v3687 = vadd.f32 %v3620, %v3655
        %v3688 = vadd.f32 %v3621, %v3656
        %v3689 = vadd.f32 %v3622, %v3657
        %v3690 = vadd.f32 %v3623, %v3658
        %v3691 = vadd.f32 %v3624, %v3659
        %v3692 = vadd.f32 %v3625, %v3660
        %v3693 = vadd.f32 %v3626, %v3661
        %v3694 = vadd.f32 %v3627, %v3662
        %vm3695 = vcmp.eq.s32.totalorder %v2519, 7
        %v3696 = vsel %vm3695, 1, 0
        %vm3697 = vcmp.eq.s32.totalorder %v3696, 1
        %v3698 = vsel %vm3697, %v2470, 0.0
        %v3699 = vsel %vm3697, %v2471, 0.0
        %v3700 = vsel %vm3697, %v2472, 0.0
        %v3701 = vsel %vm3697, %v2473, 0.0
        %v3702 = vsel %vm3697, %v2474, 0.0
        %v3703 = vsel %vm3697, %v2475, 0.0
        %v3704 = vsel %vm3697, %v2476, 0.0
        %v3705 = vsel %vm3697, %v2477, 0.0
        %v3706 = vsel %vm3697, %v2478, 0.0
        %v3707 = vsel %vm3697, %v2479, 0.0
        %v3708 = vsel %vm3697, %v2480, 0.0
        %v3709 = vsel %vm3697, %v2481, 0.0
        %v3710 = vsel %vm3697, %v2482, 0.0
        %v3711 = vsel %vm3697, %v2483, 0.0
        %v3712 = vsel %vm3697, %v2484, 0.0
        %v3713 = vsel %vm3697, %v2485, 0.0
        %v3714 = vsel %vm3697, %v2486, 0.0
        %v3715 = vsel %vm3697, %v2487, 0.0
        %v3716 = vsel %vm3697, %v2488, 0.0
        %v3717 = vsel %vm3697, %v2489, 0.0
        %v3718 = vsel %vm3697, %v2490, 0.0
        %v3719 = vsel %vm3697, %v2491, 0.0
        %v3720 = vsel %vm3697, %v2492, 0.0
        %v3721 = vsel %vm3697, %v2493, 0.0
        %v3722 = vsel %vm3697, %v2494, 0.0
        %v3723 = vsel %vm3697, %v2495, 0.0
        %v3724 = vsel %vm3697, %v2496, 0.0
        %v3725 = vsel %vm3697, %v2497, 0.0
        %v3726 = vsel %vm3697, %v2498, 0.0
        %v3727 = vsel %vm3697, %v2499, 0.0
        %v3728 = vsel %vm3697, %v2500, 0.0
        %v3729 = vsel %vm3697, %v2501, 0.0
        %v3730 = vsel %vm3697, %v2502, 0.0
        %v3731 = vsel %vm3697, %v2503, 0.0
        %v3732 = vsel %vm3697, %v2504, 0.0
        %v3733 = vsel %vm3697, %v2505, 0.0
        %v3734 = vsel %vm3697, %v2506, 0.0
        %v3735 = vsel %vm3697, %v2507, 0.0
        %v3736 = vsel %vm3697, %v2508, 0.0
        %v3737 = vsel %vm3697, %v2509, 0.0
        %v3738 = vsel %vm3697, %v2510, 0.0
        %v3739 = vsel %vm3697, %v2511, 0.0
        %v3740 = vsel %vm3697, %v2512, 0.0
        %v3741 = vsel %vm3697, %v2513, 0.0
        %v3742 = vsel %vm3697, %v2514, 0.0
        %v3743 = vsel %vm3697, %v2515, 0.0
        %v3744 = vsel %vm3697, %v2516, 0.0
        %v3745 = vsel %vm3697, %v2517, 0.0
        %v3794 = vrot.slane %v3698, 1
        %v3795 = vrot.slane %v3699, 1
        %v3796 = vsel %vm2686, %v3794, %v3795
        %v3797 = vrot.slane %v3700, 1
        %v3798 = vsel %vm2686, %v3795, %v3797
        %v3799 = vrot.slane %v3701, 1
        %v3800 = vrot.slane %v3702, 1
        %v3801 = vsel %vm2686, %v3799, %v3800
        %v3802 = vrot.slane %v3703, 1
        %v3803 = vsel %vm2686, %v3800, %v3802
        %v3804 = vrot.slane %v3704, 1
        %v3805 = vrot.slane %v3705, 1
        %v3806 = vsel %vm2686, %v3804, %v3805
        %v3807 = vrot.slane %v3706, 1
        %v3808 = vsel %vm2686, %v3805, %v3807
        %v3809 = vrot.slane %v3707, 1
        %v3810 = vrot.slane %v3708, 1
        %v3811 = vsel %vm2686, %v3809, %v3810
        %v3812 = vrot.slane %v3709, 1
        %v3813 = vsel %vm2686, %v3810, %v3812
        %v3814 = vrot.slane %v3710, 1
        %v3815 = vrot.slane %v3711, 1
        %v3816 = vsel %vm2686, %v3814, %v3815
        %v3817 = vrot.slane %v3712, 1
        %v3818 = vsel %vm2686, %v3815, %v3817
        %v3819 = vrot.slane %v3713, 1
        %v3820 = vrot.slane %v3714, 1
        %v3821 = vsel %vm2686, %v3819, %v3820
        %v3822 = vrot.slane %v3715, 1
        %v3823 = vsel %vm2686, %v3820, %v3822
        %v3824 = vrot.slane %v3716, 1
        %v3825 = vrot.slane %v3717, 1
        %v3826 = vsel %vm2686, %v3824, %v3825
        %v3827 = vrot.slane %v3718, 1
        %v3828 = vsel %vm2686, %v3825, %v3827
        %v3829 = vrot.slane %v3719, 1
        %v3830 = vrot.slane %v3720, 1
        %v3831 = vsel %vm2686, %v3829, %v3830
        %v3832 = vrot.slane %v3721, 1
        %v3833 = vsel %vm2686, %v3830, %v3832
        %v3834 = vrot.slane %v3722, 1
        %v3835 = vrot.slane %v3723, 1
        %v3836 = vsel %vm2686, %v3834, %v3835
        %v3837 = vrot.slane %v3724, 1
        %v3838 = vsel %vm2686, %v3835, %v3837
        %v3839 = vrot.slane %v3725, 1
        %v3840 = vrot.slane %v3726, 1
        %v3841 = vsel %vm2686, %v3839, %v3840
        %v3842 = vrot.slane %v3727, 1
        %v3843 = vsel %vm2686, %v3840, %v3842
        %v3844 = vrot.slane %v3728, 1
        %v3845 = vrot.slane %v3729, 1
        %v3846 = vsel %vm2686, %v3844, %v3845
        %v3847 = vrot.slane %v3730, 1
        %v3848 = vsel %vm2686, %v3845, %v3847
        %v3849 = vrot.slane %v3731, 1
        %v3850 = vrot.slane %v3732, 1
        %v3851 = vsel %vm2686, %v3849, %v3850
        %v3852 = vrot.slane %v3733, 1
        %v3853 = vsel %vm2686, %v3850, %v3852
        %v3854 = vrot.slane %v3734, 1
        %v3855 = vrot.slane %v3735, 1
        %v3856 = vsel %vm2686, %v3854, %v3855
        %v3857 = vrot.slane %v3736, 1
        %v3858 = vsel %vm2686, %v3855, %v3857
        %v3859 = vrot.slane %v3737, 1
        %v3860 = vrot.slane %v3738, 1
        %v3861 = vsel %vm2686, %v3859, %v3860
        %v3862 = vrot.slane %v3739, 1
        %v3863 = vsel %vm2686, %v3860, %v3862
        %v3864 = vrot.slane %v3740, 1
        %v3865 = vrot.slane %v3741, 1
        %v3866 = vsel %vm2686, %v3864, %v3865
        %v3867 = vrot.slane %v3742, 1
        %v3868 = vsel %vm2686, %v3865, %v3867
        %v3869 = vrot.slane %v3743, 1
        %v3870 = vrot.slane %v3744, 1
        %v3871 = vsel %vm2686, %v3869, %v3870
        %v3872 = vrot.slane %v3745, 1
        %v3873 = vsel %vm2686, %v3870, %v3872
        %v3906 = vadd.f32 %v3663, %v3796
        %v3907 = vadd.f32 %v3664, %v3798
        %v3908 = vadd.f32 %v3665, %v3801
        %v3909 = vadd.f32 %v3666, %v3803
        %v3910 = vadd.f32 %v3667, %v3806
        %v3911 = vadd.f32 %v3668, %v3808
        %v3912 = vadd.f32 %v3669, %v3811
        %v3913 = vadd.f32 %v3670, %v3813
        %v3914 = vadd.f32 %v3671, %v3816
        %v3915 = vadd.f32 %v3672, %v3818
        %v3916 = vadd.f32 %v3673, %v3821
        %v3917 = vadd.f32 %v3674, %v3823
        %v3918 = vadd.f32 %v3675, %v3826
        %v3919 = vadd.f32 %v3676, %v3828
        %v3920 = vadd.f32 %v3677, %v3831
        %v3921 = vadd.f32 %v3678, %v3833
        %v3922 = vadd.f32 %v3679, %v3836
        %v3923 = vadd.f32 %v3680, %v3838
        %v3924 = vadd.f32 %v3681, %v3841
        %v3925 = vadd.f32 %v3682, %v3843
        %v3926 = vadd.f32 %v3683, %v3846
        %v3927 = vadd.f32 %v3684, %v3848
        %v3928 = vadd.f32 %v3685, %v3851
        %v3929 = vadd.f32 %v3686, %v3853
        %v3930 = vadd.f32 %v3687, %v3856
        %v3931 = vadd.f32 %v3688, %v3858
        %v3932 = vadd.f32 %v3689, %v3861
        %v3933 = vadd.f32 %v3690, %v3863
        %v3934 = vadd.f32 %v3691, %v3866
        %v3935 = vadd.f32 %v3692, %v3868
        %v3936 = vadd.f32 %v3693, %v3871
        %v3937 = vadd.f32 %v3694, %v3873
        %vm3938 = vcmp.eq.s32.totalorder %v2519, 8
        %v3939 = vsel %vm3938, 1, 0
        %vm3940 = vcmp.eq.s32.totalorder %v3939, 1
        %v3941 = vsel %vm3940, %v2470, 0.0
        %v3942 = vsel %vm3940, %v2471, 0.0
        %v3943 = vsel %vm3940, %v2472, 0.0
        %v3944 = vsel %vm3940, %v2473, 0.0
        %v3945 = vsel %vm3940, %v2474, 0.0
        %v3946 = vsel %vm3940, %v2475, 0.0
        %v3947 = vsel %vm3940, %v2476, 0.0
        %v3948 = vsel %vm3940, %v2477, 0.0
        %v3949 = vsel %vm3940, %v2478, 0.0
        %v3950 = vsel %vm3940, %v2479, 0.0
        %v3951 = vsel %vm3940, %v2480, 0.0
        %v3952 = vsel %vm3940, %v2481, 0.0
        %v3953 = vsel %vm3940, %v2482, 0.0
        %v3954 = vsel %vm3940, %v2483, 0.0
        %v3955 = vsel %vm3940, %v2484, 0.0
        %v3956 = vsel %vm3940, %v2485, 0.0
        %v3957 = vsel %vm3940, %v2486, 0.0
        %v3958 = vsel %vm3940, %v2487, 0.0
        %v3959 = vsel %vm3940, %v2488, 0.0
        %v3960 = vsel %vm3940, %v2489, 0.0
        %v3961 = vsel %vm3940, %v2490, 0.0
        %v3962 = vsel %vm3940, %v2491, 0.0
        %v3963 = vsel %vm3940, %v2492, 0.0
        %v3964 = vsel %vm3940, %v2493, 0.0
        %v3965 = vsel %vm3940, %v2494, 0.0
        %v3966 = vsel %vm3940, %v2495, 0.0
        %v3967 = vsel %vm3940, %v2496, 0.0
        %v3968 = vsel %vm3940, %v2497, 0.0
        %v3969 = vsel %vm3940, %v2498, 0.0
        %v3970 = vsel %vm3940, %v2499, 0.0
        %v3971 = vsel %vm3940, %v2500, 0.0
        %v3972 = vsel %vm3940, %v2501, 0.0
        %v3973 = vsel %vm3940, %v2502, 0.0
        %v3974 = vsel %vm3940, %v2503, 0.0
        %v3975 = vsel %vm3940, %v2504, 0.0
        %v3976 = vsel %vm3940, %v2505, 0.0
        %v3977 = vsel %vm3940, %v2506, 0.0
        %v3978 = vsel %vm3940, %v2507, 0.0
        %v3979 = vsel %vm3940, %v2508, 0.0
        %v3980 = vsel %vm3940, %v2509, 0.0
        %v3981 = vsel %vm3940, %v2510, 0.0
        %v3982 = vsel %vm3940, %v2511, 0.0
        %v3983 = vsel %vm3940, %v2512, 0.0
        %v3984 = vsel %vm3940, %v2513, 0.0
        %v3985 = vsel %vm3940, %v2514, 0.0
        %v3986 = vsel %vm3940, %v2515, 0.0
        %v3987 = vsel %vm3940, %v2516, 0.0
        %v3988 = vsel %vm3940, %v2517, 0.0
        %v4037 = vrot.slane %v3941, 2
        %v4038 = vrot.slane %v3942, 2
        %v4039 = vsel %vm2930, %v4037, %v4038
        %v4040 = vrot.slane %v3943, 2
        %v4041 = vsel %vm2930, %v4038, %v4040
        %v4042 = vrot.slane %v3944, 2
        %v4043 = vrot.slane %v3945, 2
        %v4044 = vsel %vm2930, %v4042, %v4043
        %v4045 = vrot.slane %v3946, 2
        %v4046 = vsel %vm2930, %v4043, %v4045
        %v4047 = vrot.slane %v3947, 2
        %v4048 = vrot.slane %v3948, 2
        %v4049 = vsel %vm2930, %v4047, %v4048
        %v4050 = vrot.slane %v3949, 2
        %v4051 = vsel %vm2930, %v4048, %v4050
        %v4052 = vrot.slane %v3950, 2
        %v4053 = vrot.slane %v3951, 2
        %v4054 = vsel %vm2930, %v4052, %v4053
        %v4055 = vrot.slane %v3952, 2
        %v4056 = vsel %vm2930, %v4053, %v4055
        %v4057 = vrot.slane %v3953, 2
        %v4058 = vrot.slane %v3954, 2
        %v4059 = vsel %vm2930, %v4057, %v4058
        %v4060 = vrot.slane %v3955, 2
        %v4061 = vsel %vm2930, %v4058, %v4060
        %v4062 = vrot.slane %v3956, 2
        %v4063 = vrot.slane %v3957, 2
        %v4064 = vsel %vm2930, %v4062, %v4063
        %v4065 = vrot.slane %v3958, 2
        %v4066 = vsel %vm2930, %v4063, %v4065
        %v4067 = vrot.slane %v3959, 2
        %v4068 = vrot.slane %v3960, 2
        %v4069 = vsel %vm2930, %v4067, %v4068
        %v4070 = vrot.slane %v3961, 2
        %v4071 = vsel %vm2930, %v4068, %v4070
        %v4072 = vrot.slane %v3962, 2
        %v4073 = vrot.slane %v3963, 2
        %v4074 = vsel %vm2930, %v4072, %v4073
        %v4075 = vrot.slane %v3964, 2
        %v4076 = vsel %vm2930, %v4073, %v4075
        %v4077 = vrot.slane %v3965, 2
        %v4078 = vrot.slane %v3966, 2
        %v4079 = vsel %vm2930, %v4077, %v4078
        %v4080 = vrot.slane %v3967, 2
        %v4081 = vsel %vm2930, %v4078, %v4080
        %v4082 = vrot.slane %v3968, 2
        %v4083 = vrot.slane %v3969, 2
        %v4084 = vsel %vm2930, %v4082, %v4083
        %v4085 = vrot.slane %v3970, 2
        %v4086 = vsel %vm2930, %v4083, %v4085
        %v4087 = vrot.slane %v3971, 2
        %v4088 = vrot.slane %v3972, 2
        %v4089 = vsel %vm2930, %v4087, %v4088
        %v4090 = vrot.slane %v3973, 2
        %v4091 = vsel %vm2930, %v4088, %v4090
        %v4092 = vrot.slane %v3974, 2
        %v4093 = vrot.slane %v3975, 2
        %v4094 = vsel %vm2930, %v4092, %v4093
        %v4095 = vrot.slane %v3976, 2
        %v4096 = vsel %vm2930, %v4093, %v4095
        %v4097 = vrot.slane %v3977, 2
        %v4098 = vrot.slane %v3978, 2
        %v4099 = vsel %vm2930, %v4097, %v4098
        %v4100 = vrot.slane %v3979, 2
        %v4101 = vsel %vm2930, %v4098, %v4100
        %v4102 = vrot.slane %v3980, 2
        %v4103 = vrot.slane %v3981, 2
        %v4104 = vsel %vm2930, %v4102, %v4103
        %v4105 = vrot.slane %v3982, 2
        %v4106 = vsel %vm2930, %v4103, %v4105
        %v4107 = vrot.slane %v3983, 2
        %v4108 = vrot.slane %v3984, 2
        %v4109 = vsel %vm2930, %v4107, %v4108
        %v4110 = vrot.slane %v3985, 2
        %v4111 = vsel %vm2930, %v4108, %v4110
        %v4112 = vrot.slane %v3986, 2
        %v4113 = vrot.slane %v3987, 2
        %v4114 = vsel %vm2930, %v4112, %v4113
        %v4115 = vrot.slane %v3988, 2
        %v4116 = vsel %vm2930, %v4113, %v4115
        %v4149 = vadd.f32 %v3906, %v4039
        %v4150 = vadd.f32 %v3907, %v4041
        %v4151 = vadd.f32 %v3908, %v4044
        %v4152 = vadd.f32 %v3909, %v4046
        %v4153 = vadd.f32 %v3910, %v4049
        %v4154 = vadd.f32 %v3911, %v4051
        %v4155 = vadd.f32 %v3912, %v4054
        %v4156 = vadd.f32 %v3913, %v4056
        %v4157 = vadd.f32 %v3914, %v4059
        %v4158 = vadd.f32 %v3915, %v4061
        %v4159 = vadd.f32 %v3916, %v4064
        %v4160 = vadd.f32 %v3917, %v4066
        %v4161 = vadd.f32 %v3918, %v4069
        %v4162 = vadd.f32 %v3919, %v4071
        %v4163 = vadd.f32 %v3920, %v4074
        %v4164 = vadd.f32 %v3921, %v4076
        %v4165 = vadd.f32 %v3922, %v4079
        %v4166 = vadd.f32 %v3923, %v4081
        %v4167 = vadd.f32 %v3924, %v4084
        %v4168 = vadd.f32 %v3925, %v4086
        %v4169 = vadd.f32 %v3926, %v4089
        %v4170 = vadd.f32 %v3927, %v4091
        %v4171 = vadd.f32 %v3928, %v4094
        %v4172 = vadd.f32 %v3929, %v4096
        %v4173 = vadd.f32 %v3930, %v4099
        %v4174 = vadd.f32 %v3931, %v4101
        %v4175 = vadd.f32 %v3932, %v4104
        %v4176 = vadd.f32 %v3933, %v4106
        %v4177 = vadd.f32 %v3934, %v4109
        %v4178 = vadd.f32 %v3935, %v4111
        %v4179 = vadd.f32 %v3936, %v4114
        %v4180 = vadd.f32 %v3937, %v4116
        %v4181 = vsel %vm2422, %v4149, 0.0
        %4182 = vadd.xlane.f32.xlu0 %v4181
        %v4183 = vpop.xlane.xlu0 %4182
        %v4184 = vsel %vm2422, %v4150, 0.0
        %4185 = vadd.xlane.f32.xlu0 %v4184
        %v4186 = vpop.xlane.xlu0 %4185
        %v4187 = vsel %vm2422, %v4151, 0.0
        %4188 = vadd.xlane.f32.xlu0 %v4187
        %v4189 = vpop.xlane.xlu0 %4188
        %v4190 = vsel %vm2422, %v4152, 0.0
        %4191 = vadd.xlane.f32.xlu0 %v4190
        %v4192 = vpop.xlane.xlu0 %4191
        %v4193 = vsel %vm2422, %v4153, 0.0
        %4194 = vadd.xlane.f32.xlu0 %v4193
        %v4195 = vpop.xlane.xlu0 %4194
        %v4196 = vsel %vm2422, %v4154, 0.0
        %4197 = vadd.xlane.f32.xlu0 %v4196
        %v4198 = vpop.xlane.xlu0 %4197
        %v4199 = vsel %vm2422, %v4155, 0.0
        %4200 = vadd.xlane.f32.xlu0 %v4199
        %v4201 = vpop.xlane.xlu0 %4200
        %v4202 = vsel %vm2422, %v4156, 0.0
        %4203 = vadd.xlane.f32.xlu0 %v4202
        %v4204 = vpop.xlane.xlu0 %4203
        %v4205 = vsel %vm2422, %v4157, 0.0
        %4206 = vadd.xlane.f32.xlu0 %v4205
        %v4207 = vpop.xlane.xlu0 %4206
        %v4208 = vsel %vm2422, %v4158, 0.0
        %4209 = vadd.xlane.f32.xlu0 %v4208
        %v4210 = vpop.xlane.xlu0 %4209
        %v4211 = vsel %vm2422, %v4159, 0.0
        %4212 = vadd.xlane.f32.xlu0 %v4211
        %v4213 = vpop.xlane.xlu0 %4212
        %v4214 = vsel %vm2422, %v4160, 0.0
        %4215 = vadd.xlane.f32.xlu0 %v4214
        %v4216 = vpop.xlane.xlu0 %4215
        %v4217 = vsel %vm2422, %v4161, 0.0
        %4218 = vadd.xlane.f32.xlu0 %v4217
        %v4219 = vpop.xlane.xlu0 %4218
        %v4220 = vsel %vm2422, %v4162, 0.0
        %4221 = vadd.xlane.f32.xlu0 %v4220
        %v4222 = vpop.xlane.xlu0 %4221
        %v4223 = vsel %vm2422, %v4163, 0.0
        %4224 = vadd.xlane.f32.xlu0 %v4223
        %v4225 = vpop.xlane.xlu0 %4224
        %v4226 = vsel %vm2422, %v4164, 0.0
        %4227 = vadd.xlane.f32.xlu0 %v4226
        %v4228 = vpop.xlane.xlu0 %4227
        %v4229 = vsel %vm2422, %v4165, 0.0
        %4230 = vadd.xlane.f32.xlu0 %v4229
        %v4231 = vpop.xlane.xlu0 %4230
        %v4232 = vsel %vm2422, %v4166, 0.0
        %4233 = vadd.xlane.f32.xlu0 %v4232
        %v4234 = vpop.xlane.xlu0 %4233
        %v4235 = vsel %vm2422, %v4167, 0.0
        %4236 = vadd.xlane.f32.xlu0 %v4235
        %v4237 = vpop.xlane.xlu0 %4236
        %v4238 = vsel %vm2422, %v4168, 0.0
        %4239 = vadd.xlane.f32.xlu0 %v4238
        %v4240 = vpop.xlane.xlu0 %4239
        %v4241 = vsel %vm2422, %v4169, 0.0
        %4242 = vadd.xlane.f32.xlu0 %v4241
        %v4243 = vpop.xlane.xlu0 %4242
        %v4244 = vsel %vm2422, %v4170, 0.0
        %4245 = vadd.xlane.f32.xlu0 %v4244
        %v4246 = vpop.xlane.xlu0 %4245
        %v4247 = vsel %vm2422, %v4171, 0.0
        %4248 = vadd.xlane.f32.xlu0 %v4247
        %v4249 = vpop.xlane.xlu0 %4248
        %v4250 = vsel %vm2422, %v4172, 0.0
        %4251 = vadd.xlane.f32.xlu0 %v4250
        %v4252 = vpop.xlane.xlu0 %4251
        %v4253 = vsel %vm2422, %v4173, 0.0
        %4254 = vadd.xlane.f32.xlu0 %v4253
        %v4255 = vpop.xlane.xlu0 %4254
        %v4256 = vsel %vm2422, %v4174, 0.0
        %4257 = vadd.xlane.f32.xlu0 %v4256
        %v4258 = vpop.xlane.xlu0 %4257
        %v4259 = vsel %vm2422, %v4175, 0.0
        %4260 = vadd.xlane.f32.xlu0 %v4259
        %v4261 = vpop.xlane.xlu0 %4260
        %v4262 = vsel %vm2422, %v4176, 0.0
        %4263 = vadd.xlane.f32.xlu0 %v4262
        %v4264 = vpop.xlane.xlu0 %4263
        %v4265 = vsel %vm2422, %v4177, 0.0
        %4266 = vadd.xlane.f32.xlu0 %v4265
        %v4267 = vpop.xlane.xlu0 %4266
        %v4268 = vsel %vm2422, %v4178, 0.0
        %4269 = vadd.xlane.f32.xlu0 %v4268
        %v4270 = vpop.xlane.xlu0 %4269
        %v4271 = vsel %vm2422, %v4179, 0.0
        %4272 = vadd.xlane.f32.xlu0 %v4271
        %v4273 = vpop.xlane.xlu0 %4272
        %v4274 = vsel %vm2422, %v4180, 0.0
        %4275 = vadd.xlane.f32.xlu0 %v4274
        %v4276 = vpop.xlane.xlu0 %4275
        %s4277 = sld [smem:[#allocation3]]
        %v4278 = vstv %s4277
        %v4279 = vadd.f32 %v4183, %v4278
        %v4280 = vadd.f32 %v4186, %v4278
        %v4281 = vadd.f32 %v4189, %v4278
        %v4282 = vadd.f32 %v4192, %v4278
        %v4283 = vadd.f32 %v4195, %v4278
        %v4284 = vadd.f32 %v4198, %v4278
        %v4285 = vadd.f32 %v4201, %v4278
        %v4286 = vadd.f32 %v4204, %v4278
        %v4287 = vadd.f32 %v4207, %v4278
        %v4288 = vadd.f32 %v4210, %v4278
        %v4289 = vadd.f32 %v4213, %v4278
        %v4290 = vadd.f32 %v4216, %v4278
        %v4291 = vadd.f32 %v4219, %v4278
        %v4292 = vadd.f32 %v4222, %v4278
        %v4293 = vadd.f32 %v4225, %v4278
        %v4294 = vadd.f32 %v4228, %v4278
        %v4295 = vadd.f32 %v4231, %v4278
        %v4296 = vadd.f32 %v4234, %v4278
        %v4297 = vadd.f32 %v4237, %v4278
        %v4298 = vadd.f32 %v4240, %v4278
        %v4299 = vadd.f32 %v4243, %v4278
        %v4300 = vadd.f32 %v4246, %v4278
        %v4301 = vadd.f32 %v4249, %v4278
        %v4302 = vadd.f32 %v4252, %v4278
        %v4303 = vadd.f32 %v4255, %v4278
        %v4304 = vadd.f32 %v4258, %v4278
        %v4305 = vadd.f32 %v4261, %v4278
        %v4306 = vadd.f32 %v4264, %v4278
        %v4307 = vadd.f32 %v4267, %v4278
        %v4308 = vadd.f32 %v4270, %v4278
        %v4309 = vadd.f32 %v4273, %v4278
        %v4310 = vadd.f32 %v4276, %v4278
        %v4311 = vxor.u32 %v4279, 2147483648
        %v4312 = vxor.u32 %v4280, 2147483648
        %v4313 = vxor.u32 %v4281, 2147483648
        %v4314 = vxor.u32 %v4282, 2147483648
        %v4315 = vxor.u32 %v4283, 2147483648
        %v4316 = vxor.u32 %v4284, 2147483648
        %v4317 = vxor.u32 %v4285, 2147483648
        %v4318 = vxor.u32 %v4286, 2147483648
        %v4319 = vxor.u32 %v4287, 2147483648
        %v4320 = vxor.u32 %v4288, 2147483648
        %v4321 = vxor.u32 %v4289, 2147483648
        %v4322 = vxor.u32 %v4290, 2147483648
        %v4323 = vxor.u32 %v4291, 2147483648
        %v4324 = vxor.u32 %v4292, 2147483648
        %v4325 = vxor.u32 %v4293, 2147483648
        %v4326 = vxor.u32 %v4294, 2147483648
        %v4327 = vxor.u32 %v4295, 2147483648
        %v4328 = vxor.u32 %v4296, 2147483648
        %v4329 = vxor.u32 %v4297, 2147483648
        %v4330 = vxor.u32 %v4298, 2147483648
        %v4331 = vxor.u32 %v4299, 2147483648
        %v4332 = vxor.u32 %v4300, 2147483648
        %v4333 = vxor.u32 %v4301, 2147483648
        %v4334 = vxor.u32 %v4302, 2147483648
        %v4335 = vxor.u32 %v4303, 2147483648
        %v4336 = vxor.u32 %v4304, 2147483648
        %v4337 = vxor.u32 %v4305, 2147483648
        %v4338 = vxor.u32 %v4306, 2147483648
        %v4339 = vxor.u32 %v4307, 2147483648
        %v4340 = vxor.u32 %v4308, 2147483648
        %v4341 = vxor.u32 %v4309, 2147483648
        %v4342 = vxor.u32 %v4310, 2147483648
        %v4343 = vmul.f32 %v4311, 1.442695
        %v4344 = vpow.pop %v4343
        %v4345 = vmul.f32 %v4312, 1.442695
        %v4346 = vpow.pop %v4345
        %v4347 = vmul.f32 %v4313, 1.442695
        %v4348 = vpow.pop %v4347
        %v4349 = vmul.f32 %v4314, 1.442695
        %v4350 = vpow.pop %v4349
        %v4351 = vmul.f32 %v4315, 1.442695
        %v4352 = vpow.pop %v4351
        %v4353 = vmul.f32 %v4316, 1.442695
        %v4354 = vpow.pop %v4353
        %v4355 = vmul.f32 %v4317, 1.442695
        %v4356 = vpow.pop %v4355
        %v4357 = vmul.f32 %v4318, 1.442695
        %v4358 = vpow.pop %v4357
        %v4359 = vmul.f32 %v4319, 1.442695
        %v4360 = vpow.pop %v4359
        %v4361 = vmul.f32 %v4320, 1.442695
        %v4362 = vpow.pop %v4361
        %v4363 = vmul.f32 %v4321, 1.442695
        %v4364 = vpow.pop %v4363
        %v4365 = vmul.f32 %v4322, 1.442695
        %v4366 = vpow.pop %v4365
        %v4367 = vmul.f32 %v4323, 1.442695
        %v4368 = vpow.pop %v4367
        %v4369 = vmul.f32 %v4324, 1.442695
        %v4370 = vpow.pop %v4369
        %v4371 = vmul.f32 %v4325, 1.442695
        %v4372 = vpow.pop %v4371
        %v4373 = vmul.f32 %v4326, 1.442695
        %v4374 = vpow.pop %v4373
        %v4375 = vmul.f32 %v4327, 1.442695
        %v4376 = vpow.pop %v4375
        %v4377 = vmul.f32 %v4328, 1.442695
        %v4378 = vpow.pop %v4377
        %v4379 = vmul.f32 %v4329, 1.442695
        %v4380 = vpow.pop %v4379
        %v4381 = vmul.f32 %v4330, 1.442695
        %v4382 = vpow.pop %v4381
        %v4383 = vmul.f32 %v4331, 1.442695
        %v4384 = vpow.pop %v4383
        %v4385 = vmul.f32 %v4332, 1.442695
        %v4386 = vpow.pop %v4385
        %v4387 = vmul.f32 %v4333, 1.442695
        %v4388 = vpow.pop %v4387
        %v4389 = vmul.f32 %v4334, 1.442695
        %v4390 = vpow.pop %v4389
        %v4391 = vmul.f32 %v4335, 1.442695
        %v4392 = vpow.pop %v4391
        %v4393 = vmul.f32 %v4336, 1.442695
        %v4394 = vpow.pop %v4393
        %v4395 = vmul.f32 %v4337, 1.442695
        %v4396 = vpow.pop %v4395
        %v4397 = vmul.f32 %v4338, 1.442695
        %v4398 = vpow.pop %v4397
        %v4399 = vmul.f32 %v4339, 1.442695
        %v4400 = vpow.pop %v4399
        %v4401 = vmul.f32 %v4340, 1.442695
        %v4402 = vpow.pop %v4401
        %v4403 = vmul.f32 %v4341, 1.442695
        %v4404 = vpow.pop %v4403
        %v4405 = vmul.f32 %v4342, 1.442695
        %v4406 = vpow.pop %v4405
        %v4407 = vadd.f32 %v4344, 1.0
        %v4408 = vadd.f32 %v4346, 1.0
        %v4409 = vadd.f32 %v4348, 1.0
        %v4410 = vadd.f32 %v4350, 1.0
        %v4411 = vadd.f32 %v4352, 1.0
        %v4412 = vadd.f32 %v4354, 1.0
        %v4413 = vadd.f32 %v4356, 1.0
        %v4414 = vadd.f32 %v4358, 1.0
        %v4415 = vadd.f32 %v4360, 1.0
        %v4416 = vadd.f32 %v4362, 1.0
        %v4417 = vadd.f32 %v4364, 1.0
        %v4418 = vadd.f32 %v4366, 1.0
        %v4419 = vadd.f32 %v4368, 1.0
        %v4420 = vadd.f32 %v4370, 1.0
        %v4421 = vadd.f32 %v4372, 1.0
        %v4422 = vadd.f32 %v4374, 1.0
        %v4423 = vadd.f32 %v4376, 1.0
        %v4424 = vadd.f32 %v4378, 1.0
        %v4425 = vadd.f32 %v4380, 1.0
        %v4426 = vadd.f32 %v4382, 1.0
        %v4427 = vadd.f32 %v4384, 1.0
        %v4428 = vadd.f32 %v4386, 1.0
        %v4429 = vadd.f32 %v4388, 1.0
        %v4430 = vadd.f32 %v4390, 1.0
        %v4431 = vadd.f32 %v4392, 1.0
        %v4432 = vadd.f32 %v4394, 1.0
        %v4433 = vadd.f32 %v4396, 1.0
        %v4434 = vadd.f32 %v4398, 1.0
        %v4435 = vadd.f32 %v4400, 1.0
        %v4436 = vadd.f32 %v4402, 1.0
        %v4437 = vadd.f32 %v4404, 1.0
        %v4438 = vadd.f32 %v4406, 1.0
        %v4439 = vrcp.pop %v4407
        %v4440 = vmul.f32 %v4407, %v4439
        %v4441 = vsub.f32 1.0, %v4440
        %v4442 = vmul.f32 %v4439, %v4441
        %v4443 = vadd.f32 %v4439, %v4442
        %vm4444 = vweird.f32 %v4407
        %vm4445 = vweird.f32 %v4439
        %vm4446 = vmor %vm4444, %vm4445
        %v4447 = vsel %vm4446, %v4439, %v4443
        %v4448 = vand.u32 2147483647, %v4407
        %vm4449 = vcmp.eq.f32.partialorder %v4448, 8.507059e+37
        %v4450 = vand.u32 %v4407, 2147483648
        %v4451 = vor.u32 1.1754944e-38, %v4450
        %v4452 = vsel %vm4449, %v4451, %v4447
        %v4453 = vmul.f32 1.0, %v4452
        %v4454 = vrcp.pop %v4408
        %v4455 = vmul.f32 %v4408, %v4454
        %v4456 = vsub.f32 1.0, %v4455
        %v4457 = vmul.f32 %v4454, %v4456
        %v4458 = vadd.f32 %v4454, %v4457
        %vm4459 = vweird.f32 %v4408
        %vm4460 = vweird.f32 %v4454
        %vm4461 = vmor %vm4459, %vm4460
        %v4462 = vsel %vm4461, %v4454, %v4458
        %v4463 = vand.u32 2147483647, %v4408
        %vm4464 = vcmp.eq.f32.partialorder %v4463, 8.507059e+37
        %v4465 = vand.u32 %v4408, 2147483648
        %v4466 = vor.u32 1.1754944e-38, %v4465
        %v4467 = vsel %vm4464, %v4466, %v4462
        %v4468 = vmul.f32 1.0, %v4467
        %v4469 = vrcp.pop %v4409
        %v4470 = vmul.f32 %v4409, %v4469
        %v4471 = vsub.f32 1.0, %v4470
        %v4472 = vmul.f32 %v4469, %v4471
        %v4473 = vadd.f32 %v4469, %v4472
        %vm4474 = vweird.f32 %v4409
        %vm4475 = vweird.f32 %v4469
        %vm4476 = vmor %vm4474, %vm4475
        %v4477 = vsel %vm4476, %v4469, %v4473
        %v4478 = vand.u32 2147483647, %v4409
        %vm4479 = vcmp.eq.f32.partialorder %v4478, 8.507059e+37
        %v4480 = vand.u32 %v4409, 2147483648
        %v4481 = vor.u32 1.1754944e-38, %v4480
        %v4482 = vsel %vm4479, %v4481, %v4477
        %v4483 = vmul.f32 1.0, %v4482
        %v4484 = vrcp.pop %v4410
        %v4485 = vmul.f32 %v4410, %v4484
        %v4486 = vsub.f32 1.0, %v4485
        %v4487 = vmul.f32 %v4484, %v4486
        %v4488 = vadd.f32 %v4484, %v4487
        %vm4489 = vweird.f32 %v4410
        %vm4490 = vweird.f32 %v4484
        %vm4491 = vmor %vm4489, %vm4490
        %v4492 = vsel %vm4491, %v4484, %v4488
        %v4493 = vand.u32 2147483647, %v4410
        %vm4494 = vcmp.eq.f32.partialorder %v4493, 8.507059e+37
        %v4495 = vand.u32 %v4410, 2147483648
        %v4496 = vor.u32 1.1754944e-38, %v4495
        %v4497 = vsel %vm4494, %v4496, %v4492
        %v4498 = vmul.f32 1.0, %v4497
        %v4499 = vrcp.pop %v4411
        %v4500 = vmul.f32 %v4411, %v4499
        %v4501 = vsub.f32 1.0, %v4500
        %v4502 = vmul.f32 %v4499, %v4501
        %v4503 = vadd.f32 %v4499, %v4502
        %vm4504 = vweird.f32 %v4411
        %vm4505 = vweird.f32 %v4499
        %vm4506 = vmor %vm4504, %vm4505
        %v4507 = vsel %vm4506, %v4499, %v4503
        %v4508 = vand.u32 2147483647, %v4411
        %vm4509 = vcmp.eq.f32.partialorder %v4508, 8.507059e+37
        %v4510 = vand.u32 %v4411, 2147483648
        %v4511 = vor.u32 1.1754944e-38, %v4510
        %v4512 = vsel %vm4509, %v4511, %v4507
        %v4513 = vmul.f32 1.0, %v4512
        %v4514 = vrcp.pop %v4412
        %v4515 = vmul.f32 %v4412, %v4514
        %v4516 = vsub.f32 1.0, %v4515
        %v4517 = vmul.f32 %v4514, %v4516
        %v4518 = vadd.f32 %v4514, %v4517
        %vm4519 = vweird.f32 %v4412
        %vm4520 = vweird.f32 %v4514
        %vm4521 = vmor %vm4519, %vm4520
        %v4522 = vsel %vm4521, %v4514, %v4518
        %v4523 = vand.u32 2147483647, %v4412
        %vm4524 = vcmp.eq.f32.partialorder %v4523, 8.507059e+37
        %v4525 = vand.u32 %v4412, 2147483648
        %v4526 = vor.u32 1.1754944e-38, %v4525
        %v4527 = vsel %vm4524, %v4526, %v4522
        %v4528 = vmul.f32 1.0, %v4527
        %v4529 = vrcp.pop %v4413
        %v4530 = vmul.f32 %v4413, %v4529
        %v4531 = vsub.f32 1.0, %v4530
        %v4532 = vmul.f32 %v4529, %v4531
        %v4533 = vadd.f32 %v4529, %v4532
        %vm4534 = vweird.f32 %v4413
        %vm4535 = vweird.f32 %v4529
        %vm4536 = vmor %vm4534, %vm4535
        %v4537 = vsel %vm4536, %v4529, %v4533
        %v4538 = vand.u32 2147483647, %v4413
        %vm4539 = vcmp.eq.f32.partialorder %v4538, 8.507059e+37
        %v4540 = vand.u32 %v4413, 2147483648
        %v4541 = vor.u32 1.1754944e-38, %v4540
        %v4542 = vsel %vm4539, %v4541, %v4537
        %v4543 = vmul.f32 1.0, %v4542
        %v4544 = vrcp.pop %v4414
        %v4545 = vmul.f32 %v4414, %v4544
        %v4546 = vsub.f32 1.0, %v4545
        %v4547 = vmul.f32 %v4544, %v4546
        %v4548 = vadd.f32 %v4544, %v4547
        %vm4549 = vweird.f32 %v4414
        %vm4550 = vweird.f32 %v4544
        %vm4551 = vmor %vm4549, %vm4550
        %v4552 = vsel %vm4551, %v4544, %v4548
        %v4553 = vand.u32 2147483647, %v4414
        %vm4554 = vcmp.eq.f32.partialorder %v4553, 8.507059e+37
        %v4555 = vand.u32 %v4414, 2147483648
        %v4556 = vor.u32 1.1754944e-38, %v4555
        %v4557 = vsel %vm4554, %v4556, %v4552
        %v4558 = vmul.f32 1.0, %v4557
        %v4559 = vrcp.pop %v4415
        %v4560 = vmul.f32 %v4415, %v4559
        %v4561 = vsub.f32 1.0, %v4560
        %v4562 = vmul.f32 %v4559, %v4561
        %v4563 = vadd.f32 %v4559, %v4562
        %vm4564 = vweird.f32 %v4415
        %vm4565 = vweird.f32 %v4559
        %vm4566 = vmor %vm4564, %vm4565
        %v4567 = vsel %vm4566, %v4559, %v4563
        %v4568 = vand.u32 2147483647, %v4415
        %vm4569 = vcmp.eq.f32.partialorder %v4568, 8.507059e+37
        %v4570 = vand.u32 %v4415, 2147483648
        %v4571 = vor.u32 1.1754944e-38, %v4570
        %v4572 = vsel %vm4569, %v4571, %v4567
        %v4573 = vmul.f32 1.0, %v4572
        %v4574 = vrcp.pop %v4416
        %v4575 = vmul.f32 %v4416, %v4574
        %v4576 = vsub.f32 1.0, %v4575
        %v4577 = vmul.f32 %v4574, %v4576
        %v4578 = vadd.f32 %v4574, %v4577
        %vm4579 = vweird.f32 %v4416
        %vm4580 = vweird.f32 %v4574
        %vm4581 = vmor %vm4579, %vm4580
        %v4582 = vsel %vm4581, %v4574, %v4578
        %v4583 = vand.u32 2147483647, %v4416
        %vm4584 = vcmp.eq.f32.partialorder %v4583, 8.507059e+37
        %v4585 = vand.u32 %v4416, 2147483648
        %v4586 = vor.u32 1.1754944e-38, %v4585
        %v4587 = vsel %vm4584, %v4586, %v4582
        %v4588 = vmul.f32 1.0, %v4587
        %v4589 = vrcp.pop %v4417
        %v4590 = vmul.f32 %v4417, %v4589
        %v4591 = vsub.f32 1.0, %v4590
        %v4592 = vmul.f32 %v4589, %v4591
        %v4593 = vadd.f32 %v4589, %v4592
        %vm4594 = vweird.f32 %v4417
        %vm4595 = vweird.f32 %v4589
        %vm4596 = vmor %vm4594, %vm4595
        %v4597 = vsel %vm4596, %v4589, %v4593
        %v4598 = vand.u32 2147483647, %v4417
        %vm4599 = vcmp.eq.f32.partialorder %v4598, 8.507059e+37
        %v4600 = vand.u32 %v4417, 2147483648
        %v4601 = vor.u32 1.1754944e-38, %v4600
        %v4602 = vsel %vm4599, %v4601, %v4597
        %v4603 = vmul.f32 1.0, %v4602
        %v4604 = vrcp.pop %v4418
        %v4605 = vmul.f32 %v4418, %v4604
        %v4606 = vsub.f32 1.0, %v4605
        %v4607 = vmul.f32 %v4604, %v4606
        %v4608 = vadd.f32 %v4604, %v4607
        %vm4609 = vweird.f32 %v4418
        %vm4610 = vweird.f32 %v4604
        %vm4611 = vmor %vm4609, %vm4610
        %v4612 = vsel %vm4611, %v4604, %v4608
        %v4613 = vand.u32 2147483647, %v4418
        %vm4614 = vcmp.eq.f32.partialorder %v4613, 8.507059e+37
        %v4615 = vand.u32 %v4418, 2147483648
        %v4616 = vor.u32 1.1754944e-38, %v4615
        %v4617 = vsel %vm4614, %v4616, %v4612
        %v4618 = vmul.f32 1.0, %v4617
        %v4619 = vrcp.pop %v4419
        %v4620 = vmul.f32 %v4419, %v4619
        %v4621 = vsub.f32 1.0, %v4620
        %v4622 = vmul.f32 %v4619, %v4621
        %v4623 = vadd.f32 %v4619, %v4622
        %vm4624 = vweird.f32 %v4419
        %vm4625 = vweird.f32 %v4619
        %vm4626 = vmor %vm4624, %vm4625
        %v4627 = vsel %vm4626, %v4619, %v4623
        %v4628 = vand.u32 2147483647, %v4419
        %vm4629 = vcmp.eq.f32.partialorder %v4628, 8.507059e+37
        %v4630 = vand.u32 %v4419, 2147483648
        %v4631 = vor.u32 1.1754944e-38, %v4630
        %v4632 = vsel %vm4629, %v4631, %v4627
        %v4633 = vmul.f32 1.0, %v4632
        %v4634 = vrcp.pop %v4420
        %v4635 = vmul.f32 %v4420, %v4634
        %v4636 = vsub.f32 1.0, %v4635
        %v4637 = vmul.f32 %v4634, %v4636
        %v4638 = vadd.f32 %v4634, %v4637
        %vm4639 = vweird.f32 %v4420
        %vm4640 = vweird.f32 %v4634
        %vm4641 = vmor %vm4639, %vm4640
        %v4642 = vsel %vm4641, %v4634, %v4638
        %v4643 = vand.u32 2147483647, %v4420
        %vm4644 = vcmp.eq.f32.partialorder %v4643, 8.507059e+37
        %v4645 = vand.u32 %v4420, 2147483648
        %v4646 = vor.u32 1.1754944e-38, %v4645
        %v4647 = vsel %vm4644, %v4646, %v4642
        %v4648 = vmul.f32 1.0, %v4647
        %v4649 = vrcp.pop %v4421
        %v4650 = vmul.f32 %v4421, %v4649
        %v4651 = vsub.f32 1.0, %v4650
        %v4652 = vmul.f32 %v4649, %v4651
        %v4653 = vadd.f32 %v4649, %v4652
        %vm4654 = vweird.f32 %v4421
        %vm4655 = vweird.f32 %v4649
        %vm4656 = vmor %vm4654, %vm4655
        %v4657 = vsel %vm4656, %v4649, %v4653
        %v4658 = vand.u32 2147483647, %v4421
        %vm4659 = vcmp.eq.f32.partialorder %v4658, 8.507059e+37
        %v4660 = vand.u32 %v4421, 2147483648
        %v4661 = vor.u32 1.1754944e-38, %v4660
        %v4662 = vsel %vm4659, %v4661, %v4657
        %v4663 = vmul.f32 1.0, %v4662
        %v4664 = vrcp.pop %v4422
        %v4665 = vmul.f32 %v4422, %v4664
        %v4666 = vsub.f32 1.0, %v4665
        %v4667 = vmul.f32 %v4664, %v4666
        %v4668 = vadd.f32 %v4664, %v4667
        %vm4669 = vweird.f32 %v4422
        %vm4670 = vweird.f32 %v4664
        %vm4671 = vmor %vm4669, %vm4670
        %v4672 = vsel %vm4671, %v4664, %v4668
        %v4673 = vand.u32 2147483647, %v4422
        %vm4674 = vcmp.eq.f32.partialorder %v4673, 8.507059e+37
        %v4675 = vand.u32 %v4422, 2147483648
        %v4676 = vor.u32 1.1754944e-38, %v4675
        %v4677 = vsel %vm4674, %v4676, %v4672
        %v4678 = vmul.f32 1.0, %v4677
        %v4679 = vrcp.pop %v4423
        %v4680 = vmul.f32 %v4423, %v4679
        %v4681 = vsub.f32 1.0, %v4680
        %v4682 = vmul.f32 %v4679, %v4681
        %v4683 = vadd.f32 %v4679, %v4682
        %vm4684 = vweird.f32 %v4423
        %vm4685 = vweird.f32 %v4679
        %vm4686 = vmor %vm4684, %vm4685
        %v4687 = vsel %vm4686, %v4679, %v4683
        %v4688 = vand.u32 2147483647, %v4423
        %vm4689 = vcmp.eq.f32.partialorder %v4688, 8.507059e+37
        %v4690 = vand.u32 %v4423, 2147483648
        %v4691 = vor.u32 1.1754944e-38, %v4690
        %v4692 = vsel %vm4689, %v4691, %v4687
        %v4693 = vmul.f32 1.0, %v4692
        %v4694 = vrcp.pop %v4424
        %v4695 = vmul.f32 %v4424, %v4694
        %v4696 = vsub.f32 1.0, %v4695
        %v4697 = vmul.f32 %v4694, %v4696
        %v4698 = vadd.f32 %v4694, %v4697
        %vm4699 = vweird.f32 %v4424
        %vm4700 = vweird.f32 %v4694
        %vm4701 = vmor %vm4699, %vm4700
        %v4702 = vsel %vm4701, %v4694, %v4698
        %v4703 = vand.u32 2147483647, %v4424
        %vm4704 = vcmp.eq.f32.partialorder %v4703, 8.507059e+37
        %v4705 = vand.u32 %v4424, 2147483648
        %v4706 = vor.u32 1.1754944e-38, %v4705
        %v4707 = vsel %vm4704, %v4706, %v4702
        %v4708 = vmul.f32 1.0, %v4707
        %v4709 = vrcp.pop %v4425
        %v4710 = vmul.f32 %v4425, %v4709
        %v4711 = vsub.f32 1.0, %v4710
        %v4712 = vmul.f32 %v4709, %v4711
        %v4713 = vadd.f32 %v4709, %v4712
        %vm4714 = vweird.f32 %v4425
        %vm4715 = vweird.f32 %v4709
        %vm4716 = vmor %vm4714, %vm4715
        %v4717 = vsel %vm4716, %v4709, %v4713
        %v4718 = vand.u32 2147483647, %v4425
        %vm4719 = vcmp.eq.f32.partialorder %v4718, 8.507059e+37
        %v4720 = vand.u32 %v4425, 2147483648
        %v4721 = vor.u32 1.1754944e-38, %v4720
        %v4722 = vsel %vm4719, %v4721, %v4717
        %v4723 = vmul.f32 1.0, %v4722
        %v4724 = vrcp.pop %v4426
        %v4725 = vmul.f32 %v4426, %v4724
        %v4726 = vsub.f32 1.0, %v4725
        %v4727 = vmul.f32 %v4724, %v4726
        %v4728 = vadd.f32 %v4724, %v4727
        %vm4729 = vweird.f32 %v4426
        %vm4730 = vweird.f32 %v4724
        %vm4731 = vmor %vm4729, %vm4730
        %v4732 = vsel %vm4731, %v4724, %v4728
        %v4733 = vand.u32 2147483647, %v4426
        %vm4734 = vcmp.eq.f32.partialorder %v4733, 8.507059e+37
        %v4735 = vand.u32 %v4426, 2147483648
        %v4736 = vor.u32 1.1754944e-38, %v4735
        %v4737 = vsel %vm4734, %v4736, %v4732
        %v4738 = vmul.f32 1.0, %v4737
        %v4739 = vrcp.pop %v4427
        %v4740 = vmul.f32 %v4427, %v4739
        %v4741 = vsub.f32 1.0, %v4740
        %v4742 = vmul.f32 %v4739, %v4741
        %v4743 = vadd.f32 %v4739, %v4742
        %vm4744 = vweird.f32 %v4427
        %vm4745 = vweird.f32 %v4739
        %vm4746 = vmor %vm4744, %vm4745
        %v4747 = vsel %vm4746, %v4739, %v4743
        %v4748 = vand.u32 2147483647, %v4427
        %vm4749 = vcmp.eq.f32.partialorder %v4748, 8.507059e+37
        %v4750 = vand.u32 %v4427, 2147483648
        %v4751 = vor.u32 1.1754944e-38, %v4750
        %v4752 = vsel %vm4749, %v4751, %v4747
        %v4753 = vmul.f32 1.0, %v4752
        %v4754 = vrcp.pop %v4428
        %v4755 = vmul.f32 %v4428, %v4754
        %v4756 = vsub.f32 1.0, %v4755
        %v4757 = vmul.f32 %v4754, %v4756
        %v4758 = vadd.f32 %v4754, %v4757
        %vm4759 = vweird.f32 %v4428
        %vm4760 = vweird.f32 %v4754
        %vm4761 = vmor %vm4759, %vm4760
        %v4762 = vsel %vm4761, %v4754, %v4758
        %v4763 = vand.u32 2147483647, %v4428
        %vm4764 = vcmp.eq.f32.partialorder %v4763, 8.507059e+37
        %v4765 = vand.u32 %v4428, 2147483648
        %v4766 = vor.u32 1.1754944e-38, %v4765
        %v4767 = vsel %vm4764, %v4766, %v4762
        %v4768 = vmul.f32 1.0, %v4767
        %v4769 = vrcp.pop %v4429
        %v4770 = vmul.f32 %v4429, %v4769
        %v4771 = vsub.f32 1.0, %v4770
        %v4772 = vmul.f32 %v4769, %v4771
        %v4773 = vadd.f32 %v4769, %v4772
        %vm4774 = vweird.f32 %v4429
        %vm4775 = vweird.f32 %v4769
        %vm4776 = vmor %vm4774, %vm4775
        %v4777 = vsel %vm4776, %v4769, %v4773
        %v4778 = vand.u32 2147483647, %v4429
        %vm4779 = vcmp.eq.f32.partialorder %v4778, 8.507059e+37
        %v4780 = vand.u32 %v4429, 2147483648
        %v4781 = vor.u32 1.1754944e-38, %v4780
        %v4782 = vsel %vm4779, %v4781, %v4777
        %v4783 = vmul.f32 1.0, %v4782
        %v4784 = vrcp.pop %v4430
        %v4785 = vmul.f32 %v4430, %v4784
        %v4786 = vsub.f32 1.0, %v4785
        %v4787 = vmul.f32 %v4784, %v4786
        %v4788 = vadd.f32 %v4784, %v4787
        %vm4789 = vweird.f32 %v4430
        %vm4790 = vweird.f32 %v4784
        %vm4791 = vmor %vm4789, %vm4790
        %v4792 = vsel %vm4791, %v4784, %v4788
        %v4793 = vand.u32 2147483647, %v4430
        %vm4794 = vcmp.eq.f32.partialorder %v4793, 8.507059e+37
        %v4795 = vand.u32 %v4430, 2147483648
        %v4796 = vor.u32 1.1754944e-38, %v4795
        %v4797 = vsel %vm4794, %v4796, %v4792
        %v4798 = vmul.f32 1.0, %v4797
        %v4799 = vrcp.pop %v4431
        %v4800 = vmul.f32 %v4431, %v4799
        %v4801 = vsub.f32 1.0, %v4800
        %v4802 = vmul.f32 %v4799, %v4801
        %v4803 = vadd.f32 %v4799, %v4802
        %vm4804 = vweird.f32 %v4431
        %vm4805 = vweird.f32 %v4799
        %vm4806 = vmor %vm4804, %vm4805
        %v4807 = vsel %vm4806, %v4799, %v4803
        %v4808 = vand.u32 2147483647, %v4431
        %vm4809 = vcmp.eq.f32.partialorder %v4808, 8.507059e+37
        %v4810 = vand.u32 %v4431, 2147483648
        %v4811 = vor.u32 1.1754944e-38, %v4810
        %v4812 = vsel %vm4809, %v4811, %v4807
        %v4813 = vmul.f32 1.0, %v4812
        %v4814 = vrcp.pop %v4432
        %v4815 = vmul.f32 %v4432, %v4814
        %v4816 = vsub.f32 1.0, %v4815
        %v4817 = vmul.f32 %v4814, %v4816
        %v4818 = vadd.f32 %v4814, %v4817
        %vm4819 = vweird.f32 %v4432
        %vm4820 = vweird.f32 %v4814
        %vm4821 = vmor %vm4819, %vm4820
        %v4822 = vsel %vm4821, %v4814, %v4818
        %v4823 = vand.u32 2147483647, %v4432
        %vm4824 = vcmp.eq.f32.partialorder %v4823, 8.507059e+37
        %v4825 = vand.u32 %v4432, 2147483648
        %v4826 = vor.u32 1.1754944e-38, %v4825
        %v4827 = vsel %vm4824, %v4826, %v4822
        %v4828 = vmul.f32 1.0, %v4827
        %v4829 = vrcp.pop %v4433
        %v4830 = vmul.f32 %v4433, %v4829
        %v4831 = vsub.f32 1.0, %v4830
        %v4832 = vmul.f32 %v4829, %v4831
        %v4833 = vadd.f32 %v4829, %v4832
        %vm4834 = vweird.f32 %v4433
        %vm4835 = vweird.f32 %v4829
        %vm4836 = vmor %vm4834, %vm4835
        %v4837 = vsel %vm4836, %v4829, %v4833
        %v4838 = vand.u32 2147483647, %v4433
        %vm4839 = vcmp.eq.f32.partialorder %v4838, 8.507059e+37
        %v4840 = vand.u32 %v4433, 2147483648
        %v4841 = vor.u32 1.1754944e-38, %v4840
        %v4842 = vsel %vm4839, %v4841, %v4837
        %v4843 = vmul.f32 1.0, %v4842
        %v4844 = vrcp.pop %v4434
        %v4845 = vmul.f32 %v4434, %v4844
        %v4846 = vsub.f32 1.0, %v4845
        %v4847 = vmul.f32 %v4844, %v4846
        %v4848 = vadd.f32 %v4844, %v4847
        %vm4849 = vweird.f32 %v4434
        %vm4850 = vweird.f32 %v4844
        %vm4851 = vmor %vm4849, %vm4850
        %v4852 = vsel %vm4851, %v4844, %v4848
        %v4853 = vand.u32 2147483647, %v4434
        %vm4854 = vcmp.eq.f32.partialorder %v4853, 8.507059e+37
        %v4855 = vand.u32 %v4434, 2147483648
        %v4856 = vor.u32 1.1754944e-38, %v4855
        %v4857 = vsel %vm4854, %v4856, %v4852
        %v4858 = vmul.f32 1.0, %v4857
        %v4859 = vrcp.pop %v4435
        %v4860 = vmul.f32 %v4435, %v4859
        %v4861 = vsub.f32 1.0, %v4860
        %v4862 = vmul.f32 %v4859, %v4861
        %v4863 = vadd.f32 %v4859, %v4862
        %vm4864 = vweird.f32 %v4435
        %vm4865 = vweird.f32 %v4859
        %vm4866 = vmor %vm4864, %vm4865
        %v4867 = vsel %vm4866, %v4859, %v4863
        %v4868 = vand.u32 2147483647, %v4435
        %vm4869 = vcmp.eq.f32.partialorder %v4868, 8.507059e+37
        %v4870 = vand.u32 %v4435, 2147483648
        %v4871 = vor.u32 1.1754944e-38, %v4870
        %v4872 = vsel %vm4869, %v4871, %v4867
        %v4873 = vmul.f32 1.0, %v4872
        %v4874 = vrcp.pop %v4436
        %v4875 = vmul.f32 %v4436, %v4874
        %v4876 = vsub.f32 1.0, %v4875
        %v4877 = vmul.f32 %v4874, %v4876
        %v4878 = vadd.f32 %v4874, %v4877
        %vm4879 = vweird.f32 %v4436
        %vm4880 = vweird.f32 %v4874
        %vm4881 = vmor %vm4879, %vm4880
        %v4882 = vsel %vm4881, %v4874, %v4878
        %v4883 = vand.u32 2147483647, %v4436
        %vm4884 = vcmp.eq.f32.partialorder %v4883, 8.507059e+37
        %v4885 = vand.u32 %v4436, 2147483648
        %v4886 = vor.u32 1.1754944e-38, %v4885
        %v4887 = vsel %vm4884, %v4886, %v4882
        %v4888 = vmul.f32 1.0, %v4887
        %v4889 = vrcp.pop %v4437
        %v4890 = vmul.f32 %v4437, %v4889
        %v4891 = vsub.f32 1.0, %v4890
        %v4892 = vmul.f32 %v4889, %v4891
        %v4893 = vadd.f32 %v4889, %v4892
        %vm4894 = vweird.f32 %v4437
        %vm4895 = vweird.f32 %v4889
        %vm4896 = vmor %vm4894, %vm4895
        %v4897 = vsel %vm4896, %v4889, %v4893
        %v4898 = vand.u32 2147483647, %v4437
        %vm4899 = vcmp.eq.f32.partialorder %v4898, 8.507059e+37
        %v4900 = vand.u32 %v4437, 2147483648
        %v4901 = vor.u32 1.1754944e-38, %v4900
        %v4902 = vsel %vm4899, %v4901, %v4897
        %v4903 = vmul.f32 1.0, %v4902
        %v4904 = vrcp.pop %v4438
        %v4905 = vmul.f32 %v4438, %v4904
        %v4906 = vsub.f32 1.0, %v4905
        %v4907 = vmul.f32 %v4904, %v4906
        %v4908 = vadd.f32 %v4904, %v4907
        %vm4909 = vweird.f32 %v4438
        %vm4910 = vweird.f32 %v4904
        %vm4911 = vmor %vm4909, %vm4910
        %v4912 = vsel %vm4911, %v4904, %v4908
        %v4913 = vand.u32 2147483647, %v4438
        %vm4914 = vcmp.eq.f32.partialorder %v4913, 8.507059e+37
        %v4915 = vand.u32 %v4438, 2147483648
        %v4916 = vor.u32 1.1754944e-38, %v4915
        %v4917 = vsel %vm4914, %v4916, %v4912
        %v4918 = vmul.f32 1.0, %v4917
        %v4951 = vperm.slane %v4453, %v2519
        %v4952 = vadd.s32 %v2519, 4294967288
        %v4953 = vperm.slane %v4468, %v4952
        %vm4954 = vcmask 130112
        %v4955 = vsel %vm4954, %v4953, %v4951
        %v4956 = vperm.slane %v4483, %v2519
        %v4957 = vperm.slane %v4498, %v4952
        %v4958 = vsel %vm4954, %v4957, %v4956
        %v4959 = vperm.slane %v4513, %v2519
        %v4960 = vperm.slane %v4528, %v4952
        %v4961 = vsel %vm4954, %v4960, %v4959
        %v4962 = vperm.slane %v4543, %v2519
        %v4963 = vperm.slane %v4558, %v4952
        %v4964 = vsel %vm4954, %v4963, %v4962
        %v4965 = vperm.slane %v4573, %v2519
        %v4966 = vperm.slane %v4588, %v4952
        %v4967 = vsel %vm4954, %v4966, %v4965
        %v4968 = vperm.slane %v4603, %v2519
        %v4969 = vperm.slane %v4618, %v4952
        %v4970 = vsel %vm4954, %v4969, %v4968
        %v4971 = vperm.slane %v4633, %v2519
        %v4972 = vperm.slane %v4648, %v4952
        %v4973 = vsel %vm4954, %v4972, %v4971
        %v4974 = vperm.slane %v4663, %v2519
        %v4975 = vperm.slane %v4678, %v4952
        %v4976 = vsel %vm4954, %v4975, %v4974
        %v4977 = vperm.slane %v4693, %v2519
        %v4978 = vperm.slane %v4708, %v4952
        %v4979 = vsel %vm4954, %v4978, %v4977
        %v4980 = vperm.slane %v4723, %v2519
        %v4981 = vperm.slane %v4738, %v4952
        %v4982 = vsel %vm4954, %v4981, %v4980
        %v4983 = vperm.slane %v4753, %v2519
        %v4984 = vperm.slane %v4768, %v4952
        %v4985 = vsel %vm4954, %v4984, %v4983
        %v4986 = vperm.slane %v4783, %v2519
        %v4987 = vperm.slane %v4798, %v4952
        %v4988 = vsel %vm4954, %v4987, %v4986
        %v4989 = vperm.slane %v4813, %v2519
        %v4990 = vperm.slane %v4828, %v4952
        %v4991 = vsel %vm4954, %v4990, %v4989
        %v4992 = vperm.slane %v4843, %v2519
        %v4993 = vperm.slane %v4858, %v4952
        %v4994 = vsel %vm4954, %v4993, %v4992
        %v4995 = vperm.slane %v4873, %v2519
        %v4996 = vperm.slane %v4888, %v4952
        %v4997 = vsel %vm4954, %v4996, %v4995
        %v4998 = vperm.slane %v4903, %v2519
        %v4999 = vperm.slane %v4918, %v4952
        %v5000 = vsel %vm4954, %v4999, %v4998
        %vm5001 = vcmask 1041409
        %v5002 = vsel %vm5001, %v4958, %v4955
        %vm5003 = vcmask 1042434
        %v5004 = vsel %vm5003, %v4961, %v5002
        %vm5005 = vcmask 1043459
        %v5006 = vsel %vm5005, %v4964, %v5004
        %vm5007 = vcmask 1044484
        %v5008 = vsel %vm5007, %v4967, %v5006
        %vm5009 = vcmask 1045509
        %v5010 = vsel %vm5009, %v4970, %v5008
        %vm5011 = vcmask 1046534
        %v5012 = vsel %vm5011, %v4973, %v5010
        %vm5013 = vcmask 1047559
        %v5014 = vsel %vm5013, %v4976, %v5012
        %v5015 = vsel %vm5001, %v4982, %v4979
        %v5016 = vsel %vm5003, %v4985, %v5015
        %v5017 = vsel %vm5005, %v4988, %v5016
        %v5018 = vsel %vm5007, %v4991, %v5017
        %v5019 = vsel %vm5009, %v4994, %v5018
        %v5020 = vsel %vm5011, %v4997, %v5019
        %v5021 = vsel %vm5013, %v5000, %v5020
        %vm5024 = vcmask 130048
        %5025 = vst.msk [vmem:[%s411] sm:$0xff] %vm5024, %v5014
        %5026 = vst.msk [vmem:[%s411 + $0x8] sm:$0xff] %vm5024, %v5021
        %v5027 = vmul.f32 %v851, %v851
        %v5028 = vmul.f32 %v852, %v852
        %v5029 = vmul.f32 %v853, %v853
        %v5030 = vmul.f32 %v854, %v854
        %v5031 = vmul.f32 %v855, %v855
        %v5032 = vmul.f32 %v856, %v856
        %v5033 = vmul.f32 %v857, %v857
        %v5034 = vmul.f32 %v858, %v858
        %v5035 = vmul.f32 %v859, %v859
        %v5036 = vmul.f32 %v860, %v860
        %v5037 = vmul.f32 %v861, %v861
        %v5038 = vmul.f32 %v862, %v862
        %v5039 = vmul.f32 %v863, %v863
        %v5040 = vmul.f32 %v864, %v864
        %v5041 = vmul.f32 %v865, %v865
        %v5042 = vmul.f32 %v866, %v866
        %v5043 = vmul.f32 %v867, %v867
        %v5044 = vmul.f32 %v868, %v868
        %v5045 = vmul.f32 %v869, %v869
        %v5046 = vmul.f32 %v870, %v870
        %v5047 = vmul.f32 %v871, %v871
        %v5048 = vmul.f32 %v872, %v872
        %v5049 = vmul.f32 %v873, %v873
        %v5050 = vmul.f32 %v874, %v874
        %v5051 = vmul.f32 %v875, %v875
        %v5052 = vmul.f32 %v876, %v876
        %v5053 = vmul.f32 %v877, %v877
        %v5054 = vmul.f32 %v878, %v878
        %v5055 = vmul.f32 %v879, %v879
        %v5056 = vmul.f32 %v880, %v880
        %v5057 = vmul.f32 %v881, %v881
        %v5058 = vmul.f32 %v882, %v882
        %v5059 = vsel %vm2520, %v851, %v5027
        %v5060 = vsel %vm2520, %v852, %v5028
        %v5061 = vsel %vm2520, %v853, %v5029
        %v5062 = vsel %vm2520, %v854, %v5030
        %v5063 = vsel %vm2520, %v855, %v5031
        %v5064 = vsel %vm2520, %v856, %v5032
        %v5065 = vsel %vm2520, %v857, %v5033
        %v5066 = vsel %vm2520, %v858, %v5034
        %v5067 = vsel %vm2520, %v859, %v5035
        %v5068 = vsel %vm2520, %v860, %v5036
        %v5069 = vsel %vm2520, %v861, %v5037
        %v5070 = vsel %vm2520, %v862, %v5038
        %v5071 = vsel %vm2520, %v863, %v5039
        %v5072 = vsel %vm2520, %v864, %v5040
        %v5073 = vsel %vm2520, %v865, %v5041
        %v5074 = vsel %vm2520, %v866, %v5042
        %v5075 = vsel %vm2520, %v867, %v5043
        %v5076 = vsel %vm2520, %v868, %v5044
        %v5077 = vsel %vm2520, %v869, %v5045
        %v5078 = vsel %vm2520, %v870, %v5046
        %v5079 = vsel %vm2520, %v871, %v5047
        %v5080 = vsel %vm2520, %v872, %v5048
        %v5081 = vsel %vm2520, %v873, %v5049
        %v5082 = vsel %vm2520, %v874, %v5050
        %v5083 = vsel %vm2520, %v875, %v5051
        %v5084 = vsel %vm2520, %v876, %v5052
        %v5085 = vsel %vm2520, %v877, %v5053
        %v5086 = vsel %vm2520, %v878, %v5054
        %v5087 = vsel %vm2520, %v879, %v5055
        %v5088 = vsel %vm2520, %v880, %v5056
        %v5089 = vsel %vm2520, %v881, %v5057
        %v5090 = vsel %vm2520, %v882, %v5058
        %v5091 = vld [vmem:[%s9] sm:$0xff]
        %v5092 = vld [vmem:[%s9 + $0x8] sm:$0xff]
        %v5093 = vld [vmem:[%s9 + $0x10] sm:$0xff]
        %v5094 = vld [vmem:[%s9 + $0x18] sm:$0xff]
        %5095 = vmatpush.msra.mxu0 %v5074
        %5096 = vmatpush.msra.mxu0 %v5073
        %5097 = vmatpush.msra.mxu0 %v5072
        %5098 = vmatpush.msra.mxu0 %v5071
        %5099 = vmatpush.msra.mxu0 %v5070
        %5100 = vmatpush.msra.mxu0 %v5069
        %5101 = vmatpush.msra.mxu0 %v5068
        %5102 = vmatpush.msra.mxu0 %v5067
        %5103 = vmatpush.msra.mxu0 %v5066
        %5104 = vmatpush.msra.mxu0 %v5065
        %5105 = vmatpush.msra.mxu0 %v5064
        %5106 = vmatpush.msra.mxu0 %v5063
        %5107 = vmatpush.msra.mxu0 %v5062
        %5108 = vmatpush.msra.mxu0 %v5061
        %5109 = vmatpush.msra.mxu0 %v5060
        %5110 = vmatpush.msra.mxu0 %v5059
        %5111 = vmatmul.f32.gmra.mxu0 %v5091
        %v5112 = vpop.f32.mrf.mxu0
        %v5113 = vadd.f32 0.0, %v5112
        %5114 = vmatmul.f32.gmra.mxu0 %v5093
        %v5115 = vpop.f32.mrf.mxu0
        %v5116 = vadd.f32 0.0, %v5115
        %5117 = vdwg.mxu0
        %5118 = vmatpush.msra.mxu0 %v5090
        %5119 = vmatpush.msra.mxu0 %v5089
        %5120 = vmatpush.msra.mxu0 %v5088
        %5121 = vmatpush.msra.mxu0 %v5087
        %5122 = vmatpush.msra.mxu0 %v5086
        %5123 = vmatpush.msra.mxu0 %v5085
        %5124 = vmatpush.msra.mxu0 %v5084
        %5125 = vmatpush.msra.mxu0 %v5083
        %5126 = vmatpush.msra.mxu0 %v5082
        %5127 = vmatpush.msra.mxu0 %v5081
        %5128 = vmatpush.msra.mxu0 %v5080
        %5129 = vmatpush.msra.mxu0 %v5079
        %5130 = vmatpush.msra.mxu0 %v5078
        %5131 = vmatpush.msra.mxu0 %v5077
        %5132 = vmatpush.msra.mxu0 %v5076
        %5133 = vmatpush.msra.mxu0 %v5075
        %5134 = vmatmul.f32.gmra.mxu0 %v5092
        %v5135 = vpop.f32.mrf.mxu0
        %v5136 = vadd.f32 %v5113, %v5135
        %5137 = vmatmul.f32.gmra.mxu0 %v5094
        %v5138 = vpop.f32.mrf.mxu0
        %v5139 = vadd.f32 %v5116, %v5138
        %5140 = vdwg.mxu0
        %v5141 = vmul.f32 %v5136, 0.0625
        %v5142 = vmul.f32 %v5139, 0.0625
        %v5143 = vmul.f32 %v5141, 16.0
        %v5144 = vmul.f32 %v5142, 16.0
        %v5145 = vmul.f32 %v5143, %v5141
        %v5146 = vmul.f32 %v5144, %v5142
        %5149 = vrot.lane.b32.xlu0 %v5145, 1
        %v5150 = vpop.permute.xlu0 %5149
        %5151 = vrot.lane.b32.xlu0 %v5146, 1
        %v5152 = vpop.permute.xlu0 %5151
        %v5155 = vsub.f32 %v5136, %v5150
        %v5156 = vsub.f32 %v5139, %v5152
        %v5157 = vmul.f32 %v5155, 0.06666667
        %v5158 = vmul.f32 %v5156, 0.06666667
        %5161 = vrot.lane.b32.xlu0 %v5157, 127
        %v5162 = vpop.permute.xlu0 %5161
        %5163 = vrot.lane.b32.xlu0 %v5158, 127
        %v5164 = vpop.permute.xlu0 %5163
        %vm5167 = vcmask 7168
        %5168 = vst.msk [vmem:[%s434] sm:$0xff] %vm5167, %v5162
        %5169 = vst.msk [vmem:[%s434 + $0x8] sm:$0xff] %vm5167, %v5164
        %s5170 = sand.u32 %s254, 1
        %s5171 = scalar_lea.sflag [#allocation5], %s5170
        %s5172 = sand.u32 %s254, 1
        %s5173 = smul.addr %s5172, 16
        %s5174 = scalar_lea.vmem [#allocation4], %s5173
        %s5175 = sand.u32 %s280, 1
        %s5176 = scalar_lea.sflag [#allocation7], %s5175
        %s5177 = sand.u32 %s280, 1
        %s5178 = scalar_lea.vmem [#allocation6], %s5177
        %p5179 = scmp.lt.s32.totalorder %s31, 1
        %s5180 = scalar_select %p5179, %s31, 1
        %s5181 = smul.addr %s5180, 2
        %s5182 = smul.addr %s5181, 8
        %s5183 = scalar_lea.vmem %s12, %s5182
        // Predicated region
        $region61: #{tpu_custom_call.1} parent=59 // pred_check
          %p5184 = pneg %p264
        $region62: #{tpu_custom_call.1} parent=59 // pred_check_branch
          %5186 = sbr.rel (%p5184) target = $region64
        $region63: #{tpu_custom_call.1} parent=59 // pred_region
          %5188 = vsyncadd %s5171, 0
          %s5189 = smul.addr %s31, 2
          %s5190 = smul.addr %s5189, 8
          %s5191 = scalar_lea.hbm %s10, %s5190
          %s5192 = sshll.u32 %s5174, 4
          %s5193 = int_to_ptr.vmem [resolvable:$true] %s5192
          %s5194 = sshll.u32 %s5191, 4
          %s5195 = int_to_ptr.hbm [resolvable:$true] %s5194
          %5200 = dma.vmem_to_hbm [thread:$0]  %s5193, 256, %s5195, %s5171, 128, 128, 8
        $region64: #{tpu_custom_call.1} parent=59 // pred_fallthru
          _
        // Predicated region
        $region65: #{tpu_custom_call.1} parent=59 // pred_check
          %p5201 = pneg %p290
        $region66: #{tpu_custom_call.1} parent=59 // pred_check_branch
          %5203 = sbr.rel (%p5201) target = $region68
        $region67: #{tpu_custom_call.1} parent=59 // pred_region
          %5205 = vsyncadd %s5176, 0
          %s5206 = scalar_lea.hbm %s11, %s31
          %s5208 = sshll.u32 %s5178, 4
          %s5209 = int_to_ptr.vmem [resolvable:$true] %s5208
          %s5210 = sshll.u32 %s5206, 4
          %s5211 = int_to_ptr.hbm [resolvable:$true] %s5210
          %5213 = dma.vmem_to_hbm [thread:$0]  %s5209, 16, %s5211, %s5176
        $region68: #{tpu_custom_call.1} parent=59 // pred_fallthru
          _
        // Predicated region
        $region69: #{tpu_custom_call.1} parent=59 // pred_check
          %p5214 = pneg %p316
        $region70: #{tpu_custom_call.1} parent=59 // pred_check_branch
          %5216 = sbr.rel (%p5214) target = $region72
        $region71: #{tpu_custom_call.1} parent=59 // pred_region
          _
        $region72: #{tpu_custom_call.1} parent=59 // pred_fallthru
          _
      $region60: #{tpu_custom_call.1} parent=5 // pred_fallthru
        _
      %p5217 = scmp.le.s32.totalorder 2, %s26
      // Predicated region
      $region73: #{tpu_custom_call.1} parent=5 // pred_check
        %p5218 = pneg %p5217
      $region74: #{tpu_custom_call.1} parent=5 // pred_check_branch
        %5220 = sbr.rel (%p5218) target = $region76
      $region75: #{tpu_custom_call.1} parent=5 // pred_region
        %s5221 = ssub.s32 %s26, 2
        // Predicated region
        $region77: #{tpu_custom_call.1} parent=75 // pred_check
          %p5222 = pneg %p270
        $region78: #{tpu_custom_call.1} parent=75 // pred_check_branch
          %5224 = sbr.rel (%p5222) target = $region80
        $region79: #{tpu_custom_call.1} parent=75 // pred_region
          %s5225 = sand.u32 %s255, 1
          %s5226 = scalar_lea.sflag [#allocation5], %s5225
          %s5227 = sand.u32 %s255, 1
          %s5228 = smul.addr %s5227, 16
          %s5229 = scalar_lea.vmem [#allocation4], %s5228
          %5231 = dma.done %s5226, 256
        $region80: #{tpu_custom_call.1} parent=75 // pred_fallthru
          _
        // Predicated region
        $region81: #{tpu_custom_call.1} parent=75 // pred_check
          %p5232 = pneg %p296
        $region82: #{tpu_custom_call.1} parent=75 // pred_check_branch
          %5234 = sbr.rel (%p5232) target = $region84
        $region83: #{tpu_custom_call.1} parent=75 // pred_region
          %s5235 = sand.u32 %s281, 1
          %s5236 = scalar_lea.sflag [#allocation7], %s5235
          %s5237 = sand.u32 %s281, 1
          %s5238 = scalar_lea.vmem [#allocation6], %s5237
          %5240 = dma.done %s5236, 16
        $region84: #{tpu_custom_call.1} parent=75 // pred_fallthru
          _
        // Predicated region
        $region85: #{tpu_custom_call.1} parent=75 // pred_check
          %p5241 = pneg %p322
        $region86: #{tpu_custom_call.1} parent=75 // pred_check_branch
          %5243 = sbr.rel (%p5241) target = $region88
        $region87: #{tpu_custom_call.1} parent=75 // pred_region
          %p5244 = scmp.lt.s32.totalorder %s32, 1
          %s5245 = scalar_select %p5244, %s32, 1
          %s5246 = smul.addr %s5245, 2
          %s5247 = smul.addr %s5246, 8
          %s5248 = scalar_lea.vmem %s12, %s5247
        $region88: #{tpu_custom_call.1} parent=75 // pred_fallthru
          _
      $region76: #{tpu_custom_call.1} parent=5 // pred_fallthru
        _
    $region6: #{tpu_custom_call.1} parent=1 // loop_footer
      %s30 = sadd.s32 1, %s26
    $region7: #{tpu_custom_call.1} parent=1 // loop_footer_branch
      %25 = sbr.rel target = $region3
    $region8: #{tpu_custom_call.1} parent=1 // loop_exit
      _
    %5249 = vsyncpa [#allocation5], 1
    %s5250 = scalar_lea.sflag [#allocation5], 1
    %5251 = vsyncpa %s5250, 1
    %5252 = vsyncpa [#allocation7], 1
    %s5253 = scalar_lea.sflag [#allocation7], 1
    %5254 = vsyncpa %s5253, 1

</llo_original>
